<compile_context>
chip_gen: v7x
topology: tpu7x:2x2x1
jax: 0.10.0
libtpu: 0.0.40
codegen_flags: <defaults>
</compile_context>

<pallas_src>
import jax
import jax.numpy as jnp
from jax.experimental import pallas as pl
from jax.experimental.pallas import tpu as pltpu

D = 20               # latent dim (d in the PyTorch module)
HID = D * D          # 400 hidden units (PyTorch)
HID_PAD = 512        # hidden padded to 4*128 lanes (MXU rounds 400 up anyway)
IN_DIM = 784         # 28*28
OUT_PAD = 896        # 784 padded to 7*128 lanes for a lane-dense recon store
N = 16               # batch size used in the PyTorch script


def vae_kernel(x_ref, eps_ref,
               w1_ref, b1_ref, w2_ref, b2_ref,
               w3_ref, b3_ref, w4_ref, b4_ref,
               recon_ref, head_ref):
    # ---- encoder: Linear(784, 512pad) -> ReLU (pad lanes are exactly 0) ----
    h1 = jnp.dot(x_ref[...], w1_ref[...],
                 preferred_element_type=jnp.float32) + b1_ref[...]        # (TB, 512) f32
    h1 = jnp.maximum(h1, 0.0)

    # ---- encoder head: single (512, 40) dot -> [mu | logvar] ----
    head = jnp.dot(h1.astype(jnp.bfloat16), w2_ref[...],
                   preferred_element_type=jnp.float32) + b2_ref[...]      # (TB, 40) f32
    head_ref[...] = head              # mu = cols 0..D-1, logvar = cols D..2D-1

    # ---- reparameterise (training mode) with NO lane realignment ----
    # eps_ref holds eps under the logvar lanes (cols D..2D-1) and zeros under
    # the mu lanes, so  t = [0 | eps*std]  and  u = [mu | eps*std].  The
    # duplicated decoder weight (w3_dup = [w3; w3]) then gives
    #   u @ w3_dup == (mu + eps*std) @ w3 == z @ w3.
    lane = jax.lax.broadcasted_iota(jnp.int32, head.shape, 1)
    is_mu = lane < D
    logvar_only = jnp.where(is_mu, 0.0, head)
    t = eps_ref[...] * jnp.exp(0.5 * logvar_only)                         # [0 | eps*std]
    u = jnp.where(is_mu, head, t)                                         # [mu | eps*std]

    # ---- decoder: Linear(d, 512pad) -> ReLU -> Linear(512pad, 896pad) -> Sigmoid
    h2 = jnp.dot(u.astype(jnp.bfloat16), w3_ref[...],
                 preferred_element_type=jnp.float32) + b3_ref[...]        # (TB, 512) f32
    h2 = jnp.maximum(h2, 0.0)
    logits = jnp.dot(h2.astype(jnp.bfloat16), w4_ref[...],
                     preferred_element_type=jnp.float32) + b4_ref[...]    # (TB, 896) f32
    # sigmoid via EUP-only ops (exp + approximate reciprocal)
    recon = pl.reciprocal(1.0 + jnp.exp(-logits), approx=True)
    recon_ref[...] = recon.astype(jnp.bfloat16)                           # lane-dense bf16 store


def _choose_tb(n, cap=512):
    """Rows per batch tile: minimize padding, keep the grid even and >= 2 when n > 8."""
    if n <= 8:
        return 8
    if n <= 16:
        return 8                                  # two tiles -> both v7x TensorCores busy
    ntiles = max(2, -(-n // cap))
    if ntiles % 2:
        ntiles += 1                               # even grid for 2-TC sharding on v7x
    return max(8, (-(-n // ntiles) + 7) // 8 * 8)


def vae_forward(x, eps, params):
    """x: (batch, 1, 28, 28) or (batch, 784).  eps: (batch, D) ~ N(0, I).
    Returns (recon, mu, logvar), matching the PyTorch module in training mode."""
    x2d = x.reshape(-1, IN_DIM).astype(jnp.bfloat16)   # glue: view(-1, 784); bf16 halves the read
    n = x2d.shape[0]
    # eps placed under the logvar lanes (cols D..2D-1); zeros under the mu lanes.
    eps_hi = jnp.pad(eps.astype(jnp.float32), ((0, 0), (D, 0)))

    TB = _choose_tb(n)
    n_pad = -(-n // TB) * TB
    if n_pad != n:
        x2d = jnp.pad(x2d, ((0, n_pad - n), (0, 0)))
        eps_hi = jnp.pad(eps_hi, ((0, n_pad - n), (0, 0)))
    grid = (n_pad // TB,)

    batch_map = lambda i: (i, 0)   # activation tiles walk the batch axis
    const_map = lambda i: (0, 0)   # weights/biases stay VMEM-resident

    in_specs = [
        pl.BlockSpec((TB, IN_DIM), batch_map),          # x        (bf16)
        pl.BlockSpec((TB, 2 * D), batch_map),           # eps_hi   (f32)
        pl.BlockSpec((IN_DIM, HID_PAD), const_map),     # w1       (bf16)
        pl.BlockSpec((1, HID_PAD), const_map),          # b1       (f32)
        pl.BlockSpec((HID_PAD, 2 * D), const_map),      # w2 merged (bf16)
        pl.BlockSpec((1, 2 * D), const_map),            # b2
        pl.BlockSpec((2 * D, HID_PAD), const_map),      # w3 duplicated (bf16)
        pl.BlockSpec((1, HID_PAD), const_map),          # b3
        pl.BlockSpec((HID_PAD, OUT_PAD), const_map),    # w4 padded (bf16)
        pl.BlockSpec((1, OUT_PAD), const_map),          # b4 padded
    ]
    out_specs = (
        pl.BlockSpec((TB, OUT_PAD), batch_map),         # recon (bf16, lane-dense)
        pl.BlockSpec((TB, 2 * D), batch_map),           # [mu | logvar] (f32)
    )
    out_shape = (
        jax.ShapeDtypeStruct((n_pad, OUT_PAD), jnp.bfloat16),
        jax.ShapeDtypeStruct((n_pad, 2 * D), jnp.float32),
    )

    # Advisory cost estimate for XLA's scheduler.
    flops = 2 * n_pad * (IN_DIM * HID_PAD + HID_PAD * 2 * D
                         + 2 * D * HID_PAD + HID_PAD * OUT_PAD)
    transcendentals = n_pad * (2 * D + 2 * OUT_PAD)          # reparam exp + sigmoid exp/recip
    weight_bytes = 2 * (IN_DIM * HID_PAD + HID_PAD * 2 * D
                        + 2 * D * HID_PAD + HID_PAD * OUT_PAD)
    bias_bytes = 4 * (2 * HID_PAD + 2 * D + OUT_PAD)
    act_bytes = n_pad * (2 * IN_DIM + 4 * 2 * D + 2 * OUT_PAD + 4 * 2 * D)
    cost = pl.CostEstimate(flops=flops, transcendentals=transcendentals,
                           bytes_accessed=weight_bytes + bias_bytes + act_bytes)

    recon_p, head_p = pl.pallas_call(
        vae_kernel,
        out_shape=out_shape,
        grid=grid,
        in_specs=in_specs,
        out_specs=out_specs,
        compiler_params=pltpu.CompilerParams(
            dimension_semantics=("parallel",),
            vmem_limit_bytes=32 * 1024 * 1024),
        cost_estimate=cost,
    )(x2d, eps_hi,
      params["w1"], params["b1"], params["w2"], params["b2"],
      params["w3"], params["b3"], params["w4"], params["b4"])

    # Strip batch padding, the recon lane padding, and split the packed head.
    recon = recon_p[:n, :IN_DIM].astype(jnp.float32)
    mu = head_p[:n, :D]
    logvar = head_p[:n, D:]
    return recon, mu, logvar


def init_raw_params(key):
    """Same shapes & init scheme as the PyTorch module; weights stored (in, out), f32."""
    def linear(k, fan_in, fan_out):
        kw, kb = jax.random.split(k)
        bound = 1.0 / jnp.sqrt(fan_in)
        w = jax.random.uniform(kw, (fan_in, fan_out), jnp.float32, -bound, bound)
        b = jax.random.uniform(kb, (1, fan_out), jnp.float32, -bound, bound)
        return w, b

    k1, k2, k3, k4 = jax.random.split(key, 4)
    w1, b1 = linear(k1, IN_DIM, HID)      # encoder Linear(784, 400)
    w2, b2 = linear(k2, HID, 2 * D)       # encoder Linear(400, 40): cols = [mu | logvar]
    w3, b3 = linear(k3, D, HID)           # decoder Linear(20, 400)
    w4, b4 = linear(k4, HID, IN_DIM)      # decoder Linear(400, 784)
    return dict(w1=w1, b1=b1, w2=w2, b2=b2, w3=w3, b3=b3, w4=w4, b4=b4)


def pack_params(raw):
    """Pad hidden 400->512 and recon 784->896 with zeros, duplicate w3 rows for the
    in-kernel reparameterisation trick, and cast weights to bf16 (biases stay f32)."""
    bf = jnp.bfloat16
    w1 = jnp.pad(raw["w1"], ((0, 0), (0, HID_PAD - HID)))                   # (784, 512)
    b1 = jnp.pad(raw["b1"], ((0, 0), (0, HID_PAD - HID)))                   # (1, 512), pad = 0
    w2 = jnp.pad(raw["w2"], ((0, HID_PAD - HID), (0, 0)))                   # (512, 40)
    b2 = raw["b2"]                                                          # (1, 40)
    w3p = jnp.pad(raw["w3"], ((0, 0), (0, HID_PAD - HID)))                  # (20, 512)
    w3 = jnp.concatenate([w3p, w3p], axis=0)                                # (40, 512) = [w3; w3]
    b3 = jnp.pad(raw["b3"], ((0, 0), (0, HID_PAD - HID)))                   # (1, 512), pad = 0
    w4 = jnp.pad(raw["w4"], ((0, HID_PAD - HID), (0, OUT_PAD - IN_DIM)))    # (512, 896)
    b4 = jnp.pad(raw["b4"], ((0, 0), (0, OUT_PAD - IN_DIM)))                # (1, 896)
    # TODO(synk): on v7x store w1/w4 as fp8 (+ per-matrix scale) and on v6e as int8 to
    # halve the weight DMA that dominates small-batch latency; kept bf16 here for a
    # single code path across v5e/v6e/v7x.
    return dict(w1=w1.astype(bf), b1=b1, w2=w2.astype(bf), b2=b2,
                w3=w3.astype(bf), b3=b3, w4=w4.astype(bf), b4=b4)


def vae_reference(x, eps, raw):
    """Pure-JAX f32 reference of the PyTorch forward (training mode)."""
    x2d = x.reshape(-1, IN_DIM).astype(jnp.float32)
    h1 = jax.nn.relu(x2d @ raw["w1"] + raw["b1"])
    head = h1 @ raw["w2"] + raw["b2"]
    mu, logvar = head[:, :D], head[:, D:]
    z = eps * jnp.exp(0.5 * logvar) + mu
    h2 = jax.nn.relu(z @ raw["w3"] + raw["b3"])
    recon = jax.nn.sigmoid(h2 @ raw["w4"] + raw["b4"])
    return recon, mu, logvar


if __name__ == "__main__":
    key = jax.random.PRNGKey(0)
    kp, kx, ke = jax.random.split(key, 3)

    raw = init_raw_params(kp)
    params = pack_params(raw)

    # MNIST-like input, NCHW as the PyTorch module would receive; flattened in glue.
    x = jax.random.uniform(kx, (N, 1, 28, 28), jnp.float32)
    # Training-mode reparameterisation noise: eps ~ N(0, I).
    eps = jax.random.normal(ke, (N, D), jnp.float32)

    recon, mu, logvar = vae_forward(x, eps, params)
    jax.block_until_ready((recon, mu, logvar))

    assert recon.shape == (N, IN_DIM)
    assert mu.shape == (N, D) and logvar.shape == (N, D)
    assert bool(jnp.all((recon >= 0.0) & (recon <= 1.0)))

    # bf16 weights / bf16 x / bf16 recon => ~2-3 decimal digits vs the f32 reference.
    recon_ref, mu_ref, logvar_ref = vae_reference(x, eps, raw)
    assert bool(jnp.all(jnp.abs(mu - mu_ref) <= 3e-2))
    assert bool(jnp.all(jnp.abs(logvar - logvar_ref) <= 3e-2))
    assert bool(jnp.all(jnp.abs(recon - recon_ref) <= 4e-2))
    print("KERNEL_OK")
</pallas_src>

<mosaic_0001>
module attributes {stable_mosaic.version = 11 : i64} {
  func.func @vae_kernel(%arg0: i32, %arg1: memref<8x784xbf16, #tpu.memory_space<vmem>>, %arg2: memref<8x40xf32, #tpu.memory_space<vmem>>, %arg3: memref<784x512xbf16, #tpu.memory_space<vmem>>, %arg4: memref<1x512xf32, #tpu.memory_space<vmem>>, %arg5: memref<512x40xbf16, #tpu.memory_space<vmem>>, %arg6: memref<1x40xf32, #tpu.memory_space<vmem>>, %arg7: memref<40x512xbf16, #tpu.memory_space<vmem>>, %arg8: memref<1x512xf32, #tpu.memory_space<vmem>>, %arg9: memref<512x896xbf16, #tpu.memory_space<vmem>>, %arg10: memref<1x896xf32, #tpu.memory_space<vmem>>, %arg11: memref<8x896xbf16, #tpu.memory_space<vmem>>, %arg12: memref<8x40xf32, #tpu.memory_space<vmem>>) attributes {dimension_semantics = [#tpu.dimension_semantics<parallel>], iteration_bounds = array<i64: 2>, scalar_prefetch = 0 : i64, scratch_operands = 0 : i64, tpu.core_type = #tpu.core_type<tc>, window_params = [{transform_indices = @transform_0, window_bounds = array<i64: 8, 784>}, {transform_indices = @transform_1, window_bounds = array<i64: 8, 40>}, {pipeline_mode = #tpu.pipeline_mode<synchronous>, transform_indices = @transform_2, window_bounds = array<i64: 784, 512>}, {pipeline_mode = #tpu.pipeline_mode<synchronous>, transform_indices = @transform_3, window_bounds = array<i64: 1, 512>}, {pipeline_mode = #tpu.pipeline_mode<synchronous>, transform_indices = @transform_4, window_bounds = array<i64: 512, 40>}, {pipeline_mode = #tpu.pipeline_mode<synchronous>, transform_indices = @transform_5, window_bounds = array<i64: 1, 40>}, {pipeline_mode = #tpu.pipeline_mode<synchronous>, transform_indices = @transform_6, window_bounds = array<i64: 40, 512>}, {pipeline_mode = #tpu.pipeline_mode<synchronous>, transform_indices = @transform_7, window_bounds = array<i64: 1, 512>}, {pipeline_mode = #tpu.pipeline_mode<synchronous>, transform_indices = @transform_8, window_bounds = array<i64: 512, 896>}, {pipeline_mode = #tpu.pipeline_mode<synchronous>, transform_indices = @transform_9, window_bounds = array<i64: 1, 896>}, {transform_indices = @transform_10, window_bounds = array<i64: 8, 896>}, {transform_indices = @transform_11, window_bounds = array<i64: 8, 40>}]} {
    %c0 = arith.constant 0 : index
    %c0_0 = arith.constant 0 : index
    %0 = vector.load %arg1[%c0, %c0_0] : memref<8x784xbf16, #tpu.memory_space<vmem>>, vector<8x784xbf16>
    %c0_1 = arith.constant 0 : index
    %c0_2 = arith.constant 0 : index
    %1 = vector.load %arg3[%c0_1, %c0_2] : memref<784x512xbf16, #tpu.memory_space<vmem>>, vector<784x512xbf16>
    %cst = arith.constant dense<0.000000e+00> : vector<8x512xf32>
    %2 = tpu.matmul %0, %1, %cst {dimension_numbers = #tpu.dot_dimension_numbers<[1], [0], [0], [1], [0, 0, 1, 1], [], []>} : vector<8x784xbf16>, vector<784x512xbf16>, vector<8x512xf32> -> vector<8x512xf32>
    %c0_3 = arith.constant 0 : index
    %c0_4 = arith.constant 0 : index
    %3 = vector.load %arg4[%c0_3, %c0_4] : memref<1x512xf32, #tpu.memory_space<vmem>>, vector<1x512xf32>
    %4 = vector.broadcast %3 : vector<1x512xf32> to vector<8x512xf32>
    %5 = arith.addf %2, %4 : vector<8x512xf32>
    %cst_5 = arith.constant 0.000000e+00 : f32
    %6 = vector.broadcast %cst_5 : f32 to vector<8x512xf32>
    %7 = arith.maximumf %5, %6 : vector<8x512xf32>
    %8 = arith.truncf %7 : vector<8x512xf32> to vector<8x512xbf16>
    %c0_6 = arith.constant 0 : index
    %c0_7 = arith.constant 0 : index
    %9 = vector.load %arg5[%c0_6, %c0_7] : memref<512x40xbf16, #tpu.memory_space<vmem>>, vector<512x40xbf16>
    %cst_8 = arith.constant dense<0.000000e+00> : vector<8x40xf32>
    %10 = tpu.matmul %8, %9, %cst_8 {dimension_numbers = #tpu.dot_dimension_numbers<[1], [0], [0], [1], [0, 0, 1, 1], [], []>} : vector<8x512xbf16>, vector<512x40xbf16>, vector<8x40xf32> -> vector<8x40xf32>
    %c0_9 = arith.constant 0 : index
    %c0_10 = arith.constant 0 : index
    %11 = vector.load %arg6[%c0_9, %c0_10] : memref<1x40xf32, #tpu.memory_space<vmem>>, vector<1x40xf32>
    %12 = vector.broadcast %11 : vector<1x40xf32> to vector<8x40xf32>
    %13 = arith.addf %10, %12 : vector<8x40xf32>
    %c0_11 = arith.constant 0 : index
    %c0_12 = arith.constant 0 : index
    %14 = vector.load %arg12[%c0_11, %c0_12] : memref<8x40xf32, #tpu.memory_space<vmem>>, vector<8x40xf32>
    tpu.vector_store %arg12[%c0_11, %c0_12], %13 {strides = array<i32>} : memref<8x40xf32, #tpu.memory_space<vmem>>, vector<8x40xf32>,
    %15 = tpu.iota {dimensions = array<i32: 1>} : vector<8x40xi32>
    %c20_i32 = arith.constant 20 : i32
    %16 = vector.broadcast %c20_i32 : i32 to vector<8x40xi32>
    %17 = arith.cmpi slt, %15, %16 : vector<8x40xi32>
    %cst_13 = arith.constant 0.000000e+00 : f32
    %18 = vector.broadcast %cst_13 : f32 to vector<8x40xf32>
    %19 = arith.select %17, %18, %13 : vector<8x40xi1>, vector<8x40xf32>
    %c0_14 = arith.constant 0 : index
    %c0_15 = arith.constant 0 : index
    %20 = vector.load %arg2[%c0_14, %c0_15] : memref<8x40xf32, #tpu.memory_space<vmem>>, vector<8x40xf32>
    %cst_16 = arith.constant 5.000000e-01 : f32
    %21 = vector.broadcast %cst_16 : f32 to vector<8x40xf32>
    %22 = arith.mulf %21, %19 : vector<8x40xf32>
    %23 = math.exp %22 : vector<8x40xf32>
    %24 = arith.mulf %20, %23 : vector<8x40xf32>
    %25 = arith.select %17, %13, %24 : vector<8x40xi1>, vector<8x40xf32>
    %26 = arith.truncf %25 : vector<8x40xf32> to vector<8x40xbf16>
    %c0_17 = arith.constant 0 : index
    %c0_18 = arith.constant 0 : index
    %27 = vector.load %arg7[%c0_17, %c0_18] : memref<40x512xbf16, #tpu.memory_space<vmem>>, vector<40x512xbf16>
    %cst_19 = arith.constant dense<0.000000e+00> : vector<8x512xf32>
    %28 = tpu.matmul %26, %27, %cst_19 {dimension_numbers = #tpu.dot_dimension_numbers<[1], [0], [0], [1], [0, 0, 1, 1], [], []>} : vector<8x40xbf16>, vector<40x512xbf16>, vector<8x512xf32> -> vector<8x512xf32>
    %c0_20 = arith.constant 0 : index
    %c0_21 = arith.constant 0 : index
    %29 = vector.load %arg8[%c0_20, %c0_21] : memref<1x512xf32, #tpu.memory_space<vmem>>, vector<1x512xf32>
    %30 = vector.broadcast %29 : vector<1x512xf32> to vector<8x512xf32>
    %31 = arith.addf %28, %30 : vector<8x512xf32>
    %cst_22 = arith.constant 0.000000e+00 : f32
    %32 = vector.broadcast %cst_22 : f32 to vector<8x512xf32>
    %33 = arith.maximumf %31, %32 : vector<8x512xf32>
    %34 = arith.truncf %33 : vector<8x512xf32> to vector<8x512xbf16>
    %c0_23 = arith.constant 0 : index
    %c0_24 = arith.constant 0 : index
    %35 = vector.load %arg9[%c0_23, %c0_24] : memref<512x896xbf16, #tpu.memory_space<vmem>>, vector<512x896xbf16>
    %cst_25 = arith.constant dense<0.000000e+00> : vector<8x896xf32>
    %36 = tpu.matmul %34, %35, %cst_25 {dimension_numbers = #tpu.dot_dimension_numbers<[1], [0], [0], [1], [0, 0, 1, 1], [], []>} : vector<8x512xbf16>, vector<512x896xbf16>, vector<8x896xf32> -> vector<8x896xf32>
    %c0_26 = arith.constant 0 : index
    %c0_27 = arith.constant 0 : index
    %37 = vector.load %arg10[%c0_26, %c0_27] : memref<1x896xf32, #tpu.memory_space<vmem>>, vector<1x896xf32>
    %38 = vector.broadcast %37 : vector<1x896xf32> to vector<8x896xf32>
    %39 = arith.addf %36, %38 : vector<8x896xf32>
    %cst_28 = arith.constant 0.000000e+00 : f32
    %40 = vector.broadcast %cst_28 : f32 to vector<8x896xf32>
    %41 = arith.subf %40, %39 : vector<8x896xf32>
    %42 = math.exp %41 : vector<8x896xf32>
    %cst_29 = arith.constant 1.000000e+00 : f32
    %43 = vector.broadcast %cst_29 : f32 to vector<8x896xf32>
    %44 = arith.addf %43, %42 : vector<8x896xf32>
    %45 = tpu.reciprocal %44 {approx = true} : vector<8x896xf32> -> vector<8x896xf32>
    %46 = arith.truncf %45 : vector<8x896xf32> to vector<8x896xbf16>
    %c0_30 = arith.constant 0 : index
    %c0_31 = arith.constant 0 : index
    %47 = vector.load %arg11[%c0_30, %c0_31] : memref<8x896xbf16, #tpu.memory_space<vmem>>, vector<8x896xbf16>
    tpu.vector_store %arg11[%c0_30, %c0_31], %46 {strides = array<i32>} : memref<8x896xbf16, #tpu.memory_space<vmem>>, vector<8x896xbf16>,
    return
  }
  func.func @transform_0(%arg0: i32) -> (i32, i32) {
    %c0_i32 = arith.constant 0 : i32
    %c0_i32_0 = arith.constant 0 : i32
    return %arg0, %c0_i32 : i32, i32
  }
  func.func @transform_1(%arg0: i32) -> (i32, i32) {
    %c0_i32 = arith.constant 0 : i32
    %c0_i32_0 = arith.constant 0 : i32
    return %arg0, %c0_i32 : i32, i32
  }
  func.func @transform_2(%arg0: i32) -> (i32, i32) {
    %c0_i32 = arith.constant 0 : i32
    %c0_i32_0 = arith.constant 0 : i32
    %c0_i32_1 = arith.constant 0 : i32
    return %c0_i32, %c0_i32_0 : i32, i32
  }
  func.func @transform_3(%arg0: i32) -> (i32, i32) {
    %c0_i32 = arith.constant 0 : i32
    %c0_i32_0 = arith.constant 0 : i32
    %c0_i32_1 = arith.constant 0 : i32
    return %c0_i32, %c0_i32_0 : i32, i32
  }
  func.func @transform_4(%arg0: i32) -> (i32, i32) {
    %c0_i32 = arith.constant 0 : i32
    %c0_i32_0 = arith.constant 0 : i32
    %c0_i32_1 = arith.constant 0 : i32
    return %c0_i32, %c0_i32_0 : i32, i32
  }
  func.func @transform_5(%arg0: i32) -> (i32, i32) {
    %c0_i32 = arith.constant 0 : i32
    %c0_i32_0 = arith.constant 0 : i32
    %c0_i32_1 = arith.constant 0 : i32
    return %c0_i32, %c0_i32_0 : i32, i32
  }
  func.func @transform_6(%arg0: i32) -> (i32, i32) {
    %c0_i32 = arith.constant 0 : i32
    %c0_i32_0 = arith.constant 0 : i32
    %c0_i32_1 = arith.constant 0 : i32
    return %c0_i32, %c0_i32_0 : i32, i32
  }
  func.func @transform_7(%arg0: i32) -> (i32, i32) {
    %c0_i32 = arith.constant 0 : i32
    %c0_i32_0 = arith.constant 0 : i32
    %c0_i32_1 = arith.constant 0 : i32
    return %c0_i32, %c0_i32_0 : i32, i32
  }
  func.func @transform_8(%arg0: i32) -> (i32, i32) {
    %c0_i32 = arith.constant 0 : i32
    %c0_i32_0 = arith.constant 0 : i32
    %c0_i32_1 = arith.constant 0 : i32
    return %c0_i32, %c0_i32_0 : i32, i32
  }
  func.func @transform_9(%arg0: i32) -> (i32, i32) {
    %c0_i32 = arith.constant 0 : i32
    %c0_i32_0 = arith.constant 0 : i32
    %c0_i32_1 = arith.constant 0 : i32
    return %c0_i32, %c0_i32_0 : i32, i32
  }
  func.func @transform_10(%arg0: i32) -> (i32, i32) {
    %c0_i32 = arith.constant 0 : i32
    %c0_i32_0 = arith.constant 0 : i32
    return %arg0, %c0_i32 : i32, i32
  }
  func.func @transform_11(%arg0: i32) -> (i32, i32) {
    %c0_i32 = arith.constant 0 : i32
    %c0_i32_0 = arith.constant 0 : i32
    return %arg0, %c0_i32 : i32, i32
  }
}

</mosaic_0001>

<llo_original>
// kernel: tpu_custom_call.1
$region0: #{tpu_custom_call.1}
  #allocation0 [shape = 'u32[]', space=smem, size = 0x4, offset = 0x4, fixed_abs, tag = 'smem constant byte address 0x4 - core index']
  #allocation1 [shape = 'u32[144,128]{1,0:T(1,128)}', space=vmem, size = 0x12000, scoped, tag = 'internal scratch']
  %s0 = inlined_call_operand.vmem [shape: bf16[16,784], index: 0, kind: input, shape index: {}]
  %s1 = inlined_call_operand.vmem [shape: f32[16,40], index: 1, kind: input, shape index: {}]
  %s2 = inlined_call_operand.hbm [shape: bf16[784,512], index: 2, kind: input, shape index: {}]
  %s3 = inlined_call_operand.vmem [shape: f32[1,512], index: 3, kind: input, shape index: {}]
  %s4 = inlined_call_operand.vmem [shape: bf16[512,40], index: 4, kind: input, shape index: {}]
  %s5 = inlined_call_operand.vmem [shape: f32[1,40], index: 5, kind: input, shape index: {}]
  %s6 = inlined_call_operand.vmem [shape: bf16[40,512], index: 6, kind: input, shape index: {}]
  %s7 = inlined_call_operand.vmem [shape: f32[1,512], index: 7, kind: input, shape index: {}]
  %s8 = inlined_call_operand.hbm [shape: bf16[512,896], index: 8, kind: input, shape index: {}]
  %s9 = inlined_call_operand.vmem [shape: f32[1,896], index: 9, kind: input, shape index: {}]
  %s10 = inlined_call_operand.hbm [shape: bf16[16,896], index: 10, kind: output, shape index: {0}]
  %s11 = inlined_call_operand.hbm [shape: f32[16,40], index: 11, kind: output, shape index: {1}]
  %12 = xla_tuple %s10, %s11
  %s13 = sld [smem:[#allocation0]]
  $region89: #{tpu_custom_call.1} parent=0
    _
  %s15 = ssub.s32 1, %s13
  %s16 = scalar_select 0, %s15, %s13
  $region1: #{tpu_custom_call.1} parent=0
    #allocation2 [shape = 'u8[802816]{0}', space=vmem, size = 0xc4000, scoped, tag = 'input window, operand 2, single buffered']
    #allocation3 [shape = 's32[2]{0}', space=sflag, size = 0x8, scoped, tag = 'scoped memory for tpu_custom_call.1']
    #allocation4 [shape = 's32[2]{0}', space=sflag, size = 0x8, scoped, tag = 'scoped memory for tpu_custom_call.1']
    #allocation5 [shape = 'u8[917504]{0}', space=vmem, size = 0xe0000, scoped, tag = 'input window, operand 8, single buffered']
    #allocation6 [shape = 's32[1]{0}', space=sflag, size = 0x4, scoped, tag = 'scoped memory for tpu_custom_call.1']
    #allocation7 [shape = 'u8[28672]{0}', space=vmem, size = 0x7000, scoped, tag = 'output window, operand 0']
    #allocation8 [shape = 'u8[8192]{0}', space=vmem, size = 0x2000, scoped, tag = 'output window, operand 1']
    #allocation9 [shape = 's32[2]{0}', space=sflag, size = 0x8, scoped, tag = 'scoped memory for tpu_custom_call.1']
    %17 = vsyncpa [#allocation3], 0
    %18 = vsyncpa [#allocation6], 0
    %19 = vsyncpa [#allocation4], 0
    %s20 = scalar_lea.sflag [#allocation4], 1
    %21 = vsyncpa %s20, 0
    %22 = vsyncpa [#allocation9], 0
    %s23 = scalar_lea.sflag [#allocation9], 1
    %24 = vsyncpa %s23, 0
    loop: start=0, step=1, limit=4
    $region2: #{tpu_custom_call.1} parent=1 // loop_pre_header
      _
    $region3: #{tpu_custom_call.1} parent=1 // loop_header
      %s26 = sphi 0, %s30
      %p27 = scmp.ge.s32.totalorder %s26, 4
      %s36 = sphi 0, %s38
      %s39 = sphi 0, %s36
      %s40 = sphi 0, %s39
      %s56 = sphi 0, %s40
      %s62 = sphi 0, %s64
      %s65 = sphi 0, %s62
      %s66 = sphi 0, %s65
      %s82 = sphi 0, %s66
      %s86 = sphi 0, %s86
      %s88 = sphi 0, %s86
      %s89 = sphi 0, %s88
      %s103 = sphi 0, %s89
      %s107 = sphi 0, %s107
      %s109 = sphi 0, %s107
      %s110 = sphi 0, %s109
      %s124 = sphi 0, %s110
      %s128 = sphi 0, %s128
      %s130 = sphi 0, %s128
      %s131 = sphi 0, %s130
      %s145 = sphi 0, %s131
      %s149 = sphi 0, %s149
      %s151 = sphi 0, %s149
      %s152 = sphi 0, %s151
      %s166 = sphi 0, %s152
      %s170 = sphi 0, %s170
      %s172 = sphi 0, %s170
      %s173 = sphi 0, %s172
      %s187 = sphi 0, %s173
      %s191 = sphi 0, %s191
      %s193 = sphi 0, %s191
      %s194 = sphi 0, %s193
      %s208 = sphi 0, %s194
      %s212 = sphi 0, %s212
      %s214 = sphi 0, %s212
      %s215 = sphi 0, %s214
      %s229 = sphi 0, %s215
      %s233 = sphi 0, %s233
      %s235 = sphi 0, %s233
      %s236 = sphi 0, %s235
      %s250 = sphi 0, %s236
      %s256 = sphi 0, %s258
      %s259 = sphi 0, %s256
      %s260 = sphi 0, %s259
      %s276 = sphi 0, %s260
      %s282 = sphi 0, %s284
      %s285 = sphi 0, %s282
      %s286 = sphi 0, %s285
      %s302 = sphi 0, %s286
    $region4: #{tpu_custom_call.1} parent=1 // loop_header_branch
      %29 = sbr.rel (%p27) target = $region8
    $region5: #{tpu_custom_call.1} parent=1 // loop_body
      %s31 = ssub.s32 %s26, 1
      %s32 = ssub.s32 %s26, 2
      %s33 = sadd.s32 %s26, 1
      %s34 = ssub.s32 %s26, %s33
      %p35 = scmp.eq.s32.totalorder %s34, 0
      %s37 = sadd.s32 %s36, 1
      %s38 = scalar_select %p35, %s36, %s37
      %p41 = pneg %p35
      %p42 = scmp.eq.s32.totalorder %s26, 1
      %p43 = por %p41, %p42
      %p44 = scmp.ne.s32.totalorder %s36, %s39
      %p45 = scmp.eq.s32.totalorder %s26, 0
      %p46 = por %p44, %p45
      %p47 = scmp.ne.s32.totalorder %s36, %s39
      %p48 = scmp.eq.s32.totalorder %s31, 1
      %p49 = por %p47, %p48
      %p50 = scmp.ne.s32.totalorder %s39, %s40
      %p51 = scmp.eq.s32.totalorder %s31, 0
      %p52 = por %p50, %p51
      %p53 = scmp.ne.s32.totalorder %s39, %s40
      %p54 = scmp.eq.s32.totalorder %s32, 1
      %p55 = por %p53, %p54
      %p57 = scmp.ne.s32.totalorder %s40, %s56
      %p58 = scmp.eq.s32.totalorder %s32, 0
      %p59 = por %p57, %p58
      %s60 = ssub.s32 %s26, %s33
      %p61 = scmp.eq.s32.totalorder %s60, 0
      %s63 = sadd.s32 %s62, 1
      %s64 = scalar_select %p61, %s62, %s63
      %p67 = pneg %p61
      %p68 = scmp.eq.s32.totalorder %s26, 1
      %p69 = por %p67, %p68
      %p70 = scmp.ne.s32.totalorder %s62, %s65
      %p71 = scmp.eq.s32.totalorder %s26, 0
      %p72 = por %p70, %p71
      %p73 = scmp.ne.s32.totalorder %s62, %s65
      %p74 = scmp.eq.s32.totalorder %s31, 1
      %p75 = por %p73, %p74
      %p76 = scmp.ne.s32.totalorder %s65, %s66
      %p77 = scmp.eq.s32.totalorder %s31, 0
      %p78 = por %p76, %p77
      %p79 = scmp.ne.s32.totalorder %s65, %s66
      %p80 = scmp.eq.s32.totalorder %s32, 1
      %p81 = por %p79, %p80
      %p83 = scmp.ne.s32.totalorder %s66, %s82
      %p84 = scmp.eq.s32.totalorder %s32, 0
      %p85 = por %p83, %p84
      %s87 = sadd.s32 %s86, 1
      %p90 = scmp.eq.s32.totalorder %s26, 1
      %p91 = scmp.ne.s32.totalorder %s86, %s88
      %p92 = scmp.eq.s32.totalorder %s26, 0
      %p93 = por %p91, %p92
      %p94 = scmp.ne.s32.totalorder %s86, %s88
      %p95 = scmp.eq.s32.totalorder %s31, 1
      %p96 = por %p94, %p95
      %p97 = scmp.ne.s32.totalorder %s88, %s89
      %p98 = scmp.eq.s32.totalorder %s31, 0
      %p99 = por %p97, %p98
      %p100 = scmp.ne.s32.totalorder %s88, %s89
      %p101 = scmp.eq.s32.totalorder %s32, 1
      %p102 = por %p100, %p101
      %p104 = scmp.ne.s32.totalorder %s89, %s103
      %p105 = scmp.eq.s32.totalorder %s32, 0
      %p106 = por %p104, %p105
      %s108 = sadd.s32 %s107, 1
      %p111 = scmp.eq.s32.totalorder %s26, 1
      %p112 = scmp.ne.s32.totalorder %s107, %s109
      %p113 = scmp.eq.s32.totalorder %s26, 0
      %p114 = por %p112, %p113
      %p115 = scmp.ne.s32.totalorder %s107, %s109
      %p116 = scmp.eq.s32.totalorder %s31, 1
      %p117 = por %p115, %p116
      %p118 = scmp.ne.s32.totalorder %s109, %s110
      %p119 = scmp.eq.s32.totalorder %s31, 0
      %p120 = por %p118, %p119
      %p121 = scmp.ne.s32.totalorder %s109, %s110
      %p122 = scmp.eq.s32.totalorder %s32, 1
      %p123 = por %p121, %p122
      %p125 = scmp.ne.s32.totalorder %s110, %s124
      %p126 = scmp.eq.s32.totalorder %s32, 0
      %p127 = por %p125, %p126
      %s129 = sadd.s32 %s128, 1
      %p132 = scmp.eq.s32.totalorder %s26, 1
      %p133 = scmp.ne.s32.totalorder %s128, %s130
      %p134 = scmp.eq.s32.totalorder %s26, 0
      %p135 = por %p133, %p134
      %p136 = scmp.ne.s32.totalorder %s128, %s130
      %p137 = scmp.eq.s32.totalorder %s31, 1
      %p138 = por %p136, %p137
      %p139 = scmp.ne.s32.totalorder %s130, %s131
      %p140 = scmp.eq.s32.totalorder %s31, 0
      %p141 = por %p139, %p140
      %p142 = scmp.ne.s32.totalorder %s130, %s131
      %p143 = scmp.eq.s32.totalorder %s32, 1
      %p144 = por %p142, %p143
      %p146 = scmp.ne.s32.totalorder %s131, %s145
      %p147 = scmp.eq.s32.totalorder %s32, 0
      %p148 = por %p146, %p147
      %s150 = sadd.s32 %s149, 1
      %p153 = scmp.eq.s32.totalorder %s26, 1
      %p154 = scmp.ne.s32.totalorder %s149, %s151
      %p155 = scmp.eq.s32.totalorder %s26, 0
      %p156 = por %p154, %p155
      %p157 = scmp.ne.s32.totalorder %s149, %s151
      %p158 = scmp.eq.s32.totalorder %s31, 1
      %p159 = por %p157, %p158
      %p160 = scmp.ne.s32.totalorder %s151, %s152
      %p161 = scmp.eq.s32.totalorder %s31, 0
      %p162 = por %p160, %p161
      %p163 = scmp.ne.s32.totalorder %s151, %s152
      %p164 = scmp.eq.s32.totalorder %s32, 1
      %p165 = por %p163, %p164
      %p167 = scmp.ne.s32.totalorder %s152, %s166
      %p168 = scmp.eq.s32.totalorder %s32, 0
      %p169 = por %p167, %p168
      %s171 = sadd.s32 %s170, 1
      %p174 = scmp.eq.s32.totalorder %s26, 1
      %p175 = scmp.ne.s32.totalorder %s170, %s172
      %p176 = scmp.eq.s32.totalorder %s26, 0
      %p177 = por %p175, %p176
      %p178 = scmp.ne.s32.totalorder %s170, %s172
      %p179 = scmp.eq.s32.totalorder %s31, 1
      %p180 = por %p178, %p179
      %p181 = scmp.ne.s32.totalorder %s172, %s173
      %p182 = scmp.eq.s32.totalorder %s31, 0
      %p183 = por %p181, %p182
      %p184 = scmp.ne.s32.totalorder %s172, %s173
      %p185 = scmp.eq.s32.totalorder %s32, 1
      %p186 = por %p184, %p185
      %p188 = scmp.ne.s32.totalorder %s173, %s187
      %p189 = scmp.eq.s32.totalorder %s32, 0
      %p190 = por %p188, %p189
      %s192 = sadd.s32 %s191, 1
      %p195 = scmp.eq.s32.totalorder %s26, 1
      %p196 = scmp.ne.s32.totalorder %s191, %s193
      %p197 = scmp.eq.s32.totalorder %s26, 0
      %p198 = por %p196, %p197
      %p199 = scmp.ne.s32.totalorder %s191, %s193
      %p200 = scmp.eq.s32.totalorder %s31, 1
      %p201 = por %p199, %p200
      %p202 = scmp.ne.s32.totalorder %s193, %s194
      %p203 = scmp.eq.s32.totalorder %s31, 0
      %p204 = por %p202, %p203
      %p205 = scmp.ne.s32.totalorder %s193, %s194
      %p206 = scmp.eq.s32.totalorder %s32, 1
      %p207 = por %p205, %p206
      %p209 = scmp.ne.s32.totalorder %s194, %s208
      %p210 = scmp.eq.s32.totalorder %s32, 0
      %p211 = por %p209, %p210
      %s213 = sadd.s32 %s212, 1
      %p216 = scmp.eq.s32.totalorder %s26, 1
      %p217 = scmp.ne.s32.totalorder %s212, %s214
      %p218 = scmp.eq.s32.totalorder %s26, 0
      %p219 = por %p217, %p218
      %p220 = scmp.ne.s32.totalorder %s212, %s214
      %p221 = scmp.eq.s32.totalorder %s31, 1
      %p222 = por %p220, %p221
      %p223 = scmp.ne.s32.totalorder %s214, %s215
      %p224 = scmp.eq.s32.totalorder %s31, 0
      %p225 = por %p223, %p224
      %p226 = scmp.ne.s32.totalorder %s214, %s215
      %p227 = scmp.eq.s32.totalorder %s32, 1
      %p228 = por %p226, %p227
      %p230 = scmp.ne.s32.totalorder %s215, %s229
      %p231 = scmp.eq.s32.totalorder %s32, 0
      %p232 = por %p230, %p231
      %s234 = sadd.s32 %s233, 1
      %p237 = scmp.eq.s32.totalorder %s26, 1
      %p238 = scmp.ne.s32.totalorder %s233, %s235
      %p239 = scmp.eq.s32.totalorder %s26, 0
      %p240 = por %p238, %p239
      %p241 = scmp.ne.s32.totalorder %s233, %s235
      %p242 = scmp.eq.s32.totalorder %s31, 1
      %p243 = por %p241, %p242
      %p244 = scmp.ne.s32.totalorder %s235, %s236
      %p245 = scmp.eq.s32.totalorder %s31, 0
      %p246 = por %p244, %p245
      %p247 = scmp.ne.s32.totalorder %s235, %s236
      %p248 = scmp.eq.s32.totalorder %s32, 1
      %p249 = por %p247, %p248
      %p251 = scmp.ne.s32.totalorder %s236, %s250
      %p252 = scmp.eq.s32.totalorder %s32, 0
      %p253 = por %p251, %p252
      %s254 = ssub.s32 %s26, %s33
      %p255 = scmp.eq.s32.totalorder %s254, 0
      %s257 = sadd.s32 %s256, 1
      %s258 = scalar_select %p255, %s256, %s257
      %p261 = pneg %p255
      %p262 = scmp.eq.s32.totalorder %s26, 1
      %p263 = por %p261, %p262
      %p264 = scmp.ne.s32.totalorder %s256, %s259
      %p265 = scmp.eq.s32.totalorder %s26, 0
      %p266 = por %p264, %p265
      %p267 = scmp.ne.s32.totalorder %s256, %s259
      %p268 = scmp.eq.s32.totalorder %s31, 1
      %p269 = por %p267, %p268
      %p270 = scmp.ne.s32.totalorder %s259, %s260
      %p271 = scmp.eq.s32.totalorder %s31, 0
      %p272 = por %p270, %p271
      %p273 = scmp.ne.s32.totalorder %s259, %s260
      %p274 = scmp.eq.s32.totalorder %s32, 1
      %p275 = por %p273, %p274
      %p277 = scmp.ne.s32.totalorder %s260, %s276
      %p278 = scmp.eq.s32.totalorder %s32, 0
      %p279 = por %p277, %p278
      %s280 = ssub.s32 %s26, %s33
      %p281 = scmp.eq.s32.totalorder %s280, 0
      %s283 = sadd.s32 %s282, 1
      %s284 = scalar_select %p281, %s282, %s283
      %p287 = pneg %p281
      %p288 = scmp.eq.s32.totalorder %s26, 1
      %p289 = por %p287, %p288
      %p290 = scmp.ne.s32.totalorder %s282, %s285
      %p291 = scmp.eq.s32.totalorder %s26, 0
      %p292 = por %p290, %p291
      %p293 = scmp.ne.s32.totalorder %s282, %s285
      %p294 = scmp.eq.s32.totalorder %s31, 1
      %p295 = por %p293, %p294
      %p296 = scmp.ne.s32.totalorder %s285, %s286
      %p297 = scmp.eq.s32.totalorder %s31, 0
      %p298 = por %p296, %p297
      %p299 = scmp.ne.s32.totalorder %s285, %s286
      %p300 = scmp.eq.s32.totalorder %s32, 1
      %p301 = por %p299, %p300
      %p303 = scmp.ne.s32.totalorder %s286, %s302
      %p304 = scmp.eq.s32.totalorder %s32, 0
      %p305 = por %p303, %p304
      %p306 = scmp.le.s32.totalorder 1, %s26
      %p307 = scmp.lt.s32.totalorder %s26, 3
      %p308 = pnand %p306, %p307
      %p309 = pneg %p308
      // Predicated region
      $region9: #{tpu_custom_call.1} parent=5 // pred_check
        _
      $region10: #{tpu_custom_call.1} parent=5 // pred_check_branch
        %311 = sbr.rel (%p308) target = $region12
      $region11: #{tpu_custom_call.1} parent=5 // pred_region
        %s312 = ssub.s32 %s26, 1
        // Predicated region
        $region13: #{tpu_custom_call.1} parent=11 // pred_check
          %p313 = pneg %p99
        $region14: #{tpu_custom_call.1} parent=11 // pred_check_branch
          %315 = sbr.rel (%p313) target = $region16
        $region15: #{tpu_custom_call.1} parent=11 // pred_region
          %s317 = ssub.s32 25088, 25088
          %318 = vsyncadd [#allocation3], %s317
          %s319 = sshll.u32 [#allocation2], 4
          %s320 = int_to_ptr.vmem [resolvable:$true] %s319
          %325 = dma.hbm_to_vmem [thread:$0]  %s2, 25088, %s320, [#allocation3], 256, 256, 16
        $region16: #{tpu_custom_call.1} parent=11 // pred_fallthru
          _
        // Predicated region
        $region17: #{tpu_custom_call.1} parent=11 // pred_check
          %p326 = pneg %p120
        $region18: #{tpu_custom_call.1} parent=11 // pred_check_branch
          %328 = sbr.rel (%p326) target = $region20
        $region19: #{tpu_custom_call.1} parent=11 // pred_region
          _
        $region20: #{tpu_custom_call.1} parent=11 // pred_fallthru
          _
        // Predicated region
        $region21: #{tpu_custom_call.1} parent=11 // pred_check
          %p329 = pneg %p141
        $region22: #{tpu_custom_call.1} parent=11 // pred_check_branch
          %331 = sbr.rel (%p329) target = $region24
        $region23: #{tpu_custom_call.1} parent=11 // pred_region
          _
        $region24: #{tpu_custom_call.1} parent=11 // pred_fallthru
          _
        // Predicated region
        $region25: #{tpu_custom_call.1} parent=11 // pred_check
          %p332 = pneg %p162
        $region26: #{tpu_custom_call.1} parent=11 // pred_check_branch
          %334 = sbr.rel (%p332) target = $region28
        $region27: #{tpu_custom_call.1} parent=11 // pred_region
          _
        $region28: #{tpu_custom_call.1} parent=11 // pred_fallthru
          _
        // Predicated region
        $region29: #{tpu_custom_call.1} parent=11 // pred_check
          %p335 = pneg %p183
        $region30: #{tpu_custom_call.1} parent=11 // pred_check_branch
          %337 = sbr.rel (%p335) target = $region32
        $region31: #{tpu_custom_call.1} parent=11 // pred_region
          _
        $region32: #{tpu_custom_call.1} parent=11 // pred_fallthru
          _
        // Predicated region
        $region33: #{tpu_custom_call.1} parent=11 // pred_check
          %p338 = pneg %p204
        $region34: #{tpu_custom_call.1} parent=11 // pred_check_branch
          %340 = sbr.rel (%p338) target = $region36
        $region35: #{tpu_custom_call.1} parent=11 // pred_region
          _
        $region36: #{tpu_custom_call.1} parent=11 // pred_fallthru
          _
        // Predicated region
        $region37: #{tpu_custom_call.1} parent=11 // pred_check
          %p341 = pneg %p225
        $region38: #{tpu_custom_call.1} parent=11 // pred_check_branch
          %343 = sbr.rel (%p341) target = $region40
        $region39: #{tpu_custom_call.1} parent=11 // pred_region
          %s345 = ssub.s32 28672, 28672
          %346 = vsyncadd [#allocation6], %s345
          %s347 = sshll.u32 [#allocation5], 4
          %s348 = int_to_ptr.vmem [resolvable:$true] %s347
          %353 = dma.hbm_to_vmem [thread:$0]  %s8, 28672, %s348, [#allocation6], 448, 448, 28
        $region40: #{tpu_custom_call.1} parent=11 // pred_fallthru
          _
        // Predicated region
        $region41: #{tpu_custom_call.1} parent=11 // pred_check
          %p354 = pneg %p246
        $region42: #{tpu_custom_call.1} parent=11 // pred_check_branch
          %356 = sbr.rel (%p354) target = $region44
        $region43: #{tpu_custom_call.1} parent=11 // pred_region
          _
        $region44: #{tpu_custom_call.1} parent=11 // pred_fallthru
          _
      $region12: #{tpu_custom_call.1} parent=5 // pred_fallthru
        _
      %p357 = scmp.lt.s32.totalorder %s26, 2
      // Predicated region
      $region45: #{tpu_custom_call.1} parent=5 // pred_check
        %p358 = pneg %p357
      $region46: #{tpu_custom_call.1} parent=5 // pred_check_branch
        %360 = sbr.rel (%p358) target = $region48
      $region47: #{tpu_custom_call.1} parent=5 // pred_region
        // Predicated region
        $region49: #{tpu_custom_call.1} parent=47 // pred_check
          %p361 = pneg %p46
        $region50: #{tpu_custom_call.1} parent=47 // pred_check_branch
          %363 = sbr.rel (%p361) target = $region52
        $region51: #{tpu_custom_call.1} parent=47 // pred_region
          %p364 = scmp.lt.s32.totalorder %s26, 1
          %s365 = scalar_select %p364, %s26, 1
          %s366 = smul.addr %s365, 7
          %s367 = smul.addr %s366, 4
          %s368 = scalar_lea.vmem %s0, %s367
        $region52: #{tpu_custom_call.1} parent=47 // pred_fallthru
          _
        // Predicated region
        $region53: #{tpu_custom_call.1} parent=47 // pred_check
          %p369 = pneg %p72
        $region54: #{tpu_custom_call.1} parent=47 // pred_check_branch
          %371 = sbr.rel (%p369) target = $region56
        $region55: #{tpu_custom_call.1} parent=47 // pred_region
          %p372 = scmp.lt.s32.totalorder %s26, 1
          %s373 = scalar_select %p372, %s26, 1
          %s374 = smul.addr %s373, 8
          %s375 = scalar_lea.vmem %s1, %s374
        $region56: #{tpu_custom_call.1} parent=47 // pred_fallthru
          _
      $region48: #{tpu_custom_call.1} parent=5 // pred_fallthru
        _
      %p376 = scmp.le.s32.totalorder 1, %s26
      %p377 = scmp.lt.s32.totalorder %s26, 3
      %p378 = pnand %p376, %p377
      %p379 = pneg %p378
      // Predicated region
      $region57: #{tpu_custom_call.1} parent=5 // pred_check
        _
      $region58: #{tpu_custom_call.1} parent=5 // pred_check_branch
        %381 = sbr.rel (%p378) target = $region60
      $region59: #{tpu_custom_call.1} parent=5 // pred_region
        %s382 = ssub.s32 %s26, 1
        // Predicated region
        $region61: #{tpu_custom_call.1} parent=59 // pred_check
          %p383 = pneg %p99
        $region62: #{tpu_custom_call.1} parent=59 // pred_check_branch
          %385 = sbr.rel (%p383) target = $region64
        $region63: #{tpu_custom_call.1} parent=59 // pred_region
          %386 = dma.done [#allocation3], 25088
        $region64: #{tpu_custom_call.1} parent=59 // pred_fallthru
          _
        // Predicated region
        $region65: #{tpu_custom_call.1} parent=59 // pred_check
          %p387 = pneg %p225
        $region66: #{tpu_custom_call.1} parent=59 // pred_check_branch
          %389 = sbr.rel (%p387) target = $region68
        $region67: #{tpu_custom_call.1} parent=59 // pred_region
          %390 = dma.done [#allocation6], 28672
        $region68: #{tpu_custom_call.1} parent=59 // pred_fallthru
          _
        %p391 = scmp.lt.s32.totalorder %s31, 1
        %s392 = scalar_select %p391, %s31, 1
        %s393 = smul.addr %s392, 7
        %s394 = smul.addr %s393, 4
        %s395 = scalar_lea.vmem %s0, %s394
        %p396 = pneg %p52
        %p397 = pneg %p49
        %p398 = scmp.lt.s32.totalorder %s31, 1
        %s399 = scalar_select %p398, %s31, 1
        %s400 = smul.addr %s399, 8
        %s401 = scalar_lea.vmem %s1, %s400
        %p402 = pneg %p78
        %p403 = pneg %p75
        %p404 = pneg %p99
        %p405 = pneg %p96
        %p406 = pneg %p120
        %p407 = pneg %p117
        %p408 = pneg %p141
        %p409 = pneg %p138
        %p410 = pneg %p162
        %p411 = pneg %p159
        %p412 = pneg %p183
        %p413 = pneg %p180
        %p414 = pneg %p204
        %p415 = pneg %p201
        %p416 = pneg %p225
        %p417 = pneg %p222
        %p418 = pneg %p246
        %p419 = pneg %p243
        %p420 = pneg %p272
        %p421 = pneg %p269
        %s422 = sand.u32 %s259, 1
        %s423 = scalar_lea.sflag [#allocation4], %s422
        %s424 = sand.u32 %s259, 1
        %s425 = smul.addr %s424, 28
        %s426 = scalar_lea.vmem [#allocation7], %s425
        %p427 = pneg %p298
        %p428 = pneg %p295
        %s429 = sand.u32 %s285, 1
        %s430 = scalar_lea.sflag [#allocation9], %s429
        %s431 = sand.u32 %s285, 1
        %s432 = smul.addr %s431, 8
        %s433 = scalar_lea.vmem [#allocation8], %s432
        %p434 = scmp.lt.s32.totalorder %s31, 1
        %s435 = scalar_select %p434, %s31, 1
        %s436 = smul.addr %s435, 7
        %s437 = smul.addr %s436, 4
        %s438 = scalar_lea.vmem %s0, %s437
        %p439 = scmp.lt.s32.totalorder %s31, 1
        %s440 = scalar_select %p439, %s31, 1
        %s441 = smul.addr %s440, 8
        %s442 = scalar_lea.vmem %s1, %s441
        %v444 = vld [vmem:[%s438] sm:$0xff]
        %v445 = vld [vmem:[%s438 + $0x8] sm:$0xff]
        %v446 = vld [vmem:[%s438 + $0x10] sm:$0xff]
        %v447 = vld [vmem:[%s438 + $0x18] sm:$0xf]
        %v448 = vld [vmem:[#allocation2] sm:$0xff]
        %v449 = vld [vmem:[#allocation2 + $0x8] sm:$0xff]
        %v450 = vld [vmem:[#allocation2 + $0x10] sm:$0xff]
        %v451 = vld [vmem:[#allocation2 + $0x18] sm:$0xff]
        %v452 = vld [vmem:[#allocation2 + $0x20] sm:$0xff]
        %v453 = vld [vmem:[#allocation2 + $0x28] sm:$0xff]
        %v454 = vld [vmem:[#allocation2 + $0x30] sm:$0xff]
        %v455 = vld [vmem:[#allocation2 + $0x38] sm:$0xff]
        %v456 = vld [vmem:[#allocation2 + $0x40] sm:$0xff]
        %v457 = vld [vmem:[#allocation2 + $0x48] sm:$0xff]
        %v458 = vld [vmem:[#allocation2 + $0x50] sm:$0xff]
        %v459 = vld [vmem:[#allocation2 + $0x58] sm:$0xff]
        %v460 = vld [vmem:[#allocation2 + $0x60] sm:$0xff]
        %v461 = vld [vmem:[#allocation2 + $0x68] sm:$0xff]
        %v462 = vld [vmem:[#allocation2 + $0x70] sm:$0xff]
        %v463 = vld [vmem:[#allocation2 + $0x78] sm:$0xff]
        %v464 = vld [vmem:[#allocation2 + $0x80] sm:$0xff]
        %v465 = vld [vmem:[#allocation2 + $0x88] sm:$0xff]
        %v466 = vld [vmem:[#allocation2 + $0x90] sm:$0xff]
        %v467 = vld [vmem:[#allocation2 + $0x98] sm:$0xff]
        %v468 = vld [vmem:[#allocation2 + $0xa0] sm:$0xff]
        %v469 = vld [vmem:[#allocation2 + $0xa8] sm:$0xff]
        %v470 = vld [vmem:[#allocation2 + $0xb0] sm:$0xff]
        %v471 = vld [vmem:[#allocation2 + $0xb8] sm:$0xff]
        %v472 = vld [vmem:[#allocation2 + $0xc0] sm:$0xff]
        %v473 = vld [vmem:[#allocation2 + $0xc8] sm:$0xff]
        %v474 = vld [vmem:[#allocation2 + $0xd0] sm:$0xff]
        %v475 = vld [vmem:[#allocation2 + $0xd8] sm:$0xff]
        %v476 = vld [vmem:[#allocation2 + $0xe0] sm:$0xff]
        %v477 = vld [vmem:[#allocation2 + $0xe8] sm:$0xff]
        %v478 = vld [vmem:[#allocation2 + $0xf0] sm:$0xff]
        %v479 = vld [vmem:[#allocation2 + $0xf8] sm:$0xff]
        %v480 = vld [vmem:[#allocation2 + $0x100] sm:$0xff]
        %v481 = vld [vmem:[#allocation2 + $0x108] sm:$0xff]
        %v482 = vld [vmem:[#allocation2 + $0x110] sm:$0xff]
        %v483 = vld [vmem:[#allocation2 + $0x118] sm:$0xff]
        %v484 = vld [vmem:[#allocation2 + $0x120] sm:$0xff]
        %v485 = vld [vmem:[#allocation2 + $0x128] sm:$0xff]
        %v486 = vld [vmem:[#allocation2 + $0x130] sm:$0xff]
        %v487 = vld [vmem:[#allocation2 + $0x138] sm:$0xff]
        %v488 = vld [vmem:[#allocation2 + $0x140] sm:$0xff]
        %v489 = vld [vmem:[#allocation2 + $0x148] sm:$0xff]
        %v490 = vld [vmem:[#allocation2 + $0x150] sm:$0xff]
        %v491 = vld [vmem:[#allocation2 + $0x158] sm:$0xff]
        %v492 = vld [vmem:[#allocation2 + $0x160] sm:$0xff]
        %v493 = vld [vmem:[#allocation2 + $0x168] sm:$0xff]
        %v494 = vld [vmem:[#allocation2 + $0x170] sm:$0xff]
        %v495 = vld [vmem:[#allocation2 + $0x178] sm:$0xff]
        %v496 = vld [vmem:[#allocation2 + $0x180] sm:$0xff]
        %v497 = vld [vmem:[#allocation2 + $0x188] sm:$0xff]
        %v498 = vld [vmem:[#allocation2 + $0x190] sm:$0xff]
        %v499 = vld [vmem:[#allocation2 + $0x198] sm:$0xff]
        %v500 = vld [vmem:[#allocation2 + $0x1a0] sm:$0xff]
        %v501 = vld [vmem:[#allocation2 + $0x1a8] sm:$0xff]
        %v502 = vld [vmem:[#allocation2 + $0x1b0] sm:$0xff]
        %v503 = vld [vmem:[#allocation2 + $0x1b8] sm:$0xff]
        %v504 = vld [vmem:[#allocation2 + $0x1c0] sm:$0xff]
        %v505 = vld [vmem:[#allocation2 + $0x1c8] sm:$0xff]
        %v506 = vld [vmem:[#allocation2 + $0x1d0] sm:$0xff]
        %v507 = vld [vmem:[#allocation2 + $0x1d8] sm:$0xff]
        %v508 = vld [vmem:[#allocation2 + $0x1e0] sm:$0xff]
        %v509 = vld [vmem:[#allocation2 + $0x1e8] sm:$0xff]
        %v510 = vld [vmem:[#allocation2 + $0x1f0] sm:$0xff]
        %v511 = vld [vmem:[#allocation2 + $0x1f8] sm:$0xff]
        %v512 = vld [vmem:[#allocation2 + $0x200] sm:$0xff]
        %v513 = vld [vmem:[#allocation2 + $0x208] sm:$0xff]
        %v514 = vld [vmem:[#allocation2 + $0x210] sm:$0xff]
        %v515 = vld [vmem:[#allocation2 + $0x218] sm:$0xff]
        %v516 = vld [vmem:[#allocation2 + $0x220] sm:$0xff]
        %v517 = vld [vmem:[#allocation2 + $0x228] sm:$0xff]
        %v518 = vld [vmem:[#allocation2 + $0x230] sm:$0xff]
        %v519 = vld [vmem:[#allocation2 + $0x238] sm:$0xff]
        %v520 = vld [vmem:[#allocation2 + $0x240] sm:$0xff]
        %v521 = vld [vmem:[#allocation2 + $0x248] sm:$0xff]
        %v522 = vld [vmem:[#allocation2 + $0x250] sm:$0xff]
        %v523 = vld [vmem:[#allocation2 + $0x258] sm:$0xff]
        %v524 = vld [vmem:[#allocation2 + $0x260] sm:$0xff]
        %v525 = vld [vmem:[#allocation2 + $0x268] sm:$0xff]
        %v526 = vld [vmem:[#allocation2 + $0x270] sm:$0xff]
        %v527 = vld [vmem:[#allocation2 + $0x278] sm:$0xff]
        %v528 = vld [vmem:[#allocation2 + $0x280] sm:$0xff]
        %v529 = vld [vmem:[#allocation2 + $0x288] sm:$0xff]
        %v530 = vld [vmem:[#allocation2 + $0x290] sm:$0xff]
        %v531 = vld [vmem:[#allocation2 + $0x298] sm:$0xff]
        %v532 = vld [vmem:[#allocation2 + $0x2a0] sm:$0xff]
        %v533 = vld [vmem:[#allocation2 + $0x2a8] sm:$0xff]
        %v534 = vld [vmem:[#allocation2 + $0x2b0] sm:$0xff]
        %v535 = vld [vmem:[#allocation2 + $0x2b8] sm:$0xff]
        %v536 = vld [vmem:[#allocation2 + $0x2c0] sm:$0xff]
        %v537 = vld [vmem:[#allocation2 + $0x2c8] sm:$0xff]
        %v538 = vld [vmem:[#allocation2 + $0x2d0] sm:$0xff]
        %v539 = vld [vmem:[#allocation2 + $0x2d8] sm:$0xff]
        %v540 = vld [vmem:[#allocation2 + $0x2e0] sm:$0xff]
        %v541 = vld [vmem:[#allocation2 + $0x2e8] sm:$0xff]
        %v542 = vld [vmem:[#allocation2 + $0x2f0] sm:$0xff]
        %v543 = vld [vmem:[#allocation2 + $0x2f8] sm:$0xff]
        %v544 = vld [vmem:[#allocation2 + $0x300] sm:$0xff]
        %v545 = vld [vmem:[#allocation2 + $0x308] sm:$0xff]
        %v546 = vld [vmem:[#allocation2 + $0x310] sm:$0xff]
        %v547 = vld [vmem:[#allocation2 + $0x318] sm:$0xff]
        %v548 = vld [vmem:[#allocation2 + $0x320] sm:$0xff]
        %v549 = vld [vmem:[#allocation2 + $0x328] sm:$0xff]
        %v550 = vld [vmem:[#allocation2 + $0x330] sm:$0xff]
        %v551 = vld [vmem:[#allocation2 + $0x338] sm:$0xff]
        %v552 = vld [vmem:[#allocation2 + $0x340] sm:$0xff]
        %v553 = vld [vmem:[#allocation2 + $0x348] sm:$0xff]
        %v554 = vld [vmem:[#allocation2 + $0x350] sm:$0xff]
        %v555 = vld [vmem:[#allocation2 + $0x358] sm:$0xff]
        %v556 = vld [vmem:[#allocation2 + $0x360] sm:$0xff]
        %v557 = vld [vmem:[#allocation2 + $0x368] sm:$0xff]
        %v558 = vld [vmem:[#allocation2 + $0x370] sm:$0xff]
        %v559 = vld [vmem:[#allocation2 + $0x378] sm:$0xff]
        %v560 = vld [vmem:[#allocation2 + $0x380] sm:$0xff]
        %v561 = vld [vmem:[#allocation2 + $0x388] sm:$0xff]
        %v562 = vld [vmem:[#allocation2 + $0x390] sm:$0xff]
        %v563 = vld [vmem:[#allocation2 + $0x398] sm:$0xff]
        %v564 = vld [vmem:[#allocation2 + $0x3a0] sm:$0xff]
        %v565 = vld [vmem:[#allocation2 + $0x3a8] sm:$0xff]
        %v566 = vld [vmem:[#allocation2 + $0x3b0] sm:$0xff]
        %v567 = vld [vmem:[#allocation2 + $0x3b8] sm:$0xff]
        %v568 = vld [vmem:[#allocation2 + $0x3c0] sm:$0xff]
        %v569 = vld [vmem:[#allocation2 + $0x3c8] sm:$0xff]
        %v570 = vld [vmem:[#allocation2 + $0x3d0] sm:$0xff]
        %v571 = vld [vmem:[#allocation2 + $0x3d8] sm:$0xff]
        %v572 = vld [vmem:[#allocation2 + $0x3e0] sm:$0xff]
        %v573 = vld [vmem:[#allocation2 + $0x3e8] sm:$0xff]
        %v574 = vld [vmem:[#allocation2 + $0x3f0] sm:$0xff]
        %v575 = vld [vmem:[#allocation2 + $0x3f8] sm:$0xff]
        %v576 = vld [vmem:[#allocation2 + $0x400] sm:$0xff]
        %v577 = vld [vmem:[#allocation2 + $0x408] sm:$0xff]
        %v578 = vld [vmem:[#allocation2 + $0x410] sm:$0xff]
        %v579 = vld [vmem:[#allocation2 + $0x418] sm:$0xff]
        %v580 = vld [vmem:[#allocation2 + $0x420] sm:$0xff]
        %v581 = vld [vmem:[#allocation2 + $0x428] sm:$0xff]
        %v582 = vld [vmem:[#allocation2 + $0x430] sm:$0xff]
        %v583 = vld [vmem:[#allocation2 + $0x438] sm:$0xff]
        %v584 = vld [vmem:[#allocation2 + $0x440] sm:$0xff]
        %v585 = vld [vmem:[#allocation2 + $0x448] sm:$0xff]
        %v586 = vld [vmem:[#allocation2 + $0x450] sm:$0xff]
        %v587 = vld [vmem:[#allocation2 + $0x458] sm:$0xff]
        %v588 = vld [vmem:[#allocation2 + $0x460] sm:$0xff]
        %v589 = vld [vmem:[#allocation2 + $0x468] sm:$0xff]
        %v590 = vld [vmem:[#allocation2 + $0x470] sm:$0xff]
        %v591 = vld [vmem:[#allocation2 + $0x478] sm:$0xff]
        %v592 = vld [vmem:[#allocation2 + $0x480] sm:$0xff]
        %v593 = vld [vmem:[#allocation2 + $0x488] sm:$0xff]
        %v594 = vld [vmem:[#allocation2 + $0x490] sm:$0xff]
        %v595 = vld [vmem:[#allocation2 + $0x498] sm:$0xff]
        %v596 = vld [vmem:[#allocation2 + $0x4a0] sm:$0xff]
        %v597 = vld [vmem:[#allocation2 + $0x4a8] sm:$0xff]
        %v598 = vld [vmem:[#allocation2 + $0x4b0] sm:$0xff]
        %v599 = vld [vmem:[#allocation2 + $0x4b8] sm:$0xff]
        %v600 = vld [vmem:[#allocation2 + $0x4c0] sm:$0xff]
        %v601 = vld [vmem:[#allocation2 + $0x4c8] sm:$0xff]
        %v602 = vld [vmem:[#allocation2 + $0x4d0] sm:$0xff]
        %v603 = vld [vmem:[#allocation2 + $0x4d8] sm:$0xff]
        %v604 = vld [vmem:[#allocation2 + $0x4e0] sm:$0xff]
        %v605 = vld [vmem:[#allocation2 + $0x4e8] sm:$0xff]
        %v606 = vld [vmem:[#allocation2 + $0x4f0] sm:$0xff]
        %v607 = vld [vmem:[#allocation2 + $0x4f8] sm:$0xff]
        %v608 = vld [vmem:[#allocation2 + $0x500] sm:$0xff]
        %v609 = vld [vmem:[#allocation2 + $0x508] sm:$0xff]
        %v610 = vld [vmem:[#allocation2 + $0x510] sm:$0xff]
        %v611 = vld [vmem:[#allocation2 + $0x518] sm:$0xff]
        %v612 = vld [vmem:[#allocation2 + $0x520] sm:$0xff]
        %v613 = vld [vmem:[#allocation2 + $0x528] sm:$0xff]
        %v614 = vld [vmem:[#allocation2 + $0x530] sm:$0xff]
        %v615 = vld [vmem:[#allocation2 + $0x538] sm:$0xff]
        %v616 = vld [vmem:[#allocation2 + $0x540] sm:$0xff]
        %v617 = vld [vmem:[#allocation2 + $0x548] sm:$0xff]
        %v618 = vld [vmem:[#allocation2 + $0x550] sm:$0xff]
        %v619 = vld [vmem:[#allocation2 + $0x558] sm:$0xff]
        %v620 = vld [vmem:[#allocation2 + $0x560] sm:$0xff]
        %v621 = vld [vmem:[#allocation2 + $0x568] sm:$0xff]
        %v622 = vld [vmem:[#allocation2 + $0x570] sm:$0xff]
        %v623 = vld [vmem:[#allocation2 + $0x578] sm:$0xff]
        %v624 = vld [vmem:[#allocation2 + $0x580] sm:$0xff]
        %v625 = vld [vmem:[#allocation2 + $0x588] sm:$0xff]
        %v626 = vld [vmem:[#allocation2 + $0x590] sm:$0xff]
        %v627 = vld [vmem:[#allocation2 + $0x598] sm:$0xff]
        %v628 = vld [vmem:[#allocation2 + $0x5a0] sm:$0xff]
        %v629 = vld [vmem:[#allocation2 + $0x5a8] sm:$0xff]
        %v630 = vld [vmem:[#allocation2 + $0x5b0] sm:$0xff]
        %v631 = vld [vmem:[#allocation2 + $0x5b8] sm:$0xff]
        %v632 = vld [vmem:[#allocation2 + $0x5c0] sm:$0xff]
        %v633 = vld [vmem:[#allocation2 + $0x5c8] sm:$0xff]
        %v634 = vld [vmem:[#allocation2 + $0x5d0] sm:$0xff]
        %v635 = vld [vmem:[#allocation2 + $0x5d8] sm:$0xff]
        %v636 = vld [vmem:[#allocation2 + $0x5e0] sm:$0xff]
        %v637 = vld [vmem:[#allocation2 + $0x5e8] sm:$0xff]
        %v638 = vld [vmem:[#allocation2 + $0x5f0] sm:$0xff]
        %v639 = vld [vmem:[#allocation2 + $0x5f8] sm:$0xff]
        %v640 = vld [vmem:[#allocation2 + $0x600] sm:$0xff]
        %v641 = vld [vmem:[#allocation2 + $0x608] sm:$0xff]
        %v642 = vld [vmem:[#allocation2 + $0x610] sm:$0xff]
        %v643 = vld [vmem:[#allocation2 + $0x618] sm:$0xff]
        %v644 = vld [vmem:[%s3] sm:$0xf]
        %v646 = vlaneseq
        %v647 = vshrl.u32 %v646, 7
        %v648 = vsub.s32 0, %v647
        %v649 = vrot.slane %v644, %v648
        %v650 = vlaneseq
        %v651 = vshrl.u32 %v650, 7
        %v652 = vsub.s32 1, %v651
        %v653 = vrot.slane %v644, %v652
        %v654 = vlaneseq
        %v655 = vshrl.u32 %v654, 7
        %v656 = vsub.s32 2, %v655
        %v657 = vrot.slane %v644, %v656
        %v658 = vlaneseq
        %v659 = vshrl.u32 %v658, 7
        %v660 = vsub.s32 3, %v659
        %v661 = vrot.slane %v644, %v660
        %v670 = vunpack.c.l.b16 %v444
        %v671 = vunpack.c.h.b16 %v444
        %v672 = vunpack.c.l.b16 %v445
        %v673 = vunpack.c.h.b16 %v445
        %v674 = vunpack.c.l.b16 %v446
        %v675 = vunpack.c.h.b16 %v446
        %v676 = vunpack.c.l.b16 %v447
        %v677 = vpack.c.b16 %v670, %v670
        %v678 = vpack.c.b16 %v671, %v671
        %v679 = vpack.c.b16 %v672, %v672
        %v680 = vpack.c.b16 %v673, %v673
        %v681 = vpack.c.b16 %v674, %v674
        %v682 = vpack.c.b16 %v675, %v675
        %v683 = vpack.c.b16 %v676, %v676
        %v886 = vunpack.c.l.b16 %v448
        %v887 = vunpack.c.h.b16 %v448
        %v888 = vunpack.c.l.b16 %v449
        %v889 = vunpack.c.h.b16 %v449
        %v890 = vunpack.c.l.b16 %v450
        %v891 = vunpack.c.h.b16 %v450
        %v892 = vunpack.c.l.b16 %v451
        %v893 = vunpack.c.h.b16 %v451
        %v894 = vunpack.c.l.b16 %v452
        %v895 = vunpack.c.h.b16 %v452
        %v896 = vunpack.c.l.b16 %v453
        %v897 = vunpack.c.h.b16 %v453
        %v898 = vunpack.c.l.b16 %v454
        %v899 = vunpack.c.h.b16 %v454
        %v900 = vunpack.c.l.b16 %v455
        %v901 = vunpack.c.h.b16 %v455
        %v902 = vunpack.c.l.b16 %v456
        %v903 = vunpack.c.h.b16 %v456
        %v904 = vunpack.c.l.b16 %v457
        %v905 = vunpack.c.h.b16 %v457
        %v906 = vunpack.c.l.b16 %v458
        %v907 = vunpack.c.h.b16 %v458
        %v908 = vunpack.c.l.b16 %v459
        %v909 = vunpack.c.h.b16 %v459
        %v910 = vunpack.c.l.b16 %v460
        %v911 = vunpack.c.h.b16 %v460
        %v912 = vunpack.c.l.b16 %v461
        %v913 = vunpack.c.h.b16 %v461
        %v914 = vunpack.c.l.b16 %v462
        %v915 = vunpack.c.h.b16 %v462
        %v916 = vunpack.c.l.b16 %v463
        %v917 = vunpack.c.h.b16 %v463
        %v918 = vunpack.c.l.b16 %v464
        %v919 = vunpack.c.h.b16 %v464
        %v920 = vunpack.c.l.b16 %v465
        %v921 = vunpack.c.h.b16 %v465
        %v922 = vunpack.c.l.b16 %v466
        %v923 = vunpack.c.h.b16 %v466
        %v924 = vunpack.c.l.b16 %v467
        %v925 = vunpack.c.h.b16 %v467
        %v926 = vunpack.c.l.b16 %v468
        %v927 = vunpack.c.h.b16 %v468
        %v928 = vunpack.c.l.b16 %v469
        %v929 = vunpack.c.h.b16 %v469
        %v930 = vunpack.c.l.b16 %v470
        %v931 = vunpack.c.h.b16 %v470
        %v932 = vunpack.c.l.b16 %v471
        %v933 = vunpack.c.h.b16 %v471
        %v934 = vunpack.c.l.b16 %v472
        %v935 = vunpack.c.h.b16 %v472
        %v936 = vunpack.c.l.b16 %v473
        %v937 = vunpack.c.h.b16 %v473
        %v938 = vunpack.c.l.b16 %v474
        %v939 = vunpack.c.h.b16 %v474
        %v940 = vunpack.c.l.b16 %v475
        %v941 = vunpack.c.h.b16 %v475
        %v942 = vunpack.c.l.b16 %v476
        %v943 = vunpack.c.h.b16 %v476
        %v944 = vunpack.c.l.b16 %v477
        %v945 = vunpack.c.h.b16 %v477
        %v946 = vunpack.c.l.b16 %v478
        %v947 = vunpack.c.h.b16 %v478
        %v948 = vunpack.c.l.b16 %v479
        %v949 = vunpack.c.h.b16 %v479
        %v950 = vunpack.c.l.b16 %v480
        %v951 = vunpack.c.h.b16 %v480
        %v952 = vunpack.c.l.b16 %v481
        %v953 = vunpack.c.h.b16 %v481
        %v954 = vunpack.c.l.b16 %v482
        %v955 = vunpack.c.h.b16 %v482
        %v956 = vunpack.c.l.b16 %v483
        %v957 = vunpack.c.h.b16 %v483
        %v958 = vunpack.c.l.b16 %v484
        %v959 = vunpack.c.h.b16 %v484
        %v960 = vunpack.c.l.b16 %v485
        %v961 = vunpack.c.h.b16 %v485
        %v962 = vunpack.c.l.b16 %v486
        %v963 = vunpack.c.h.b16 %v486
        %v964 = vunpack.c.l.b16 %v487
        %v965 = vunpack.c.h.b16 %v487
        %v966 = vunpack.c.l.b16 %v488
        %v967 = vunpack.c.h.b16 %v488
        %v968 = vunpack.c.l.b16 %v489
        %v969 = vunpack.c.h.b16 %v489
        %v970 = vunpack.c.l.b16 %v490
        %v971 = vunpack.c.h.b16 %v490
        %v972 = vunpack.c.l.b16 %v491
        %v973 = vunpack.c.h.b16 %v491
        %v974 = vunpack.c.l.b16 %v492
        %v975 = vunpack.c.h.b16 %v492
        %v976 = vunpack.c.l.b16 %v493
        %v977 = vunpack.c.h.b16 %v493
        %v978 = vunpack.c.l.b16 %v494
        %v979 = vunpack.c.h.b16 %v494
        %v980 = vunpack.c.l.b16 %v495
        %v981 = vunpack.c.h.b16 %v495
        %v982 = vunpack.c.l.b16 %v496
        %v983 = vunpack.c.h.b16 %v496
        %v984 = vunpack.c.l.b16 %v497
        %v985 = vunpack.c.h.b16 %v497
        %v986 = vunpack.c.l.b16 %v498
        %v987 = vunpack.c.h.b16 %v498
        %v988 = vunpack.c.l.b16 %v499
        %v989 = vunpack.c.h.b16 %v499
        %v990 = vunpack.c.l.b16 %v500
        %v991 = vunpack.c.h.b16 %v500
        %v992 = vunpack.c.l.b16 %v501
        %v993 = vunpack.c.h.b16 %v501
        %v994 = vunpack.c.l.b16 %v502
        %v995 = vunpack.c.h.b16 %v502
        %v996 = vunpack.c.l.b16 %v503
        %v997 = vunpack.c.h.b16 %v503
        %v998 = vunpack.c.l.b16 %v504
        %v999 = vunpack.c.h.b16 %v504
        %v1000 = vunpack.c.l.b16 %v505
        %v1001 = vunpack.c.h.b16 %v505
        %v1002 = vunpack.c.l.b16 %v506
        %v1003 = vunpack.c.h.b16 %v506
        %v1004 = vunpack.c.l.b16 %v507
        %v1005 = vunpack.c.h.b16 %v507
        %v1006 = vunpack.c.l.b16 %v508
        %v1007 = vunpack.c.h.b16 %v508
        %v1008 = vunpack.c.l.b16 %v509
        %v1009 = vunpack.c.h.b16 %v509
        %v1010 = vunpack.c.l.b16 %v510
        %v1011 = vunpack.c.h.b16 %v510
        %v1012 = vunpack.c.l.b16 %v511
        %v1013 = vunpack.c.h.b16 %v511
        %v1014 = vunpack.c.l.b16 %v512
        %v1015 = vunpack.c.h.b16 %v512
        %v1016 = vunpack.c.l.b16 %v513
        %v1017 = vunpack.c.h.b16 %v513
        %v1018 = vunpack.c.l.b16 %v514
        %v1019 = vunpack.c.h.b16 %v514
        %v1020 = vunpack.c.l.b16 %v515
        %v1021 = vunpack.c.h.b16 %v515
        %v1022 = vunpack.c.l.b16 %v516
        %v1023 = vunpack.c.h.b16 %v516
        %v1024 = vunpack.c.l.b16 %v517
        %v1025 = vunpack.c.h.b16 %v517
        %v1026 = vunpack.c.l.b16 %v518
        %v1027 = vunpack.c.h.b16 %v518
        %v1028 = vunpack.c.l.b16 %v519
        %v1029 = vunpack.c.h.b16 %v519
        %v1030 = vunpack.c.l.b16 %v520
        %v1031 = vunpack.c.h.b16 %v520
        %v1032 = vunpack.c.l.b16 %v521
        %v1033 = vunpack.c.h.b16 %v521
        %v1034 = vunpack.c.l.b16 %v522
        %v1035 = vunpack.c.h.b16 %v522
        %v1036 = vunpack.c.l.b16 %v523
        %v1037 = vunpack.c.h.b16 %v523
        %v1038 = vunpack.c.l.b16 %v524
        %v1039 = vunpack.c.h.b16 %v524
        %v1040 = vunpack.c.l.b16 %v525
        %v1041 = vunpack.c.h.b16 %v525
        %v1042 = vunpack.c.l.b16 %v526
        %v1043 = vunpack.c.h.b16 %v526
        %v1044 = vunpack.c.l.b16 %v527
        %v1045 = vunpack.c.h.b16 %v527
        %v1046 = vunpack.c.l.b16 %v528
        %v1047 = vunpack.c.h.b16 %v528
        %v1048 = vunpack.c.l.b16 %v529
        %v1049 = vunpack.c.h.b16 %v529
        %v1050 = vunpack.c.l.b16 %v530
        %v1051 = vunpack.c.h.b16 %v530
        %v1052 = vunpack.c.l.b16 %v531
        %v1053 = vunpack.c.h.b16 %v531
        %v1054 = vunpack.c.l.b16 %v532
        %v1055 = vunpack.c.h.b16 %v532
        %v1056 = vunpack.c.l.b16 %v533
        %v1057 = vunpack.c.h.b16 %v533
        %v1058 = vunpack.c.l.b16 %v534
        %v1059 = vunpack.c.h.b16 %v534
        %v1060 = vunpack.c.l.b16 %v535
        %v1061 = vunpack.c.h.b16 %v535
        %v1062 = vunpack.c.l.b16 %v536
        %v1063 = vunpack.c.h.b16 %v536
        %v1064 = vunpack.c.l.b16 %v537
        %v1065 = vunpack.c.h.b16 %v537
        %v1066 = vunpack.c.l.b16 %v538
        %v1067 = vunpack.c.h.b16 %v538
        %v1068 = vunpack.c.l.b16 %v539
        %v1069 = vunpack.c.h.b16 %v539
        %v1070 = vunpack.c.l.b16 %v540
        %v1071 = vunpack.c.h.b16 %v540
        %v1072 = vunpack.c.l.b16 %v541
        %v1073 = vunpack.c.h.b16 %v541
        %v1074 = vunpack.c.l.b16 %v542
        %v1075 = vunpack.c.h.b16 %v542
        %v1076 = vunpack.c.l.b16 %v543
        %v1077 = vunpack.c.h.b16 %v543
        %v1078 = vunpack.c.l.b16 %v544
        %v1079 = vunpack.c.h.b16 %v544
        %v1080 = vunpack.c.l.b16 %v545
        %v1081 = vunpack.c.h.b16 %v545
        %v1082 = vunpack.c.l.b16 %v546
        %v1083 = vunpack.c.h.b16 %v546
        %v1084 = vunpack.c.l.b16 %v547
        %v1085 = vunpack.c.h.b16 %v547
        %v1086 = vunpack.c.l.b16 %v548
        %v1087 = vunpack.c.h.b16 %v548
        %v1088 = vunpack.c.l.b16 %v549
        %v1089 = vunpack.c.h.b16 %v549
        %v1090 = vunpack.c.l.b16 %v550
        %v1091 = vunpack.c.h.b16 %v550
        %v1092 = vunpack.c.l.b16 %v551
        %v1093 = vunpack.c.h.b16 %v551
        %v1094 = vunpack.c.l.b16 %v552
        %v1095 = vunpack.c.h.b16 %v552
        %v1096 = vunpack.c.l.b16 %v553
        %v1097 = vunpack.c.h.b16 %v553
        %v1098 = vunpack.c.l.b16 %v554
        %v1099 = vunpack.c.h.b16 %v554
        %v1100 = vunpack.c.l.b16 %v555
        %v1101 = vunpack.c.h.b16 %v555
        %v1102 = vunpack.c.l.b16 %v556
        %v1103 = vunpack.c.h.b16 %v556
        %v1104 = vunpack.c.l.b16 %v557
        %v1105 = vunpack.c.h.b16 %v557
        %v1106 = vunpack.c.l.b16 %v558
        %v1107 = vunpack.c.h.b16 %v558
        %v1108 = vunpack.c.l.b16 %v559
        %v1109 = vunpack.c.h.b16 %v559
        %v1110 = vunpack.c.l.b16 %v560
        %v1111 = vunpack.c.h.b16 %v560
        %v1112 = vunpack.c.l.b16 %v561
        %v1113 = vunpack.c.h.b16 %v561
        %v1114 = vunpack.c.l.b16 %v562
        %v1115 = vunpack.c.h.b16 %v562
        %v1116 = vunpack.c.l.b16 %v563
        %v1117 = vunpack.c.h.b16 %v563
        %v1118 = vunpack.c.l.b16 %v564
        %v1119 = vunpack.c.h.b16 %v564
        %v1120 = vunpack.c.l.b16 %v565
        %v1121 = vunpack.c.h.b16 %v565
        %v1122 = vunpack.c.l.b16 %v566
        %v1123 = vunpack.c.h.b16 %v566
        %v1124 = vunpack.c.l.b16 %v567
        %v1125 = vunpack.c.h.b16 %v567
        %v1126 = vunpack.c.l.b16 %v568
        %v1127 = vunpack.c.h.b16 %v568
        %v1128 = vunpack.c.l.b16 %v569
        %v1129 = vunpack.c.h.b16 %v569
        %v1130 = vunpack.c.l.b16 %v570
        %v1131 = vunpack.c.h.b16 %v570
        %v1132 = vunpack.c.l.b16 %v571
        %v1133 = vunpack.c.h.b16 %v571
        %v1134 = vunpack.c.l.b16 %v572
        %v1135 = vunpack.c.h.b16 %v572
        %v1136 = vunpack.c.l.b16 %v573
        %v1137 = vunpack.c.h.b16 %v573
        %v1138 = vunpack.c.l.b16 %v574
        %v1139 = vunpack.c.h.b16 %v574
        %v1140 = vunpack.c.l.b16 %v575
        %v1141 = vunpack.c.h.b16 %v575
        %v1142 = vunpack.c.l.b16 %v576
        %v1143 = vunpack.c.h.b16 %v576
        %v1144 = vunpack.c.l.b16 %v577
        %v1145 = vunpack.c.h.b16 %v577
        %v1146 = vunpack.c.l.b16 %v578
        %v1147 = vunpack.c.h.b16 %v578
        %v1148 = vunpack.c.l.b16 %v579
        %v1149 = vunpack.c.h.b16 %v579
        %v1150 = vunpack.c.l.b16 %v580
        %v1151 = vunpack.c.h.b16 %v580
        %v1152 = vunpack.c.l.b16 %v581
        %v1153 = vunpack.c.h.b16 %v581
        %v1154 = vunpack.c.l.b16 %v582
        %v1155 = vunpack.c.h.b16 %v582
        %v1156 = vunpack.c.l.b16 %v583
        %v1157 = vunpack.c.h.b16 %v583
        %v1158 = vunpack.c.l.b16 %v584
        %v1159 = vunpack.c.h.b16 %v584
        %v1160 = vunpack.c.l.b16 %v585
        %v1161 = vunpack.c.h.b16 %v585
        %v1162 = vunpack.c.l.b16 %v586
        %v1163 = vunpack.c.h.b16 %v586
        %v1164 = vunpack.c.l.b16 %v587
        %v1165 = vunpack.c.h.b16 %v587
        %v1166 = vunpack.c.l.b16 %v588
        %v1167 = vunpack.c.h.b16 %v588
        %v1168 = vunpack.c.l.b16 %v589
        %v1169 = vunpack.c.h.b16 %v589
        %v1170 = vunpack.c.l.b16 %v590
        %v1171 = vunpack.c.h.b16 %v590
        %v1172 = vunpack.c.l.b16 %v591
        %v1173 = vunpack.c.h.b16 %v591
        %v1174 = vunpack.c.l.b16 %v592
        %v1175 = vunpack.c.h.b16 %v592
        %v1176 = vunpack.c.l.b16 %v593
        %v1177 = vunpack.c.h.b16 %v593
        %v1178 = vunpack.c.l.b16 %v594
        %v1179 = vunpack.c.h.b16 %v594
        %v1180 = vunpack.c.l.b16 %v595
        %v1181 = vunpack.c.h.b16 %v595
        %v1182 = vunpack.c.l.b16 %v596
        %v1183 = vunpack.c.h.b16 %v596
        %v1184 = vunpack.c.l.b16 %v597
        %v1185 = vunpack.c.h.b16 %v597
        %v1186 = vunpack.c.l.b16 %v598
        %v1187 = vunpack.c.h.b16 %v598
        %v1188 = vunpack.c.l.b16 %v599
        %v1189 = vunpack.c.h.b16 %v599
        %v1190 = vunpack.c.l.b16 %v600
        %v1191 = vunpack.c.h.b16 %v600
        %v1192 = vunpack.c.l.b16 %v601
        %v1193 = vunpack.c.h.b16 %v601
        %v1194 = vunpack.c.l.b16 %v602
        %v1195 = vunpack.c.h.b16 %v602
        %v1196 = vunpack.c.l.b16 %v603
        %v1197 = vunpack.c.h.b16 %v603
        %v1198 = vunpack.c.l.b16 %v604
        %v1199 = vunpack.c.h.b16 %v604
        %v1200 = vunpack.c.l.b16 %v605
        %v1201 = vunpack.c.h.b16 %v605
        %v1202 = vunpack.c.l.b16 %v606
        %v1203 = vunpack.c.h.b16 %v606
        %v1204 = vunpack.c.l.b16 %v607
        %v1205 = vunpack.c.h.b16 %v607
        %v1206 = vunpack.c.l.b16 %v608
        %v1207 = vunpack.c.h.b16 %v608
        %v1208 = vunpack.c.l.b16 %v609
        %v1209 = vunpack.c.h.b16 %v609
        %v1210 = vunpack.c.l.b16 %v610
        %v1211 = vunpack.c.h.b16 %v610
        %v1212 = vunpack.c.l.b16 %v611
        %v1213 = vunpack.c.h.b16 %v611
        %v1214 = vunpack.c.l.b16 %v612
        %v1215 = vunpack.c.h.b16 %v612
        %v1216 = vunpack.c.l.b16 %v613
        %v1217 = vunpack.c.h.b16 %v613
        %v1218 = vunpack.c.l.b16 %v614
        %v1219 = vunpack.c.h.b16 %v614
        %v1220 = vunpack.c.l.b16 %v615
        %v1221 = vunpack.c.h.b16 %v615
        %v1222 = vunpack.c.l.b16 %v616
        %v1223 = vunpack.c.h.b16 %v616
        %v1224 = vunpack.c.l.b16 %v617
        %v1225 = vunpack.c.h.b16 %v617
        %v1226 = vunpack.c.l.b16 %v618
        %v1227 = vunpack.c.h.b16 %v618
        %v1228 = vunpack.c.l.b16 %v619
        %v1229 = vunpack.c.h.b16 %v619
        %v1230 = vunpack.c.l.b16 %v620
        %v1231 = vunpack.c.h.b16 %v620
        %v1232 = vunpack.c.l.b16 %v621
        %v1233 = vunpack.c.h.b16 %v621
        %v1234 = vunpack.c.l.b16 %v622
        %v1235 = vunpack.c.h.b16 %v622
        %v1236 = vunpack.c.l.b16 %v623
        %v1237 = vunpack.c.h.b16 %v623
        %v1238 = vunpack.c.l.b16 %v624
        %v1239 = vunpack.c.h.b16 %v624
        %v1240 = vunpack.c.l.b16 %v625
        %v1241 = vunpack.c.h.b16 %v625
        %v1242 = vunpack.c.l.b16 %v626
        %v1243 = vunpack.c.h.b16 %v626
        %v1244 = vunpack.c.l.b16 %v627
        %v1245 = vunpack.c.h.b16 %v627
        %v1246 = vunpack.c.l.b16 %v628
        %v1247 = vunpack.c.h.b16 %v628
        %v1248 = vunpack.c.l.b16 %v629
        %v1249 = vunpack.c.h.b16 %v629
        %v1250 = vunpack.c.l.b16 %v630
        %v1251 = vunpack.c.h.b16 %v630
        %v1252 = vunpack.c.l.b16 %v631
        %v1253 = vunpack.c.h.b16 %v631
        %v1254 = vunpack.c.l.b16 %v632
        %v1255 = vunpack.c.h.b16 %v632
        %v1256 = vunpack.c.l.b16 %v633
        %v1257 = vunpack.c.h.b16 %v633
        %v1258 = vunpack.c.l.b16 %v634
        %v1259 = vunpack.c.h.b16 %v634
        %v1260 = vunpack.c.l.b16 %v635
        %v1261 = vunpack.c.h.b16 %v635
        %v1262 = vunpack.c.l.b16 %v636
        %v1263 = vunpack.c.h.b16 %v636
        %v1264 = vunpack.c.l.b16 %v637
        %v1265 = vunpack.c.h.b16 %v637
        %v1266 = vunpack.c.l.b16 %v638
        %v1267 = vunpack.c.h.b16 %v638
        %v1268 = vunpack.c.l.b16 %v639
        %v1269 = vunpack.c.h.b16 %v639
        %v1270 = vunpack.c.l.b16 %v640
        %v1271 = vunpack.c.h.b16 %v640
        %v1272 = vunpack.c.l.b16 %v641
        %v1273 = vunpack.c.h.b16 %v641
        %v1274 = vunpack.c.l.b16 %v642
        %v1275 = vunpack.c.h.b16 %v642
        %v1276 = vunpack.c.l.b16 %v643
        %v1277 = vunpack.c.h.b16 %v643
        %v1278 = vpack.c.b16 %v890, %v886
        %v1279 = vpack.c.b16 %v891, %v887
        %v1280 = vpack.c.b16 %v892, %v888
        %v1281 = vpack.c.b16 %v893, %v889
        %v1282 = vpack.c.b16 %v898, %v894
        %v1283 = vpack.c.b16 %v899, %v895
        %v1284 = vpack.c.b16 %v900, %v896
        %v1285 = vpack.c.b16 %v901, %v897
        %v1286 = vpack.c.b16 %v906, %v902
        %v1287 = vpack.c.b16 %v907, %v903
        %v1288 = vpack.c.b16 %v908, %v904
        %v1289 = vpack.c.b16 %v909, %v905
        %v1290 = vpack.c.b16 %v914, %v910
        %v1291 = vpack.c.b16 %v915, %v911
        %v1292 = vpack.c.b16 %v916, %v912
        %v1293 = vpack.c.b16 %v917, %v913
        %v1294 = vpack.c.b16 %v922, %v918
        %v1295 = vpack.c.b16 %v923, %v919
        %v1296 = vpack.c.b16 %v924, %v920
        %v1297 = vpack.c.b16 %v925, %v921
        %v1298 = vpack.c.b16 %v930, %v926
        %v1299 = vpack.c.b16 %v931, %v927
        %v1300 = vpack.c.b16 %v932, %v928
        %v1301 = vpack.c.b16 %v933, %v929
        %v1302 = vpack.c.b16 %v938, %v934
        %v1303 = vpack.c.b16 %v939, %v935
        %v1304 = vpack.c.b16 %v940, %v936
        %v1305 = vpack.c.b16 %v941, %v937
        %v1306 = vpack.c.b16 %v946, %v942
        %v1307 = vpack.c.b16 %v947, %v943
        %v1308 = vpack.c.b16 %v948, %v944
        %v1309 = vpack.c.b16 %v949, %v945
        %v1310 = vpack.c.b16 %v954, %v950
        %v1311 = vpack.c.b16 %v955, %v951
        %v1312 = vpack.c.b16 %v956, %v952
        %v1313 = vpack.c.b16 %v957, %v953
        %v1314 = vpack.c.b16 %v962, %v958
        %v1315 = vpack.c.b16 %v963, %v959
        %v1316 = vpack.c.b16 %v964, %v960
        %v1317 = vpack.c.b16 %v965, %v961
        %v1318 = vpack.c.b16 %v970, %v966
        %v1319 = vpack.c.b16 %v971, %v967
        %v1320 = vpack.c.b16 %v972, %v968
        %v1321 = vpack.c.b16 %v973, %v969
        %v1322 = vpack.c.b16 %v978, %v974
        %v1323 = vpack.c.b16 %v979, %v975
        %v1324 = vpack.c.b16 %v980, %v976
        %v1325 = vpack.c.b16 %v981, %v977
        %v1326 = vpack.c.b16 %v986, %v982
        %v1327 = vpack.c.b16 %v987, %v983
        %v1328 = vpack.c.b16 %v988, %v984
        %v1329 = vpack.c.b16 %v989, %v985
        %v1330 = vpack.c.b16 %v994, %v990
        %v1331 = vpack.c.b16 %v995, %v991
        %v1332 = vpack.c.b16 %v996, %v992
        %v1333 = vpack.c.b16 %v997, %v993
        %v1334 = vpack.c.b16 %v1002, %v998
        %v1335 = vpack.c.b16 %v1003, %v999
        %v1336 = vpack.c.b16 %v1004, %v1000
        %v1337 = vpack.c.b16 %v1005, %v1001
        %v1338 = vpack.c.b16 %v1010, %v1006
        %v1339 = vpack.c.b16 %v1011, %v1007
        %v1340 = vpack.c.b16 %v1012, %v1008
        %v1341 = vpack.c.b16 %v1013, %v1009
        %v1342 = vpack.c.b16 %v1018, %v1014
        %v1343 = vpack.c.b16 %v1019, %v1015
        %v1344 = vpack.c.b16 %v1020, %v1016
        %v1345 = vpack.c.b16 %v1021, %v1017
        %v1346 = vpack.c.b16 %v1026, %v1022
        %v1347 = vpack.c.b16 %v1027, %v1023
        %v1348 = vpack.c.b16 %v1028, %v1024
        %v1349 = vpack.c.b16 %v1029, %v1025
        %v1350 = vpack.c.b16 %v1034, %v1030
        %v1351 = vpack.c.b16 %v1035, %v1031
        %v1352 = vpack.c.b16 %v1036, %v1032
        %v1353 = vpack.c.b16 %v1037, %v1033
        %v1354 = vpack.c.b16 %v1042, %v1038
        %v1355 = vpack.c.b16 %v1043, %v1039
        %v1356 = vpack.c.b16 %v1044, %v1040
        %v1357 = vpack.c.b16 %v1045, %v1041
        %v1358 = vpack.c.b16 %v1050, %v1046
        %v1359 = vpack.c.b16 %v1051, %v1047
        %v1360 = vpack.c.b16 %v1052, %v1048
        %v1361 = vpack.c.b16 %v1053, %v1049
        %v1362 = vpack.c.b16 %v1058, %v1054
        %v1363 = vpack.c.b16 %v1059, %v1055
        %v1364 = vpack.c.b16 %v1060, %v1056
        %v1365 = vpack.c.b16 %v1061, %v1057
        %v1366 = vpack.c.b16 %v1066, %v1062
        %v1367 = vpack.c.b16 %v1067, %v1063
        %v1368 = vpack.c.b16 %v1068, %v1064
        %v1369 = vpack.c.b16 %v1069, %v1065
        %v1370 = vpack.c.b16 %v1074, %v1070
        %v1371 = vpack.c.b16 %v1075, %v1071
        %v1372 = vpack.c.b16 %v1076, %v1072
        %v1373 = vpack.c.b16 %v1077, %v1073
        %v1374 = vpack.c.b16 %v1082, %v1078
        %v1375 = vpack.c.b16 %v1083, %v1079
        %v1376 = vpack.c.b16 %v1084, %v1080
        %v1377 = vpack.c.b16 %v1085, %v1081
        %v1378 = vpack.c.b16 %v1090, %v1086
        %v1379 = vpack.c.b16 %v1091, %v1087
        %v1380 = vpack.c.b16 %v1092, %v1088
        %v1381 = vpack.c.b16 %v1093, %v1089
        %v1382 = vpack.c.b16 %v1098, %v1094
        %v1383 = vpack.c.b16 %v1099, %v1095
        %v1384 = vpack.c.b16 %v1100, %v1096
        %v1385 = vpack.c.b16 %v1101, %v1097
        %v1386 = vpack.c.b16 %v1106, %v1102
        %v1387 = vpack.c.b16 %v1107, %v1103
        %v1388 = vpack.c.b16 %v1108, %v1104
        %v1389 = vpack.c.b16 %v1109, %v1105
        %v1390 = vpack.c.b16 %v1114, %v1110
        %v1391 = vpack.c.b16 %v1115, %v1111
        %v1392 = vpack.c.b16 %v1116, %v1112
        %v1393 = vpack.c.b16 %v1117, %v1113
        %v1394 = vpack.c.b16 %v1122, %v1118
        %v1395 = vpack.c.b16 %v1123, %v1119
        %v1396 = vpack.c.b16 %v1124, %v1120
        %v1397 = vpack.c.b16 %v1125, %v1121
        %v1398 = vpack.c.b16 %v1130, %v1126
        %v1399 = vpack.c.b16 %v1131, %v1127
        %v1400 = vpack.c.b16 %v1132, %v1128
        %v1401 = vpack.c.b16 %v1133, %v1129
        %v1402 = vpack.c.b16 %v1138, %v1134
        %v1403 = vpack.c.b16 %v1139, %v1135
        %v1404 = vpack.c.b16 %v1140, %v1136
        %v1405 = vpack.c.b16 %v1141, %v1137
        %v1406 = vpack.c.b16 %v1146, %v1142
        %v1407 = vpack.c.b16 %v1147, %v1143
        %v1408 = vpack.c.b16 %v1148, %v1144
        %v1409 = vpack.c.b16 %v1149, %v1145
        %v1410 = vpack.c.b16 %v1154, %v1150
        %v1411 = vpack.c.b16 %v1155, %v1151
        %v1412 = vpack.c.b16 %v1156, %v1152
        %v1413 = vpack.c.b16 %v1157, %v1153
        %v1414 = vpack.c.b16 %v1162, %v1158
        %v1415 = vpack.c.b16 %v1163, %v1159
        %v1416 = vpack.c.b16 %v1164, %v1160
        %v1417 = vpack.c.b16 %v1165, %v1161
        %v1418 = vpack.c.b16 %v1170, %v1166
        %v1419 = vpack.c.b16 %v1171, %v1167
        %v1420 = vpack.c.b16 %v1172, %v1168
        %v1421 = vpack.c.b16 %v1173, %v1169
        %v1422 = vpack.c.b16 %v1178, %v1174
        %v1423 = vpack.c.b16 %v1179, %v1175
        %v1424 = vpack.c.b16 %v1180, %v1176
        %v1425 = vpack.c.b16 %v1181, %v1177
        %v1426 = vpack.c.b16 %v1186, %v1182
        %v1427 = vpack.c.b16 %v1187, %v1183
        %v1428 = vpack.c.b16 %v1188, %v1184
        %v1429 = vpack.c.b16 %v1189, %v1185
        %v1430 = vpack.c.b16 %v1194, %v1190
        %v1431 = vpack.c.b16 %v1195, %v1191
        %v1432 = vpack.c.b16 %v1196, %v1192
        %v1433 = vpack.c.b16 %v1197, %v1193
        %v1434 = vpack.c.b16 %v1202, %v1198
        %v1435 = vpack.c.b16 %v1203, %v1199
        %v1436 = vpack.c.b16 %v1204, %v1200
        %v1437 = vpack.c.b16 %v1205, %v1201
        %v1438 = vpack.c.b16 %v1210, %v1206
        %v1439 = vpack.c.b16 %v1211, %v1207
        %v1440 = vpack.c.b16 %v1212, %v1208
        %v1441 = vpack.c.b16 %v1213, %v1209
        %v1442 = vpack.c.b16 %v1218, %v1214
        %v1443 = vpack.c.b16 %v1219, %v1215
        %v1444 = vpack.c.b16 %v1220, %v1216
        %v1445 = vpack.c.b16 %v1221, %v1217
        %v1446 = vpack.c.b16 %v1226, %v1222
        %v1447 = vpack.c.b16 %v1227, %v1223
        %v1448 = vpack.c.b16 %v1228, %v1224
        %v1449 = vpack.c.b16 %v1229, %v1225
        %v1450 = vpack.c.b16 %v1234, %v1230
        %v1451 = vpack.c.b16 %v1235, %v1231
        %v1452 = vpack.c.b16 %v1236, %v1232
        %v1453 = vpack.c.b16 %v1237, %v1233
        %v1454 = vpack.c.b16 %v1242, %v1238
        %v1455 = vpack.c.b16 %v1243, %v1239
        %v1456 = vpack.c.b16 %v1244, %v1240
        %v1457 = vpack.c.b16 %v1245, %v1241
        %v1458 = vpack.c.b16 %v1250, %v1246
        %v1459 = vpack.c.b16 %v1251, %v1247
        %v1460 = vpack.c.b16 %v1252, %v1248
        %v1461 = vpack.c.b16 %v1253, %v1249
        %v1462 = vpack.c.b16 %v1258, %v1254
        %v1463 = vpack.c.b16 %v1259, %v1255
        %v1464 = vpack.c.b16 %v1260, %v1256
        %v1465 = vpack.c.b16 %v1261, %v1257
        %v1466 = vpack.c.b16 %v1266, %v1262
        %v1467 = vpack.c.b16 %v1267, %v1263
        %v1468 = vpack.c.b16 %v1268, %v1264
        %v1469 = vpack.c.b16 %v1269, %v1265
        %v1470 = vpack.c.b16 %v1274, %v1270
        %v1471 = vpack.c.b16 %v1275, %v1271
        %v1472 = vpack.c.b16 %v1276, %v1272
        %v1473 = vpack.c.b16 %v1277, %v1273
        %vm1670 = vcmask 130048
        %v1672 = vsel %vm1670, %v683, 0
        %1674 = vmatprep.subr.bf16.mxu0 %v1279
        %1675 = vmatpush1.bf16.msra.mxu0 %v1278
        %1676 = vmatprep.subr.bf16.mxu0 %v1283
        %1677 = vmatpush1.bf16.msra.mxu0 %v1282
        %1678 = vmatprep.subr.bf16.mxu0 %v1287
        %1679 = vmatpush1.bf16.msra.mxu0 %v1286
        %1680 = vmatprep.subr.bf16.mxu0 %v1291
        %1681 = vmatpush1.bf16.msra.mxu0 %v1290
        %1682 = vmatprep.subr.bf16.mxu0 %v1295
        %1683 = vmatpush1.bf16.msra.mxu0 %v1294
        %1684 = vmatprep.subr.bf16.mxu0 %v1299
        %1685 = vmatpush1.bf16.msra.mxu0 %v1298
        %1686 = vmatprep.subr.bf16.mxu0 %v1303
        %1687 = vmatpush1.bf16.msra.mxu0 %v1302
        %1688 = vmatprep.subr.bf16.mxu0 %v1307
        %1689 = vmatpush1.bf16.msra.mxu0 %v1306
        %1690 = vmatprep.subr.bf16.mxu0 %v1311
        %1691 = vmatpush1.bf16.msra.mxu0 %v1310
        %1692 = vmatprep.subr.bf16.mxu0 %v1315
        %1693 = vmatpush1.bf16.msra.mxu0 %v1314
        %1694 = vmatprep.subr.bf16.mxu0 %v1319
        %1695 = vmatpush1.bf16.msra.mxu0 %v1318
        %1696 = vmatprep.subr.bf16.mxu0 %v1323
        %1697 = vmatpush1.bf16.msra.mxu0 %v1322
        %1698 = vmatprep.subr.bf16.mxu0 %v1327
        %1699 = vmatpush1.bf16.msra.mxu0 %v1326
        %1700 = vmatprep.subr.bf16.mxu0 %v1331
        %1701 = vmatpush1.bf16.msra.mxu0 %v1330
        %1702 = vmatprep.subr.bf16.mxu0 %v1335
        %1703 = vmatpush1.bf16.msra.mxu0 %v1334
        %1704 = vmatprep.subr.bf16.mxu0 %v1339
        %1705 = vmatpush1.bf16.msra.mxu0 %v1338
        %1706 = vmatprep.mubr.bf16.mxu0 %v678
        %1707 = vmatmul.mubr.bf16.gmra.mrb[0].mxu0 %v677
        %v1708 = vpop.f32.mrb[0].mxu0
        %v1709 = vadd.f32 %v649, %v1708
        %v1710 = vpop.f32.mrb[0].mxu0
        %v1711 = vadd.f32 %v653, %v1710
        %v1712 = vpop.f32.mrb[0].mxu0
        %v1713 = vpop.f32.mrb[0].mxu0
        %1714 = vdwg.mxu0
        %1715 = vmatprep.subr.bf16.mxu0 %v1343
        %1716 = vmatpush1.bf16.msra.mxu0 %v1342
        %1717 = vmatprep.subr.bf16.mxu0 %v1347
        %1718 = vmatpush1.bf16.msra.mxu0 %v1346
        %1719 = vmatprep.subr.bf16.mxu0 %v1351
        %1720 = vmatpush1.bf16.msra.mxu0 %v1350
        %1721 = vmatprep.subr.bf16.mxu0 %v1355
        %1722 = vmatpush1.bf16.msra.mxu0 %v1354
        %1723 = vmatprep.subr.bf16.mxu0 %v1359
        %1724 = vmatpush1.bf16.msra.mxu0 %v1358
        %1725 = vmatprep.subr.bf16.mxu0 %v1363
        %1726 = vmatpush1.bf16.msra.mxu0 %v1362
        %1727 = vmatprep.subr.bf16.mxu0 %v1367
        %1728 = vmatpush1.bf16.msra.mxu0 %v1366
        %1729 = vmatprep.subr.bf16.mxu0 %v1371
        %1730 = vmatpush1.bf16.msra.mxu0 %v1370
        %1731 = vmatprep.subr.bf16.mxu0 %v1375
        %1732 = vmatpush1.bf16.msra.mxu0 %v1374
        %1733 = vmatprep.subr.bf16.mxu0 %v1379
        %1734 = vmatpush1.bf16.msra.mxu0 %v1378
        %1735 = vmatprep.subr.bf16.mxu0 %v1383
        %1736 = vmatpush1.bf16.msra.mxu0 %v1382
        %1737 = vmatprep.subr.bf16.mxu0 %v1387
        %1738 = vmatpush1.bf16.msra.mxu0 %v1386
        %1739 = vmatprep.subr.bf16.mxu0 %v1391
        %1740 = vmatpush1.bf16.msra.mxu0 %v1390
        %1741 = vmatprep.subr.bf16.mxu0 %v1395
        %1742 = vmatpush1.bf16.msra.mxu0 %v1394
        %1743 = vmatprep.subr.bf16.mxu0 %v1399
        %1744 = vmatpush1.bf16.msra.mxu0 %v1398
        %1745 = vmatprep.subr.bf16.mxu0 %v1403
        %1746 = vmatpush1.bf16.msra.mxu0 %v1402
        %1747 = vmatprep.mubr.bf16.mxu0 %v680
        %1748 = vmatmul.mubr.bf16.gmra.mrb[0].mxu0 %v679
        %v1749 = vpop.f32.mrb[0].mxu0
        %v1750 = vadd.f32 %v1709, %v1749
        %v1751 = vpop.f32.mrb[0].mxu0
        %v1752 = vadd.f32 %v1711, %v1751
        %v1753 = vpop.f32.mrb[0].mxu0
        %v1754 = vpop.f32.mrb[0].mxu0
        %1755 = vdwg.mxu0
        %1756 = vmatprep.subr.bf16.mxu0 %v1407
        %1757 = vmatpush1.bf16.msra.mxu0 %v1406
        %1758 = vmatprep.subr.bf16.mxu0 %v1411
        %1759 = vmatpush1.bf16.msra.mxu0 %v1410
        %1760 = vmatprep.subr.bf16.mxu0 %v1415
        %1761 = vmatpush1.bf16.msra.mxu0 %v1414
        %1762 = vmatprep.subr.bf16.mxu0 %v1419
        %1763 = vmatpush1.bf16.msra.mxu0 %v1418
        %1764 = vmatprep.subr.bf16.mxu0 %v1423
        %1765 = vmatpush1.bf16.msra.mxu0 %v1422
        %1766 = vmatprep.subr.bf16.mxu0 %v1427
        %1767 = vmatpush1.bf16.msra.mxu0 %v1426
        %1768 = vmatprep.subr.bf16.mxu0 %v1431
        %1769 = vmatpush1.bf16.msra.mxu0 %v1430
        %1770 = vmatprep.subr.bf16.mxu0 %v1435
        %1771 = vmatpush1.bf16.msra.mxu0 %v1434
        %1772 = vmatprep.subr.bf16.mxu0 %v1439
        %1773 = vmatpush1.bf16.msra.mxu0 %v1438
        %1774 = vmatprep.subr.bf16.mxu0 %v1443
        %1775 = vmatpush1.bf16.msra.mxu0 %v1442
        %1776 = vmatprep.subr.bf16.mxu0 %v1447
        %1777 = vmatpush1.bf16.msra.mxu0 %v1446
        %1778 = vmatprep.subr.bf16.mxu0 %v1451
        %1779 = vmatpush1.bf16.msra.mxu0 %v1450
        %1780 = vmatprep.subr.bf16.mxu0 %v1455
        %1781 = vmatpush1.bf16.msra.mxu0 %v1454
        %1782 = vmatprep.subr.bf16.mxu0 %v1459
        %1783 = vmatpush1.bf16.msra.mxu0 %v1458
        %1784 = vmatprep.subr.bf16.mxu0 %v1463
        %1785 = vmatpush1.bf16.msra.mxu0 %v1462
        %1786 = vmatprep.subr.bf16.mxu0 %v1467
        %1787 = vmatpush1.bf16.msra.mxu0 %v1466
        %1788 = vmatprep.mubr.bf16.mxu0 %v682
        %1789 = vmatmul.mubr.bf16.gmra.mrb[0].mxu0 %v681
        %v1790 = vpop.f32.mrb[0].mxu0
        %v1791 = vadd.f32 %v1750, %v1790
        %v1792 = vpop.f32.mrb[0].mxu0
        %v1793 = vadd.f32 %v1752, %v1792
        %v1794 = vpop.f32.mrb[0].mxu0
        %v1795 = vpop.f32.mrb[0].mxu0
        %1796 = vdwg.mxu0
        %1797 = vmatprep.subr.bf16.mxu0 %v1471
        %1798 = vmatpush1.bf16.msra.mxu0 %v1470
        %1799 = vmatprep.subr.bf16.mxu0 0
        %1800 = vmatpush1.bf16.msra.mxu0 0
        %1801 = vmatprep.subr.bf16.mxu0 0
        %1802 = vmatpush1.bf16.msra.mxu0 0
        %1803 = vmatprep.subr.bf16.mxu0 0
        %1804 = vmatpush1.bf16.msra.mxu0 0
        %1805 = vmatprep.subr.bf16.mxu0 0
        %1806 = vmatpush1.bf16.msra.mxu0 0
        %1807 = vmatprep.subr.bf16.mxu0 0
        %1808 = vmatpush1.bf16.msra.mxu0 0
        %1809 = vmatprep.subr.bf16.mxu0 0
        %1810 = vmatpush1.bf16.msra.mxu0 0
        %1811 = vmatprep.subr.bf16.mxu0 0
        %1812 = vmatpush1.bf16.msra.mxu0 0
        %1813 = vmatprep.subr.bf16.mxu0 0
        %1814 = vmatpush1.bf16.msra.mxu0 0
        %1815 = vmatprep.subr.bf16.mxu0 0
        %1816 = vmatpush1.bf16.msra.mxu0 0
        %1817 = vmatprep.subr.bf16.mxu0 0
        %1818 = vmatpush1.bf16.msra.mxu0 0
        %1819 = vmatprep.subr.bf16.mxu0 0
        %1820 = vmatpush1.bf16.msra.mxu0 0
        %1821 = vmatprep.subr.bf16.mxu0 0
        %1822 = vmatpush1.bf16.msra.mxu0 0
        %1823 = vmatprep.subr.bf16.mxu0 0
        %1824 = vmatpush1.bf16.msra.mxu0 0
        %1825 = vmatprep.subr.bf16.mxu0 0
        %1826 = vmatpush1.bf16.msra.mxu0 0
        %1827 = vmatprep.subr.bf16.mxu0 0
        %1828 = vmatpush1.bf16.msra.mxu0 0
        %1829 = vmatprep.mubr.bf16.mxu0 0
        %1830 = vmatmul.mubr.bf16.gmra.mrb[0].mxu0 %v1672
        %v1831 = vpop.f32.mrb[0].mxu0
        %v1832 = vadd.f32 %v1791, %v1831
        %v1833 = vpop.f32.mrb[0].mxu0
        %v1834 = vadd.f32 %v1793, %v1833
        %v1835 = vpop.f32.mrb[0].mxu0
        %v1836 = vpop.f32.mrb[0].mxu0
        %1837 = vdwg.mxu0
        %1838 = vmatprep.subr.bf16.mxu0 %v1281
        %1839 = vmatpush1.bf16.msra.mxu0 %v1280
        %1840 = vmatprep.subr.bf16.mxu0 %v1285
        %1841 = vmatpush1.bf16.msra.mxu0 %v1284
        %1842 = vmatprep.subr.bf16.mxu0 %v1289
        %1843 = vmatpush1.bf16.msra.mxu0 %v1288
        %1844 = vmatprep.subr.bf16.mxu0 %v1293
        %1845 = vmatpush1.bf16.msra.mxu0 %v1292
        %1846 = vmatprep.subr.bf16.mxu0 %v1297
        %1847 = vmatpush1.bf16.msra.mxu0 %v1296
        %1848 = vmatprep.subr.bf16.mxu0 %v1301
        %1849 = vmatpush1.bf16.msra.mxu0 %v1300
        %1850 = vmatprep.subr.bf16.mxu0 %v1305
        %1851 = vmatpush1.bf16.msra.mxu0 %v1304
        %1852 = vmatprep.subr.bf16.mxu0 %v1309
        %1853 = vmatpush1.bf16.msra.mxu0 %v1308
        %1854 = vmatprep.subr.bf16.mxu0 %v1313
        %1855 = vmatpush1.bf16.msra.mxu0 %v1312
        %1856 = vmatprep.subr.bf16.mxu0 %v1317
        %1857 = vmatpush1.bf16.msra.mxu0 %v1316
        %1858 = vmatprep.subr.bf16.mxu0 %v1321
        %1859 = vmatpush1.bf16.msra.mxu0 %v1320
        %1860 = vmatprep.subr.bf16.mxu0 %v1325
        %1861 = vmatpush1.bf16.msra.mxu0 %v1324
        %1862 = vmatprep.subr.bf16.mxu0 %v1329
        %1863 = vmatpush1.bf16.msra.mxu0 %v1328
        %1864 = vmatprep.subr.bf16.mxu0 %v1333
        %1865 = vmatpush1.bf16.msra.mxu0 %v1332
        %1866 = vmatprep.subr.bf16.mxu0 %v1337
        %1867 = vmatpush1.bf16.msra.mxu0 %v1336
        %1868 = vmatprep.subr.bf16.mxu0 %v1341
        %1869 = vmatpush1.bf16.msra.mxu0 %v1340
        %1870 = vmatprep.mubr.bf16.mxu0 %v678
        %1871 = vmatmul.mubr.bf16.gmra.mrb[0].mxu0 %v677
        %v1872 = vpop.f32.mrb[0].mxu0
        %v1873 = vadd.f32 %v657, %v1872
        %v1874 = vpop.f32.mrb[0].mxu0
        %v1875 = vadd.f32 %v661, %v1874
        %v1876 = vpop.f32.mrb[0].mxu0
        %v1877 = vpop.f32.mrb[0].mxu0
        %1878 = vdwg.mxu0
        %1879 = vmatprep.subr.bf16.mxu0 %v1345
        %1880 = vmatpush1.bf16.msra.mxu0 %v1344
        %1881 = vmatprep.subr.bf16.mxu0 %v1349
        %1882 = vmatpush1.bf16.msra.mxu0 %v1348
        %1883 = vmatprep.subr.bf16.mxu0 %v1353
        %1884 = vmatpush1.bf16.msra.mxu0 %v1352
        %1885 = vmatprep.subr.bf16.mxu0 %v1357
        %1886 = vmatpush1.bf16.msra.mxu0 %v1356
        %1887 = vmatprep.subr.bf16.mxu0 %v1361
        %1888 = vmatpush1.bf16.msra.mxu0 %v1360
        %1889 = vmatprep.subr.bf16.mxu0 %v1365
        %1890 = vmatpush1.bf16.msra.mxu0 %v1364
        %1891 = vmatprep.subr.bf16.mxu0 %v1369
        %1892 = vmatpush1.bf16.msra.mxu0 %v1368
        %1893 = vmatprep.subr.bf16.mxu0 %v1373
        %1894 = vmatpush1.bf16.msra.mxu0 %v1372
        %1895 = vmatprep.subr.bf16.mxu0 %v1377
        %1896 = vmatpush1.bf16.msra.mxu0 %v1376
        %1897 = vmatprep.subr.bf16.mxu0 %v1381
        %1898 = vmatpush1.bf16.msra.mxu0 %v1380
        %1899 = vmatprep.subr.bf16.mxu0 %v1385
        %1900 = vmatpush1.bf16.msra.mxu0 %v1384
        %1901 = vmatprep.subr.bf16.mxu0 %v1389
        %1902 = vmatpush1.bf16.msra.mxu0 %v1388
        %1903 = vmatprep.subr.bf16.mxu0 %v1393
        %1904 = vmatpush1.bf16.msra.mxu0 %v1392
        %1905 = vmatprep.subr.bf16.mxu0 %v1397
        %1906 = vmatpush1.bf16.msra.mxu0 %v1396
        %1907 = vmatprep.subr.bf16.mxu0 %v1401
        %1908 = vmatpush1.bf16.msra.mxu0 %v1400
        %1909 = vmatprep.subr.bf16.mxu0 %v1405
        %1910 = vmatpush1.bf16.msra.mxu0 %v1404
        %1911 = vmatprep.mubr.bf16.mxu0 %v680
        %1912 = vmatmul.mubr.bf16.gmra.mrb[0].mxu0 %v679
        %v1913 = vpop.f32.mrb[0].mxu0
        %v1914 = vadd.f32 %v1873, %v1913
        %v1915 = vpop.f32.mrb[0].mxu0
        %v1916 = vadd.f32 %v1875, %v1915
        %v1917 = vpop.f32.mrb[0].mxu0
        %v1918 = vpop.f32.mrb[0].mxu0
        %1919 = vdwg.mxu0
        %1920 = vmatprep.subr.bf16.mxu0 %v1409
        %1921 = vmatpush1.bf16.msra.mxu0 %v1408
        %1922 = vmatprep.subr.bf16.mxu0 %v1413
        %1923 = vmatpush1.bf16.msra.mxu0 %v1412
        %1924 = vmatprep.subr.bf16.mxu0 %v1417
        %1925 = vmatpush1.bf16.msra.mxu0 %v1416
        %1926 = vmatprep.subr.bf16.mxu0 %v1421
        %1927 = vmatpush1.bf16.msra.mxu0 %v1420
        %1928 = vmatprep.subr.bf16.mxu0 %v1425
        %1929 = vmatpush1.bf16.msra.mxu0 %v1424
        %1930 = vmatprep.subr.bf16.mxu0 %v1429
        %1931 = vmatpush1.bf16.msra.mxu0 %v1428
        %1932 = vmatprep.subr.bf16.mxu0 %v1433
        %1933 = vmatpush1.bf16.msra.mxu0 %v1432
        %1934 = vmatprep.subr.bf16.mxu0 %v1437
        %1935 = vmatpush1.bf16.msra.mxu0 %v1436
        %1936 = vmatprep.subr.bf16.mxu0 %v1441
        %1937 = vmatpush1.bf16.msra.mxu0 %v1440
        %1938 = vmatprep.subr.bf16.mxu0 %v1445
        %1939 = vmatpush1.bf16.msra.mxu0 %v1444
        %1940 = vmatprep.subr.bf16.mxu0 %v1449
        %1941 = vmatpush1.bf16.msra.mxu0 %v1448
        %1942 = vmatprep.subr.bf16.mxu0 %v1453
        %1943 = vmatpush1.bf16.msra.mxu0 %v1452
        %1944 = vmatprep.subr.bf16.mxu0 %v1457
        %1945 = vmatpush1.bf16.msra.mxu0 %v1456
        %1946 = vmatprep.subr.bf16.mxu0 %v1461
        %1947 = vmatpush1.bf16.msra.mxu0 %v1460
        %1948 = vmatprep.subr.bf16.mxu0 %v1465
        %1949 = vmatpush1.bf16.msra.mxu0 %v1464
        %1950 = vmatprep.subr.bf16.mxu0 %v1469
        %1951 = vmatpush1.bf16.msra.mxu0 %v1468
        %1952 = vmatprep.mubr.bf16.mxu0 %v682
        %1953 = vmatmul.mubr.bf16.gmra.mrb[0].mxu0 %v681
        %v1954 = vpop.f32.mrb[0].mxu0
        %v1955 = vadd.f32 %v1914, %v1954
        %v1956 = vpop.f32.mrb[0].mxu0
        %v1957 = vadd.f32 %v1916, %v1956
        %v1958 = vpop.f32.mrb[0].mxu0
        %v1959 = vpop.f32.mrb[0].mxu0
        %1960 = vdwg.mxu0
        %1961 = vmatprep.subr.bf16.mxu0 %v1473
        %1962 = vmatpush1.bf16.msra.mxu0 %v1472
        %1963 = vmatprep.subr.bf16.mxu0 0
        %1964 = vmatpush1.bf16.msra.mxu0 0
        %1965 = vmatprep.subr.bf16.mxu0 0
        %1966 = vmatpush1.bf16.msra.mxu0 0
        %1967 = vmatprep.subr.bf16.mxu0 0
        %1968 = vmatpush1.bf16.msra.mxu0 0
        %1969 = vmatprep.subr.bf16.mxu0 0
        %1970 = vmatpush1.bf16.msra.mxu0 0
        %1971 = vmatprep.subr.bf16.mxu0 0
        %1972 = vmatpush1.bf16.msra.mxu0 0
        %1973 = vmatprep.subr.bf16.mxu0 0
        %1974 = vmatpush1.bf16.msra.mxu0 0
        %1975 = vmatprep.subr.bf16.mxu0 0
        %1976 = vmatpush1.bf16.msra.mxu0 0
        %1977 = vmatprep.subr.bf16.mxu0 0
        %1978 = vmatpush1.bf16.msra.mxu0 0
        %1979 = vmatprep.subr.bf16.mxu0 0
        %1980 = vmatpush1.bf16.msra.mxu0 0
        %1981 = vmatprep.subr.bf16.mxu0 0
        %1982 = vmatpush1.bf16.msra.mxu0 0
        %1983 = vmatprep.subr.bf16.mxu0 0
        %1984 = vmatpush1.bf16.msra.mxu0 0
        %1985 = vmatprep.subr.bf16.mxu0 0
        %1986 = vmatpush1.bf16.msra.mxu0 0
        %1987 = vmatprep.subr.bf16.mxu0 0
        %1988 = vmatpush1.bf16.msra.mxu0 0
        %1989 = vmatprep.subr.bf16.mxu0 0
        %1990 = vmatpush1.bf16.msra.mxu0 0
        %1991 = vmatprep.subr.bf16.mxu0 0
        %1992 = vmatpush1.bf16.msra.mxu0 0
        %1993 = vmatprep.mubr.bf16.mxu0 0
        %1994 = vmatmul.mubr.bf16.gmra.mrb[0].mxu0 %v1672
        %v1995 = vpop.f32.mrb[0].mxu0
        %v1996 = vadd.f32 %v1955, %v1995
        %v1997 = vpop.f32.mrb[0].mxu0
        %v1998 = vadd.f32 %v1957, %v1997
        %v1999 = vpop.f32.mrb[0].mxu0
        %v2000 = vpop.f32.mrb[0].mxu0
        %2001 = vdwg.mxu0
        %v2002 = vmax.f32 %v1832, 0.0
        %v2003 = vmax.f32 %v1834, 0.0
        %v2004 = vmax.f32 %v1996, 0.0
        %v2005 = vmax.f32 %v1998, 0.0
        %v2006 = vpack.c.bf16 %v2002, %v2002
        %v2007 = vpack.c.bf16 %v2003, %v2003
        %v2008 = vpack.c.bf16 %v2004, %v2004
        %v2009 = vpack.c.bf16 %v2005, %v2005
        %v2010 = vld [vmem:[%s4] sm:$0xf]
        %v2011 = vld [vmem:[%s4 + $0x4] sm:$0xf]
        %v2012 = vld [vmem:[%s4 + $0x8] sm:$0xf]
        %v2013 = vld [vmem:[%s4 + $0xc] sm:$0xf]
        %v2014 = vld [vmem:[%s4 + $0x10] sm:$0xf]
        %v2015 = vld [vmem:[%s4 + $0x14] sm:$0xf]
        %v2016 = vld [vmem:[%s4 + $0x18] sm:$0xf]
        %v2017 = vld [vmem:[%s4 + $0x1c] sm:$0xf]
        %v2018 = vld [vmem:[%s4 + $0x20] sm:$0xf]
        %v2019 = vld [vmem:[%s4 + $0x24] sm:$0xf]
        %v2020 = vld [vmem:[%s4 + $0x28] sm:$0xf]
        %v2021 = vld [vmem:[%s4 + $0x2c] sm:$0xf]
        %v2022 = vld [vmem:[%s4 + $0x30] sm:$0xf]
        %v2023 = vld [vmem:[%s4 + $0x34] sm:$0xf]
        %v2024 = vld [vmem:[%s4 + $0x38] sm:$0xf]
        %v2025 = vld [vmem:[%s4 + $0x3c] sm:$0xf]
        %v2026 = vld [vmem:[%s4 + $0x40] sm:$0xf]
        %v2027 = vld [vmem:[%s4 + $0x44] sm:$0xf]
        %v2028 = vld [vmem:[%s4 + $0x48] sm:$0xf]
        %v2029 = vld [vmem:[%s4 + $0x4c] sm:$0xf]
        %v2030 = vld [vmem:[%s4 + $0x50] sm:$0xf]
        %v2031 = vld [vmem:[%s4 + $0x54] sm:$0xf]
        %v2032 = vld [vmem:[%s4 + $0x58] sm:$0xf]
        %v2033 = vld [vmem:[%s4 + $0x5c] sm:$0xf]
        %v2034 = vld [vmem:[%s4 + $0x60] sm:$0xf]
        %v2035 = vld [vmem:[%s4 + $0x64] sm:$0xf]
        %v2036 = vld [vmem:[%s4 + $0x68] sm:$0xf]
        %v2037 = vld [vmem:[%s4 + $0x6c] sm:$0xf]
        %v2038 = vld [vmem:[%s4 + $0x70] sm:$0xf]
        %v2039 = vld [vmem:[%s4 + $0x74] sm:$0xf]
        %v2040 = vld [vmem:[%s4 + $0x78] sm:$0xf]
        %v2041 = vld [vmem:[%s4 + $0x7c] sm:$0xf]
        %v2042 = vld [vmem:[%s4 + $0x80] sm:$0xf]
        %v2043 = vld [vmem:[%s4 + $0x84] sm:$0xf]
        %v2044 = vld [vmem:[%s4 + $0x88] sm:$0xf]
        %v2045 = vld [vmem:[%s4 + $0x8c] sm:$0xf]
        %v2046 = vld [vmem:[%s4 + $0x90] sm:$0xf]
        %v2047 = vld [vmem:[%s4 + $0x94] sm:$0xf]
        %v2048 = vld [vmem:[%s4 + $0x98] sm:$0xf]
        %v2049 = vld [vmem:[%s4 + $0x9c] sm:$0xf]
        %v2050 = vld [vmem:[%s4 + $0xa0] sm:$0xf]
        %v2051 = vld [vmem:[%s4 + $0xa4] sm:$0xf]
        %v2052 = vld [vmem:[%s4 + $0xa8] sm:$0xf]
        %v2053 = vld [vmem:[%s4 + $0xac] sm:$0xf]
        %v2054 = vld [vmem:[%s4 + $0xb0] sm:$0xf]
        %v2055 = vld [vmem:[%s4 + $0xb4] sm:$0xf]
        %v2056 = vld [vmem:[%s4 + $0xb8] sm:$0xf]
        %v2057 = vld [vmem:[%s4 + $0xbc] sm:$0xf]
        %v2058 = vld [vmem:[%s4 + $0xc0] sm:$0xf]
        %v2059 = vld [vmem:[%s4 + $0xc4] sm:$0xf]
        %v2060 = vld [vmem:[%s4 + $0xc8] sm:$0xf]
        %v2061 = vld [vmem:[%s4 + $0xcc] sm:$0xf]
        %v2062 = vld [vmem:[%s4 + $0xd0] sm:$0xf]
        %v2063 = vld [vmem:[%s4 + $0xd4] sm:$0xf]
        %v2064 = vld [vmem:[%s4 + $0xd8] sm:$0xf]
        %v2065 = vld [vmem:[%s4 + $0xdc] sm:$0xf]
        %v2066 = vld [vmem:[%s4 + $0xe0] sm:$0xf]
        %v2067 = vld [vmem:[%s4 + $0xe4] sm:$0xf]
        %v2068 = vld [vmem:[%s4 + $0xe8] sm:$0xf]
        %v2069 = vld [vmem:[%s4 + $0xec] sm:$0xf]
        %v2070 = vld [vmem:[%s4 + $0xf0] sm:$0xf]
        %v2071 = vld [vmem:[%s4 + $0xf4] sm:$0xf]
        %v2072 = vld [vmem:[%s4 + $0xf8] sm:$0xf]
        %v2073 = vld [vmem:[%s4 + $0xfc] sm:$0xf]
        %v2074 = vld [vmem:[%s5] sm:$0x1]
        %v2076 = vlaneseq
        %v2077 = vshrl.u32 %v2076, 7
        %v2078 = vsub.s32 0, %v2077
        %v2079 = vrot.slane %v2074, %v2078
        %v2145 = vunpack.c.l.b16 %v2010
        %v2146 = vunpack.c.l.b16 %v2011
        %v2147 = vunpack.c.l.b16 %v2012
        %v2148 = vunpack.c.l.b16 %v2013
        %v2149 = vunpack.c.l.b16 %v2014
        %v2150 = vunpack.c.l.b16 %v2015
        %v2151 = vunpack.c.l.b16 %v2016
        %v2152 = vunpack.c.l.b16 %v2017
        %v2153 = vunpack.c.l.b16 %v2018
        %v2154 = vunpack.c.l.b16 %v2019
        %v2155 = vunpack.c.l.b16 %v2020
        %v2156 = vunpack.c.l.b16 %v2021
        %v2157 = vunpack.c.l.b16 %v2022
        %v2158 = vunpack.c.l.b16 %v2023
        %v2159 = vunpack.c.l.b16 %v2024
        %v2160 = vunpack.c.l.b16 %v2025
        %v2161 = vunpack.c.l.b16 %v2026
        %v2162 = vunpack.c.l.b16 %v2027
        %v2163 = vunpack.c.l.b16 %v2028
        %v2164 = vunpack.c.l.b16 %v2029
        %v2165 = vunpack.c.l.b16 %v2030
        %v2166 = vunpack.c.l.b16 %v2031
        %v2167 = vunpack.c.l.b16 %v2032
        %v2168 = vunpack.c.l.b16 %v2033
        %v2169 = vunpack.c.l.b16 %v2034
        %v2170 = vunpack.c.l.b16 %v2035
        %v2171 = vunpack.c.l.b16 %v2036
        %v2172 = vunpack.c.l.b16 %v2037
        %v2173 = vunpack.c.l.b16 %v2038
        %v2174 = vunpack.c.l.b16 %v2039
        %v2175 = vunpack.c.l.b16 %v2040
        %v2176 = vunpack.c.l.b16 %v2041
        %v2177 = vunpack.c.l.b16 %v2042
        %v2178 = vunpack.c.l.b16 %v2043
        %v2179 = vunpack.c.l.b16 %v2044
        %v2180 = vunpack.c.l.b16 %v2045
        %v2181 = vunpack.c.l.b16 %v2046
        %v2182 = vunpack.c.l.b16 %v2047
        %v2183 = vunpack.c.l.b16 %v2048
        %v2184 = vunpack.c.l.b16 %v2049
        %v2185 = vunpack.c.l.b16 %v2050
        %v2186 = vunpack.c.l.b16 %v2051
        %v2187 = vunpack.c.l.b16 %v2052
        %v2188 = vunpack.c.l.b16 %v2053
        %v2189 = vunpack.c.l.b16 %v2054
        %v2190 = vunpack.c.l.b16 %v2055
        %v2191 = vunpack.c.l.b16 %v2056
        %v2192 = vunpack.c.l.b16 %v2057
        %v2193 = vunpack.c.l.b16 %v2058
        %v2194 = vunpack.c.l.b16 %v2059
        %v2195 = vunpack.c.l.b16 %v2060
        %v2196 = vunpack.c.l.b16 %v2061
        %v2197 = vunpack.c.l.b16 %v2062
        %v2198 = vunpack.c.l.b16 %v2063
        %v2199 = vunpack.c.l.b16 %v2064
        %v2200 = vunpack.c.l.b16 %v2065
        %v2201 = vunpack.c.l.b16 %v2066
        %v2202 = vunpack.c.l.b16 %v2067
        %v2203 = vunpack.c.l.b16 %v2068
        %v2204 = vunpack.c.l.b16 %v2069
        %v2205 = vunpack.c.l.b16 %v2070
        %v2206 = vunpack.c.l.b16 %v2071
        %v2207 = vunpack.c.l.b16 %v2072
        %v2208 = vunpack.c.l.b16 %v2073
        %v2209 = vpack.c.b16 %v2146, %v2145
        %v2210 = vpack.c.b16 %v2148, %v2147
        %v2211 = vpack.c.b16 %v2150, %v2149
        %v2212 = vpack.c.b16 %v2152, %v2151
        %v2213 = vpack.c.b16 %v2154, %v2153
        %v2214 = vpack.c.b16 %v2156, %v2155
        %v2215 = vpack.c.b16 %v2158, %v2157
        %v2216 = vpack.c.b16 %v2160, %v2159
        %v2217 = vpack.c.b16 %v2162, %v2161
        %v2218 = vpack.c.b16 %v2164, %v2163
        %v2219 = vpack.c.b16 %v2166, %v2165
        %v2220 = vpack.c.b16 %v2168, %v2167
        %v2221 = vpack.c.b16 %v2170, %v2169
        %v2222 = vpack.c.b16 %v2172, %v2171
        %v2223 = vpack.c.b16 %v2174, %v2173
        %v2224 = vpack.c.b16 %v2176, %v2175
        %v2225 = vpack.c.b16 %v2178, %v2177
        %v2226 = vpack.c.b16 %v2180, %v2179
        %v2227 = vpack.c.b16 %v2182, %v2181
        %v2228 = vpack.c.b16 %v2184, %v2183
        %v2229 = vpack.c.b16 %v2186, %v2185
        %v2230 = vpack.c.b16 %v2188, %v2187
        %v2231 = vpack.c.b16 %v2190, %v2189
        %v2232 = vpack.c.b16 %v2192, %v2191
        %v2233 = vpack.c.b16 %v2194, %v2193
        %v2234 = vpack.c.b16 %v2196, %v2195
        %v2235 = vpack.c.b16 %v2198, %v2197
        %v2236 = vpack.c.b16 %v2200, %v2199
        %v2237 = vpack.c.b16 %v2202, %v2201
        %v2238 = vpack.c.b16 %v2204, %v2203
        %v2239 = vpack.c.b16 %v2206, %v2205
        %v2240 = vpack.c.b16 %v2208, %v2207
        %2273 = vmatprep.subr.bf16.mxu0 0
        %2274 = vmatpush1.bf16.msra.mxu0 %v2209
        %2275 = vmatprep.subr.bf16.mxu0 0
        %2276 = vmatpush1.bf16.msra.mxu0 %v2210
        %2277 = vmatprep.subr.bf16.mxu0 0
        %2278 = vmatpush1.bf16.msra.mxu0 %v2211
        %2279 = vmatprep.subr.bf16.mxu0 0
        %2280 = vmatpush1.bf16.msra.mxu0 %v2212
        %2281 = vmatprep.subr.bf16.mxu0 0
        %2282 = vmatpush1.bf16.msra.mxu0 %v2213
        %2283 = vmatprep.subr.bf16.mxu0 0
        %2284 = vmatpush1.bf16.msra.mxu0 %v2214
        %2285 = vmatprep.subr.bf16.mxu0 0
        %2286 = vmatpush1.bf16.msra.mxu0 %v2215
        %2287 = vmatprep.subr.bf16.mxu0 0
        %2288 = vmatpush1.bf16.msra.mxu0 %v2216
        %2289 = vmatprep.subr.bf16.mxu0 0
        %2290 = vmatpush1.bf16.msra.mxu0 %v2217
        %2291 = vmatprep.subr.bf16.mxu0 0
        %2292 = vmatpush1.bf16.msra.mxu0 %v2218
        %2293 = vmatprep.subr.bf16.mxu0 0
        %2294 = vmatpush1.bf16.msra.mxu0 %v2219
        %2295 = vmatprep.subr.bf16.mxu0 0
        %2296 = vmatpush1.bf16.msra.mxu0 %v2220
        %2297 = vmatprep.subr.bf16.mxu0 0
        %2298 = vmatpush1.bf16.msra.mxu0 %v2221
        %2299 = vmatprep.subr.bf16.mxu0 0
        %2300 = vmatpush1.bf16.msra.mxu0 %v2222
        %2301 = vmatprep.subr.bf16.mxu0 0
        %2302 = vmatpush1.bf16.msra.mxu0 %v2223
        %2303 = vmatprep.subr.bf16.mxu0 0
        %2304 = vmatpush1.bf16.msra.mxu0 %v2224
        %2305 = vmatprep.mubr.bf16.mxu0 %v2007
        %2306 = vmatmul.mubr.bf16.gmra.mrb[0].mxu0 %v2006
        %v2307 = vpop.f32.mrb[0].mxu0
        %v2308 = vadd.f32 %v2079, %v2307
        %v2309 = vpop.f32.mrb[0].mxu0
        %v2310 = vpop.f32.mrb[0].mxu0
        %v2311 = vpop.f32.mrb[0].mxu0
        %2312 = vdwg.mxu0
        %2313 = vmatprep.subr.bf16.mxu0 0
        %2314 = vmatpush1.bf16.msra.mxu0 %v2225
        %2315 = vmatprep.subr.bf16.mxu0 0
        %2316 = vmatpush1.bf16.msra.mxu0 %v2226
        %2317 = vmatprep.subr.bf16.mxu0 0
        %2318 = vmatpush1.bf16.msra.mxu0 %v2227
        %2319 = vmatprep.subr.bf16.mxu0 0
        %2320 = vmatpush1.bf16.msra.mxu0 %v2228
        %2321 = vmatprep.subr.bf16.mxu0 0
        %2322 = vmatpush1.bf16.msra.mxu0 %v2229
        %2323 = vmatprep.subr.bf16.mxu0 0
        %2324 = vmatpush1.bf16.msra.mxu0 %v2230
        %2325 = vmatprep.subr.bf16.mxu0 0
        %2326 = vmatpush1.bf16.msra.mxu0 %v2231
        %2327 = vmatprep.subr.bf16.mxu0 0
        %2328 = vmatpush1.bf16.msra.mxu0 %v2232
        %2329 = vmatprep.subr.bf16.mxu0 0
        %2330 = vmatpush1.bf16.msra.mxu0 %v2233
        %2331 = vmatprep.subr.bf16.mxu0 0
        %2332 = vmatpush1.bf16.msra.mxu0 %v2234
        %2333 = vmatprep.subr.bf16.mxu0 0
        %2334 = vmatpush1.bf16.msra.mxu0 %v2235
        %2335 = vmatprep.subr.bf16.mxu0 0
        %2336 = vmatpush1.bf16.msra.mxu0 %v2236
        %2337 = vmatprep.subr.bf16.mxu0 0
        %2338 = vmatpush1.bf16.msra.mxu0 %v2237
        %2339 = vmatprep.subr.bf16.mxu0 0
        %2340 = vmatpush1.bf16.msra.mxu0 %v2238
        %2341 = vmatprep.subr.bf16.mxu0 0
        %2342 = vmatpush1.bf16.msra.mxu0 %v2239
        %2343 = vmatprep.subr.bf16.mxu0 0
        %2344 = vmatpush1.bf16.msra.mxu0 %v2240
        %2345 = vmatprep.mubr.bf16.mxu0 %v2009
        %2346 = vmatmul.mubr.bf16.gmra.mrb[0].mxu0 %v2008
        %v2347 = vpop.f32.mrb[0].mxu0
        %v2348 = vadd.f32 %v2308, %v2347
        %v2349 = vpop.f32.mrb[0].mxu0
        %v2350 = vpop.f32.mrb[0].mxu0
        %v2351 = vpop.f32.mrb[0].mxu0
        %2352 = vdwg.mxu0
        %vm2353 = vcmask 326656
        %2354 = vst.msk [vmem:[%s433] sm:$0xff] %vm2353, %v2348
        %v2355 = vlaneseq
        %v2356 = vand.u32 %v2355, 127
        %vm2357 = vcmp.lt.s32.totalorder %v2356, 20
        %v2358 = vsel %vm2357, 0.0, %v2348
        %v2359 = vld [vmem:[%s442] sm:$0xff]
        %v2360 = vmul.f32 %v2358, 0.5
        %v2361 = vmul.f32 %v2360, 1.442695
        %v2362 = vpow.pop %v2361
        %v2363 = vmul.f32 %v2359, %v2362
        %v2364 = vsel %vm2357, %v2348, %v2363
        %v2365 = vpack.c.bf16 %v2364, %v2364
        %v2366 = vld [vmem:[%s6] sm:$0xff]
        %v2367 = vld [vmem:[%s6 + $0x8] sm:$0xff]
        %v2368 = vld [vmem:[%s6 + $0x10] sm:$0xff]
        %v2369 = vld [vmem:[%s6 + $0x18] sm:$0xff]
        %v2370 = vld [vmem:[%s6 + $0x20] sm:$0xff]
        %v2371 = vld [vmem:[%s6 + $0x28] sm:$0xff]
        %v2372 = vld [vmem:[%s6 + $0x30] sm:$0xff]
        %v2373 = vld [vmem:[%s6 + $0x38] sm:$0xff]
        %v2374 = vld [vmem:[%s6 + $0x40] sm:$0xff]
        %v2375 = vld [vmem:[%s6 + $0x48] sm:$0xff]
        %v2376 = vld [vmem:[%s7] sm:$0xf]
        %v2378 = vlaneseq
        %v2379 = vshrl.u32 %v2378, 7
        %v2380 = vsub.s32 0, %v2379
        %v2381 = vrot.slane %v2376, %v2380
        %v2382 = vlaneseq
        %v2383 = vshrl.u32 %v2382, 7
        %v2384 = vsub.s32 1, %v2383
        %v2385 = vrot.slane %v2376, %v2384
        %v2386 = vlaneseq
        %v2387 = vshrl.u32 %v2386, 7
        %v2388 = vsub.s32 2, %v2387
        %v2389 = vrot.slane %v2376, %v2388
        %v2390 = vlaneseq
        %v2391 = vshrl.u32 %v2390, 7
        %v2392 = vsub.s32 3, %v2391
        %v2393 = vrot.slane %v2376, %v2392
        %v2408 = vunpack.c.l.b16 %v2366
        %v2409 = vunpack.c.h.b16 %v2366
        %v2410 = vunpack.c.l.b16 %v2367
        %v2411 = vunpack.c.h.b16 %v2367
        %v2412 = vunpack.c.l.b16 %v2368
        %v2413 = vunpack.c.h.b16 %v2368
        %v2414 = vunpack.c.l.b16 %v2369
        %v2415 = vunpack.c.h.b16 %v2369
        %v2416 = vunpack.c.l.b16 %v2370
        %v2417 = vunpack.c.h.b16 %v2370
        %v2418 = vunpack.c.l.b16 %v2371
        %v2419 = vunpack.c.h.b16 %v2371
        %v2420 = vunpack.c.l.b16 %v2372
        %v2421 = vunpack.c.h.b16 %v2372
        %v2422 = vunpack.c.l.b16 %v2373
        %v2423 = vunpack.c.h.b16 %v2373
        %v2424 = vunpack.c.l.b16 %v2374
        %v2425 = vunpack.c.h.b16 %v2374
        %v2426 = vunpack.c.l.b16 %v2375
        %v2427 = vunpack.c.h.b16 %v2375
        %v2428 = vpack.c.b16 %v2412, %v2408
        %v2429 = vpack.c.b16 %v2413, %v2409
        %v2430 = vpack.c.b16 %v2414, %v2410
        %v2431 = vpack.c.b16 %v2415, %v2411
        %v2432 = vpack.c.b16 %v2420, %v2416
        %v2433 = vpack.c.b16 %v2421, %v2417
        %v2434 = vpack.c.b16 %v2422, %v2418
        %v2435 = vpack.c.b16 %v2423, %v2419
        %v2436 = vpack.c.b16 %v2424, %v2424
        %v2437 = vpack.c.b16 %v2425, %v2425
        %v2438 = vpack.c.b16 %v2426, %v2426
        %v2439 = vpack.c.b16 %v2427, %v2427
        %v2449 = vsel %vm2353, %v2365, 0
        %vm2451 = vcmask 1043456
        %v2453 = vsel %vm2451, %v2436, 0
        %v2456 = vsel %vm2451, %v2437, 0
        %v2459 = vsel %vm2451, %v2438, 0
        %v2462 = vsel %vm2451, %v2439, 0
        %2464 = vmatprep.subr.bf16.mxu0 %v2429
        %2465 = vmatpush1.bf16.msra.mxu0 %v2428
        %2466 = vmatprep.subr.bf16.mxu0 %v2433
        %2467 = vmatpush1.bf16.msra.mxu0 %v2432
        %2468 = vmatprep.subr.bf16.mxu0 %v2456
        %2469 = vmatpush1.bf16.msra.mxu0 %v2453
        %2470 = vmatprep.subr.bf16.mxu0 0
        %2471 = vmatpush1.bf16.msra.mxu0 0
        %2472 = vmatprep.subr.bf16.mxu0 0
        %2473 = vmatpush1.bf16.msra.mxu0 0
        %2474 = vmatprep.subr.bf16.mxu0 0
        %2475 = vmatpush1.bf16.msra.mxu0 0
        %2476 = vmatprep.subr.bf16.mxu0 0
        %2477 = vmatpush1.bf16.msra.mxu0 0
        %2478 = vmatprep.subr.bf16.mxu0 0
        %2479 = vmatpush1.bf16.msra.mxu0 0
        %2480 = vmatprep.subr.bf16.mxu0 0
        %2481 = vmatpush1.bf16.msra.mxu0 0
        %2482 = vmatprep.subr.bf16.mxu0 0
        %2483 = vmatpush1.bf16.msra.mxu0 0
        %2484 = vmatprep.subr.bf16.mxu0 0
        %2485 = vmatpush1.bf16.msra.mxu0 0
        %2486 = vmatprep.subr.bf16.mxu0 0
        %2487 = vmatpush1.bf16.msra.mxu0 0
        %2488 = vmatprep.subr.bf16.mxu0 0
        %2489 = vmatpush1.bf16.msra.mxu0 0
        %2490 = vmatprep.subr.bf16.mxu0 0
        %2491 = vmatpush1.bf16.msra.mxu0 0
        %2492 = vmatprep.subr.bf16.mxu0 0
        %2493 = vmatpush1.bf16.msra.mxu0 0
        %2494 = vmatprep.subr.bf16.mxu0 0
        %2495 = vmatpush1.bf16.msra.mxu0 0
        %2496 = vmatprep.mubr.bf16.mxu0 0
        %2497 = vmatmul.mubr.bf16.gmra.mrb[0].mxu0 %v2449
        %v2498 = vpop.f32.mrb[0].mxu0
        %v2499 = vadd.f32 %v2381, %v2498
        %v2500 = vpop.f32.mrb[0].mxu0
        %v2501 = vadd.f32 %v2385, %v2500
        %v2502 = vpop.f32.mrb[0].mxu0
        %v2503 = vpop.f32.mrb[0].mxu0
        %2504 = vdwg.mxu0
        %2505 = vmatprep.subr.bf16.mxu0 %v2431
        %2506 = vmatpush1.bf16.msra.mxu0 %v2430
        %2507 = vmatprep.subr.bf16.mxu0 %v2435
        %2508 = vmatpush1.bf16.msra.mxu0 %v2434
        %2509 = vmatprep.subr.bf16.mxu0 %v2462
        %2510 = vmatpush1.bf16.msra.mxu0 %v2459
        %2511 = vmatprep.subr.bf16.mxu0 0
        %2512 = vmatpush1.bf16.msra.mxu0 0
        %2513 = vmatprep.subr.bf16.mxu0 0
        %2514 = vmatpush1.bf16.msra.mxu0 0
        %2515 = vmatprep.subr.bf16.mxu0 0
        %2516 = vmatpush1.bf16.msra.mxu0 0
        %2517 = vmatprep.subr.bf16.mxu0 0
        %2518 = vmatpush1.bf16.msra.mxu0 0
        %2519 = vmatprep.subr.bf16.mxu0 0
        %2520 = vmatpush1.bf16.msra.mxu0 0
        %2521 = vmatprep.subr.bf16.mxu0 0
        %2522 = vmatpush1.bf16.msra.mxu0 0
        %2523 = vmatprep.subr.bf16.mxu0 0
        %2524 = vmatpush1.bf16.msra.mxu0 0
        %2525 = vmatprep.subr.bf16.mxu0 0
        %2526 = vmatpush1.bf16.msra.mxu0 0
        %2527 = vmatprep.subr.bf16.mxu0 0
        %2528 = vmatpush1.bf16.msra.mxu0 0
        %2529 = vmatprep.subr.bf16.mxu0 0
        %2530 = vmatpush1.bf16.msra.mxu0 0
        %2531 = vmatprep.subr.bf16.mxu0 0
        %2532 = vmatpush1.bf16.msra.mxu0 0
        %2533 = vmatprep.subr.bf16.mxu0 0
        %2534 = vmatpush1.bf16.msra.mxu0 0
        %2535 = vmatprep.subr.bf16.mxu0 0
        %2536 = vmatpush1.bf16.msra.mxu0 0
        %2537 = vmatprep.mubr.bf16.mxu0 0
        %2538 = vmatmul.mubr.bf16.gmra.mrb[0].mxu0 %v2449
        %v2539 = vpop.f32.mrb[0].mxu0
        %v2540 = vadd.f32 %v2389, %v2539
        %v2541 = vpop.f32.mrb[0].mxu0
        %v2542 = vadd.f32 %v2393, %v2541
        %v2543 = vpop.f32.mrb[0].mxu0
        %v2544 = vpop.f32.mrb[0].mxu0
        %2545 = vdwg.mxu0
        %v2546 = vmax.f32 %v2499, 0.0
        %v2547 = vmax.f32 %v2501, 0.0
        %v2548 = vmax.f32 %v2540, 0.0
        %v2549 = vmax.f32 %v2542, 0.0
        %v2550 = vpack.c.bf16 %v2546, %v2546
        %v2551 = vpack.c.bf16 %v2547, %v2547
        %v2552 = vpack.c.bf16 %v2548, %v2548
        %v2553 = vpack.c.bf16 %v2549, %v2549
        %v2554 = vld [vmem:[#allocation5] sm:$0xff]
        %v2555 = vld [vmem:[#allocation5 + $0x8] sm:$0xff]
        %v2556 = vld [vmem:[#allocation5 + $0x10] sm:$0xff]
        %v2557 = vld [vmem:[#allocation5 + $0x18] sm:$0xf]
        %v2558 = vld [vmem:[#allocation5 + $0x1c] sm:$0xff]
        %v2559 = vld [vmem:[#allocation5 + $0x24] sm:$0xff]
        %v2560 = vld [vmem:[#allocation5 + $0x2c] sm:$0xff]
        %v2561 = vld [vmem:[#allocation5 + $0x34] sm:$0xf]
        %v2562 = vld [vmem:[#allocation5 + $0x38] sm:$0xff]
        %v2563 = vld [vmem:[#allocation5 + $0x40] sm:$0xff]
        %v2564 = vld [vmem:[#allocation5 + $0x48] sm:$0xff]
        %v2565 = vld [vmem:[#allocation5 + $0x50] sm:$0xf]
        %v2566 = vld [vmem:[#allocation5 + $0x54] sm:$0xff]
        %v2567 = vld [vmem:[#allocation5 + $0x5c] sm:$0xff]
        %v2568 = vld [vmem:[#allocation5 + $0x64] sm:$0xff]
        %v2569 = vld [vmem:[#allocation5 + $0x6c] sm:$0xf]
        %v2570 = vld [vmem:[#allocation5 + $0x70] sm:$0xff]
        %v2571 = vld [vmem:[#allocation5 + $0x78] sm:$0xff]
        %v2572 = vld [vmem:[#allocation5 + $0x80] sm:$0xff]
        %v2573 = vld [vmem:[#allocation5 + $0x88] sm:$0xf]
        %v2574 = vld [vmem:[#allocation5 + $0x8c] sm:$0xff]
        %v2575 = vld [vmem:[#allocation5 + $0x94] sm:$0xff]
        %v2576 = vld [vmem:[#allocation5 + $0x9c] sm:$0xff]
        %v2577 = vld [vmem:[#allocation5 + $0xa4] sm:$0xf]
        %v2578 = vld [vmem:[#allocation5 + $0xa8] sm:$0xff]
        %v2579 = vld [vmem:[#allocation5 + $0xb0] sm:$0xff]
        %v2580 = vld [vmem:[#allocation5 + $0xb8] sm:$0xff]
        %v2581 = vld [vmem:[#allocation5 + $0xc0] sm:$0xf]
        %v2582 = vld [vmem:[#allocation5 + $0xc4] sm:$0xff]
        %v2583 = vld [vmem:[#allocation5 + $0xcc] sm:$0xff]
        %v2584 = vld [vmem:[#allocation5 + $0xd4] sm:$0xff]
        %v2585 = vld [vmem:[#allocation5 + $0xdc] sm:$0xf]
        %v2586 = vld [vmem:[#allocation5 + $0xe0] sm:$0xff]
        %v2587 = vld [vmem:[#allocation5 + $0xe8] sm:$0xff]
        %v2588 = vld [vmem:[#allocation5 + $0xf0] sm:$0xff]
        %v2589 = vld [vmem:[#allocation5 + $0xf8] sm:$0xf]
        %v2590 = vld [vmem:[#allocation5 + $0xfc] sm:$0xff]
        %v2591 = vld [vmem:[#allocation5 + $0x104] sm:$0xff]
        %v2592 = vld [vmem:[#allocation5 + $0x10c] sm:$0xff]
        %v2593 = vld [vmem:[#allocation5 + $0x114] sm:$0xf]
        %v2594 = vld [vmem:[#allocation5 + $0x118] sm:$0xff]
        %v2595 = vld [vmem:[#allocation5 + $0x120] sm:$0xff]
        %v2596 = vld [vmem:[#allocation5 + $0x128] sm:$0xff]
        %v2597 = vld [vmem:[#allocation5 + $0x130] sm:$0xf]
        %v2598 = vld [vmem:[#allocation5 + $0x134] sm:$0xff]
        %v2599 = vld [vmem:[#allocation5 + $0x13c] sm:$0xff]
        %v2600 = vld [vmem:[#allocation5 + $0x144] sm:$0xff]
        %v2601 = vld [vmem:[#allocation5 + $0x14c] sm:$0xf]
        %v2602 = vld [vmem:[#allocation5 + $0x150] sm:$0xff]
        %v2603 = vld [vmem:[#allocation5 + $0x158] sm:$0xff]
        %v2604 = vld [vmem:[#allocation5 + $0x160] sm:$0xff]
        %v2605 = vld [vmem:[#allocation5 + $0x168] sm:$0xf]
        %v2606 = vld [vmem:[#allocation5 + $0x16c] sm:$0xff]
        %v2607 = vld [vmem:[#allocation5 + $0x174] sm:$0xff]
        %v2608 = vld [vmem:[#allocation5 + $0x17c] sm:$0xff]
        %v2609 = vld [vmem:[#allocation5 + $0x184] sm:$0xf]
        %v2610 = vld [vmem:[#allocation5 + $0x188] sm:$0xff]
        %v2611 = vld [vmem:[#allocation5 + $0x190] sm:$0xff]
        %v2612 = vld [vmem:[#allocation5 + $0x198] sm:$0xff]
        %v2613 = vld [vmem:[#allocation5 + $0x1a0] sm:$0xf]
        %v2614 = vld [vmem:[#allocation5 + $0x1a4] sm:$0xff]
        %v2615 = vld [vmem:[#allocation5 + $0x1ac] sm:$0xff]
        %v2616 = vld [vmem:[#allocation5 + $0x1b4] sm:$0xff]
        %v2617 = vld [vmem:[#allocation5 + $0x1bc] sm:$0xf]
        %v2618 = vld [vmem:[#allocation5 + $0x1c0] sm:$0xff]
        %v2619 = vld [vmem:[#allocation5 + $0x1c8] sm:$0xff]
        %v2620 = vld [vmem:[#allocation5 + $0x1d0] sm:$0xff]
        %v2621 = vld [vmem:[#allocation5 + $0x1d8] sm:$0xf]
        %v2622 = vld [vmem:[#allocation5 + $0x1dc] sm:$0xff]
        %v2623 = vld [vmem:[#allocation5 + $0x1e4] sm:$0xff]
        %v2624 = vld [vmem:[#allocation5 + $0x1ec] sm:$0xff]
        %v2625 = vld [vmem:[#allocation5 + $0x1f4] sm:$0xf]
        %v2626 = vld [vmem:[#allocation5 + $0x1f8] sm:$0xff]
        %v2627 = vld [vmem:[#allocation5 + $0x200] sm:$0xff]
        %v2628 = vld [vmem:[#allocation5 + $0x208] sm:$0xff]
        %v2629 = vld [vmem:[#allocation5 + $0x210] sm:$0xf]
        %v2630 = vld [vmem:[#allocation5 + $0x214] sm:$0xff]
        %v2631 = vld [vmem:[#allocation5 + $0x21c] sm:$0xff]
        %v2632 = vld [vmem:[#allocation5 + $0x224] sm:$0xff]
        %v2633 = vld [vmem:[#allocation5 + $0x22c] sm:$0xf]
        %v2634 = vld [vmem:[#allocation5 + $0x230] sm:$0xff]
        %v2635 = vld [vmem:[#allocation5 + $0x238] sm:$0xff]
        %v2636 = vld [vmem:[#allocation5 + $0x240] sm:$0xff]
        %v2637 = vld [vmem:[#allocation5 + $0x248] sm:$0xf]
        %v2638 = vld [vmem:[#allocation5 + $0x24c] sm:$0xff]
        %v2639 = vld [vmem:[#allocation5 + $0x254] sm:$0xff]
        %v2640 = vld [vmem:[#allocation5 + $0x25c] sm:$0xff]
        %v2641 = vld [vmem:[#allocation5 + $0x264] sm:$0xf]
        %v2642 = vld [vmem:[#allocation5 + $0x268] sm:$0xff]
        %v2643 = vld [vmem:[#allocation5 + $0x270] sm:$0xff]
        %v2644 = vld [vmem:[#allocation5 + $0x278] sm:$0xff]
        %v2645 = vld [vmem:[#allocation5 + $0x280] sm:$0xf]
        %v2646 = vld [vmem:[#allocation5 + $0x284] sm:$0xff]
        %v2647 = vld [vmem:[#allocation5 + $0x28c] sm:$0xff]
        %v2648 = vld [vmem:[#allocation5 + $0x294] sm:$0xff]
        %v2649 = vld [vmem:[#allocation5 + $0x29c] sm:$0xf]
        %v2650 = vld [vmem:[#allocation5 + $0x2a0] sm:$0xff]
        %v2651 = vld [vmem:[#allocation5 + $0x2a8] sm:$0xff]
        %v2652 = vld [vmem:[#allocation5 + $0x2b0] sm:$0xff]
        %v2653 = vld [vmem:[#allocation5 + $0x2b8] sm:$0xf]
        %v2654 = vld [vmem:[#allocation5 + $0x2bc] sm:$0xff]
        %v2655 = vld [vmem:[#allocation5 + $0x2c4] sm:$0xff]
        %v2656 = vld [vmem:[#allocation5 + $0x2cc] sm:$0xff]
        %v2657 = vld [vmem:[#allocation5 + $0x2d4] sm:$0xf]
        %v2658 = vld [vmem:[#allocation5 + $0x2d8] sm:$0xff]
        %v2659 = vld [vmem:[#allocation5 + $0x2e0] sm:$0xff]
        %v2660 = vld [vmem:[#allocation5 + $0x2e8] sm:$0xff]
        %v2661 = vld [vmem:[#allocation5 + $0x2f0] sm:$0xf]
        %v2662 = vld [vmem:[#allocation5 + $0x2f4] sm:$0xff]
        %v2663 = vld [vmem:[#allocation5 + $0x2fc] sm:$0xff]
        %v2664 = vld [vmem:[#allocation5 + $0x304] sm:$0xff]
        %v2665 = vld [vmem:[#allocation5 + $0x30c] sm:$0xf]
        %v2666 = vld [vmem:[#allocation5 + $0x310] sm:$0xff]
        %v2667 = vld [vmem:[#allocation5 + $0x318] sm:$0xff]
        %v2668 = vld [vmem:[#allocation5 + $0x320] sm:$0xff]
        %v2669 = vld [vmem:[#allocation5 + $0x328] sm:$0xf]
        %v2670 = vld [vmem:[#allocation5 + $0x32c] sm:$0xff]
        %v2671 = vld [vmem:[#allocation5 + $0x334] sm:$0xff]
        %v2672 = vld [vmem:[#allocation5 + $0x33c] sm:$0xff]
        %v2673 = vld [vmem:[#allocation5 + $0x344] sm:$0xf]
        %v2674 = vld [vmem:[#allocation5 + $0x348] sm:$0xff]
        %v2675 = vld [vmem:[#allocation5 + $0x350] sm:$0xff]
        %v2676 = vld [vmem:[#allocation5 + $0x358] sm:$0xff]
        %v2677 = vld [vmem:[#allocation5 + $0x360] sm:$0xf]
        %v2678 = vld [vmem:[#allocation5 + $0x364] sm:$0xff]
        %v2679 = vld [vmem:[#allocation5 + $0x36c] sm:$0xff]
        %v2680 = vld [vmem:[#allocation5 + $0x374] sm:$0xff]
        %v2681 = vld [vmem:[#allocation5 + $0x37c] sm:$0xf]
        %v2682 = vld [vmem:[#allocation5 + $0x380] sm:$0xff]
        %v2683 = vld [vmem:[#allocation5 + $0x388] sm:$0xff]
        %v2684 = vld [vmem:[#allocation5 + $0x390] sm:$0xff]
        %v2685 = vld [vmem:[#allocation5 + $0x398] sm:$0xf]
        %v2686 = vld [vmem:[#allocation5 + $0x39c] sm:$0xff]
        %v2687 = vld [vmem:[#allocation5 + $0x3a4] sm:$0xff]
        %v2688 = vld [vmem:[#allocation5 + $0x3ac] sm:$0xff]
        %v2689 = vld [vmem:[#allocation5 + $0x3b4] sm:$0xf]
        %v2690 = vld [vmem:[#allocation5 + $0x3b8] sm:$0xff]
        %v2691 = vld [vmem:[#allocation5 + $0x3c0] sm:$0xff]
        %v2692 = vld [vmem:[#allocation5 + $0x3c8] sm:$0xff]
        %v2693 = vld [vmem:[#allocation5 + $0x3d0] sm:$0xf]
        %v2694 = vld [vmem:[#allocation5 + $0x3d4] sm:$0xff]
        %v2695 = vld [vmem:[#allocation5 + $0x3dc] sm:$0xff]
        %v2696 = vld [vmem:[#allocation5 + $0x3e4] sm:$0xff]
        %v2697 = vld [vmem:[#allocation5 + $0x3ec] sm:$0xf]
        %v2698 = vld [vmem:[#allocation5 + $0x3f0] sm:$0xff]
        %v2699 = vld [vmem:[#allocation5 + $0x3f8] sm:$0xff]
        %v2700 = vld [vmem:[#allocation5 + $0x400] sm:$0xff]
        %v2701 = vld [vmem:[#allocation5 + $0x408] sm:$0xf]
        %v2702 = vld [vmem:[#allocation5 + $0x40c] sm:$0xff]
        %v2703 = vld [vmem:[#allocation5 + $0x414] sm:$0xff]
        %v2704 = vld [vmem:[#allocation5 + $0x41c] sm:$0xff]
        %v2705 = vld [vmem:[#allocation5 + $0x424] sm:$0xf]
        %v2706 = vld [vmem:[#allocation5 + $0x428] sm:$0xff]
        %v2707 = vld [vmem:[#allocation5 + $0x430] sm:$0xff]
        %v2708 = vld [vmem:[#allocation5 + $0x438] sm:$0xff]
        %v2709 = vld [vmem:[#allocation5 + $0x440] sm:$0xf]
        %v2710 = vld [vmem:[#allocation5 + $0x444] sm:$0xff]
        %v2711 = vld [vmem:[#allocation5 + $0x44c] sm:$0xff]
        %v2712 = vld [vmem:[#allocation5 + $0x454] sm:$0xff]
        %v2713 = vld [vmem:[#allocation5 + $0x45c] sm:$0xf]
        %v2714 = vld [vmem:[#allocation5 + $0x460] sm:$0xff]
        %v2715 = vld [vmem:[#allocation5 + $0x468] sm:$0xff]
        %v2716 = vld [vmem:[#allocation5 + $0x470] sm:$0xff]
        %v2717 = vld [vmem:[#allocation5 + $0x478] sm:$0xf]
        %v2718 = vld [vmem:[#allocation5 + $0x47c] sm:$0xff]
        %v2719 = vld [vmem:[#allocation5 + $0x484] sm:$0xff]
        %v2720 = vld [vmem:[#allocation5 + $0x48c] sm:$0xff]
        %v2721 = vld [vmem:[#allocation5 + $0x494] sm:$0xf]
        %v2722 = vld [vmem:[#allocation5 + $0x498] sm:$0xff]
        %v2723 = vld [vmem:[#allocation5 + $0x4a0] sm:$0xff]
        %v2724 = vld [vmem:[#allocation5 + $0x4a8] sm:$0xff]
        %v2725 = vld [vmem:[#allocation5 + $0x4b0] sm:$0xf]
        %v2726 = vld [vmem:[#allocation5 + $0x4b4] sm:$0xff]
        %v2727 = vld [vmem:[#allocation5 + $0x4bc] sm:$0xff]
        %v2728 = vld [vmem:[#allocation5 + $0x4c4] sm:$0xff]
        %v2729 = vld [vmem:[#allocation5 + $0x4cc] sm:$0xf]
        %v2730 = vld [vmem:[#allocation5 + $0x4d0] sm:$0xff]
        %v2731 = vld [vmem:[#allocation5 + $0x4d8] sm:$0xff]
        %v2732 = vld [vmem:[#allocation5 + $0x4e0] sm:$0xff]
        %v2733 = vld [vmem:[#allocation5 + $0x4e8] sm:$0xf]
        %v2734 = vld [vmem:[#allocation5 + $0x4ec] sm:$0xff]
        %v2735 = vld [vmem:[#allocation5 + $0x4f4] sm:$0xff]
        %v2736 = vld [vmem:[#allocation5 + $0x4fc] sm:$0xff]
        %v2737 = vld [vmem:[#allocation5 + $0x504] sm:$0xf]
        %v2738 = vld [vmem:[#allocation5 + $0x508] sm:$0xff]
        %v2739 = vld [vmem:[#allocation5 + $0x510] sm:$0xff]
        %v2740 = vld [vmem:[#allocation5 + $0x518] sm:$0xff]
        %v2741 = vld [vmem:[#allocation5 + $0x520] sm:$0xf]
        %v2742 = vld [vmem:[#allocation5 + $0x524] sm:$0xff]
        %v2743 = vld [vmem:[#allocation5 + $0x52c] sm:$0xff]
        %v2744 = vld [vmem:[#allocation5 + $0x534] sm:$0xff]
        %v2745 = vld [vmem:[#allocation5 + $0x53c] sm:$0xf]
        %v2746 = vld [vmem:[#allocation5 + $0x540] sm:$0xff]
        %v2747 = vld [vmem:[#allocation5 + $0x548] sm:$0xff]
        %v2748 = vld [vmem:[#allocation5 + $0x550] sm:$0xff]
        %v2749 = vld [vmem:[#allocation5 + $0x558] sm:$0xf]
        %v2750 = vld [vmem:[#allocation5 + $0x55c] sm:$0xff]
        %v2751 = vld [vmem:[#allocation5 + $0x564] sm:$0xff]
        %v2752 = vld [vmem:[#allocation5 + $0x56c] sm:$0xff]
        %v2753 = vld [vmem:[#allocation5 + $0x574] sm:$0xf]
        %v2754 = vld [vmem:[#allocation5 + $0x578] sm:$0xff]
        %v2755 = vld [vmem:[#allocation5 + $0x580] sm:$0xff]
        %v2756 = vld [vmem:[#allocation5 + $0x588] sm:$0xff]
        %v2757 = vld [vmem:[#allocation5 + $0x590] sm:$0xf]
        %v2758 = vld [vmem:[#allocation5 + $0x594] sm:$0xff]
        %v2759 = vld [vmem:[#allocation5 + $0x59c] sm:$0xff]
        %v2760 = vld [vmem:[#allocation5 + $0x5a4] sm:$0xff]
        %v2761 = vld [vmem:[#allocation5 + $0x5ac] sm:$0xf]
        %v2762 = vld [vmem:[#allocation5 + $0x5b0] sm:$0xff]
        %v2763 = vld [vmem:[#allocation5 + $0x5b8] sm:$0xff]
        %v2764 = vld [vmem:[#allocation5 + $0x5c0] sm:$0xff]
        %v2765 = vld [vmem:[#allocation5 + $0x5c8] sm:$0xf]
        %v2766 = vld [vmem:[#allocation5 + $0x5cc] sm:$0xff]
        %v2767 = vld [vmem:[#allocation5 + $0x5d4] sm:$0xff]
        %v2768 = vld [vmem:[#allocation5 + $0x5dc] sm:$0xff]
        %v2769 = vld [vmem:[#allocation5 + $0x5e4] sm:$0xf]
        %v2770 = vld [vmem:[#allocation5 + $0x5e8] sm:$0xff]
        %v2771 = vld [vmem:[#allocation5 + $0x5f0] sm:$0xff]
        %v2772 = vld [vmem:[#allocation5 + $0x5f8] sm:$0xff]
        %v2773 = vld [vmem:[#allocation5 + $0x600] sm:$0xf]
        %v2774 = vld [vmem:[#allocation5 + $0x604] sm:$0xff]
        %v2775 = vld [vmem:[#allocation5 + $0x60c] sm:$0xff]
        %v2776 = vld [vmem:[#allocation5 + $0x614] sm:$0xff]
        %v2777 = vld [vmem:[#allocation5 + $0x61c] sm:$0xf]
        %v2778 = vld [vmem:[#allocation5 + $0x620] sm:$0xff]
        %v2779 = vld [vmem:[#allocation5 + $0x628] sm:$0xff]
        %v2780 = vld [vmem:[#allocation5 + $0x630] sm:$0xff]
        %v2781 = vld [vmem:[#allocation5 + $0x638] sm:$0xf]
        %v2782 = vld [vmem:[#allocation5 + $0x63c] sm:$0xff]
        %v2783 = vld [vmem:[#allocation5 + $0x644] sm:$0xff]
        %v2784 = vld [vmem:[#allocation5 + $0x64c] sm:$0xff]
        %v2785 = vld [vmem:[#allocation5 + $0x654] sm:$0xf]
        %v2786 = vld [vmem:[#allocation5 + $0x658] sm:$0xff]
        %v2787 = vld [vmem:[#allocation5 + $0x660] sm:$0xff]
        %v2788 = vld [vmem:[#allocation5 + $0x668] sm:$0xff]
        %v2789 = vld [vmem:[#allocation5 + $0x670] sm:$0xf]
        %v2790 = vld [vmem:[#allocation5 + $0x674] sm:$0xff]
        %v2791 = vld [vmem:[#allocation5 + $0x67c] sm:$0xff]
        %v2792 = vld [vmem:[#allocation5 + $0x684] sm:$0xff]
        %v2793 = vld [vmem:[#allocation5 + $0x68c] sm:$0xf]
        %v2794 = vld [vmem:[#allocation5 + $0x690] sm:$0xff]
        %v2795 = vld [vmem:[#allocation5 + $0x698] sm:$0xff]
        %v2796 = vld [vmem:[#allocation5 + $0x6a0] sm:$0xff]
        %v2797 = vld [vmem:[#allocation5 + $0x6a8] sm:$0xf]
        %v2798 = vld [vmem:[#allocation5 + $0x6ac] sm:$0xff]
        %v2799 = vld [vmem:[#allocation5 + $0x6b4] sm:$0xff]
        %v2800 = vld [vmem:[#allocation5 + $0x6bc] sm:$0xff]
        %v2801 = vld [vmem:[#allocation5 + $0x6c4] sm:$0xf]
        %v2802 = vld [vmem:[#allocation5 + $0x6c8] sm:$0xff]
        %v2803 = vld [vmem:[#allocation5 + $0x6d0] sm:$0xff]
        %v2804 = vld [vmem:[#allocation5 + $0x6d8] sm:$0xff]
        %v2805 = vld [vmem:[#allocation5 + $0x6e0] sm:$0xf]
        %v2806 = vld [vmem:[#allocation5 + $0x6e4] sm:$0xff]
        %v2807 = vld [vmem:[#allocation5 + $0x6ec] sm:$0xff]
        %v2808 = vld [vmem:[#allocation5 + $0x6f4] sm:$0xff]
        %v2809 = vld [vmem:[#allocation5 + $0x6fc] sm:$0xf]
        %v2810 = vld [vmem:[%s9] sm:$0xff]
        %v2812 = vlaneseq
        %v2813 = vshrl.u32 %v2812, 7
        %v2814 = vsub.s32 0, %v2813
        %v2815 = vrot.slane %v2810, %v2814
        %v2816 = vlaneseq
        %v2817 = vshrl.u32 %v2816, 7
        %v2818 = vsub.s32 1, %v2817
        %v2819 = vrot.slane %v2810, %v2818
        %v2820 = vlaneseq
        %v2821 = vshrl.u32 %v2820, 7
        %v2822 = vsub.s32 2, %v2821
        %v2823 = vrot.slane %v2810, %v2822
        %v2824 = vlaneseq
        %v2825 = vshrl.u32 %v2824, 7
        %v2826 = vsub.s32 3, %v2825
        %v2827 = vrot.slane %v2810, %v2826
        %v2828 = vlaneseq
        %v2829 = vshrl.u32 %v2828, 7
        %v2830 = vsub.s32 4, %v2829
        %v2831 = vrot.slane %v2810, %v2830
        %v2832 = vlaneseq
        %v2833 = vshrl.u32 %v2832, 7
        %v2834 = vsub.s32 5, %v2833
        %v2835 = vrot.slane %v2810, %v2834
        %v2836 = vlaneseq
        %v2837 = vshrl.u32 %v2836, 7
        %v2838 = vsub.s32 6, %v2837
        %v2839 = vrot.slane %v2810, %v2838
        %v3103 = vunpack.c.l.b16 %v2554
        %v3104 = vunpack.c.h.b16 %v2554
        %v3105 = vunpack.c.l.b16 %v2555
        %v3106 = vunpack.c.h.b16 %v2555
        %v3107 = vunpack.c.l.b16 %v2556
        %v3108 = vunpack.c.h.b16 %v2556
        %v3109 = vunpack.c.l.b16 %v2557
        %v3110 = vunpack.c.l.b16 %v2558
        %v3111 = vunpack.c.h.b16 %v2558
        %v3112 = vunpack.c.l.b16 %v2559
        %v3113 = vunpack.c.h.b16 %v2559
        %v3114 = vunpack.c.l.b16 %v2560
        %v3115 = vunpack.c.h.b16 %v2560
        %v3116 = vunpack.c.l.b16 %v2561
        %v3117 = vunpack.c.l.b16 %v2562
        %v3118 = vunpack.c.h.b16 %v2562
        %v3119 = vunpack.c.l.b16 %v2563
        %v3120 = vunpack.c.h.b16 %v2563
        %v3121 = vunpack.c.l.b16 %v2564
        %v3122 = vunpack.c.h.b16 %v2564
        %v3123 = vunpack.c.l.b16 %v2565
        %v3124 = vunpack.c.l.b16 %v2566
        %v3125 = vunpack.c.h.b16 %v2566
        %v3126 = vunpack.c.l.b16 %v2567
        %v3127 = vunpack.c.h.b16 %v2567
        %v3128 = vunpack.c.l.b16 %v2568
        %v3129 = vunpack.c.h.b16 %v2568
        %v3130 = vunpack.c.l.b16 %v2569
        %v3131 = vunpack.c.l.b16 %v2570
        %v3132 = vunpack.c.h.b16 %v2570
        %v3133 = vunpack.c.l.b16 %v2571
        %v3134 = vunpack.c.h.b16 %v2571
        %v3135 = vunpack.c.l.b16 %v2572
        %v3136 = vunpack.c.h.b16 %v2572
        %v3137 = vunpack.c.l.b16 %v2573
        %v3138 = vunpack.c.l.b16 %v2574
        %v3139 = vunpack.c.h.b16 %v2574
        %v3140 = vunpack.c.l.b16 %v2575
        %v3141 = vunpack.c.h.b16 %v2575
        %v3142 = vunpack.c.l.b16 %v2576
        %v3143 = vunpack.c.h.b16 %v2576
        %v3144 = vunpack.c.l.b16 %v2577
        %v3145 = vunpack.c.l.b16 %v2578
        %v3146 = vunpack.c.h.b16 %v2578
        %v3147 = vunpack.c.l.b16 %v2579
        %v3148 = vunpack.c.h.b16 %v2579
        %v3149 = vunpack.c.l.b16 %v2580
        %v3150 = vunpack.c.h.b16 %v2580
        %v3151 = vunpack.c.l.b16 %v2581
        %v3152 = vunpack.c.l.b16 %v2582
        %v3153 = vunpack.c.h.b16 %v2582
        %v3154 = vunpack.c.l.b16 %v2583
        %v3155 = vunpack.c.h.b16 %v2583
        %v3156 = vunpack.c.l.b16 %v2584
        %v3157 = vunpack.c.h.b16 %v2584
        %v3158 = vunpack.c.l.b16 %v2585
        %v3159 = vunpack.c.l.b16 %v2586
        %v3160 = vunpack.c.h.b16 %v2586
        %v3161 = vunpack.c.l.b16 %v2587
        %v3162 = vunpack.c.h.b16 %v2587
        %v3163 = vunpack.c.l.b16 %v2588
        %v3164 = vunpack.c.h.b16 %v2588
        %v3165 = vunpack.c.l.b16 %v2589
        %v3166 = vunpack.c.l.b16 %v2590
        %v3167 = vunpack.c.h.b16 %v2590
        %v3168 = vunpack.c.l.b16 %v2591
        %v3169 = vunpack.c.h.b16 %v2591
        %v3170 = vunpack.c.l.b16 %v2592
        %v3171 = vunpack.c.h.b16 %v2592
        %v3172 = vunpack.c.l.b16 %v2593
        %v3173 = vunpack.c.l.b16 %v2594
        %v3174 = vunpack.c.h.b16 %v2594
        %v3175 = vunpack.c.l.b16 %v2595
        %v3176 = vunpack.c.h.b16 %v2595
        %v3177 = vunpack.c.l.b16 %v2596
        %v3178 = vunpack.c.h.b16 %v2596
        %v3179 = vunpack.c.l.b16 %v2597
        %v3180 = vunpack.c.l.b16 %v2598
        %v3181 = vunpack.c.h.b16 %v2598
        %v3182 = vunpack.c.l.b16 %v2599
        %v3183 = vunpack.c.h.b16 %v2599
        %v3184 = vunpack.c.l.b16 %v2600
        %v3185 = vunpack.c.h.b16 %v2600
        %v3186 = vunpack.c.l.b16 %v2601
        %v3187 = vunpack.c.l.b16 %v2602
        %v3188 = vunpack.c.h.b16 %v2602
        %v3189 = vunpack.c.l.b16 %v2603
        %v3190 = vunpack.c.h.b16 %v2603
        %v3191 = vunpack.c.l.b16 %v2604
        %v3192 = vunpack.c.h.b16 %v2604
        %v3193 = vunpack.c.l.b16 %v2605
        %v3194 = vunpack.c.l.b16 %v2606
        %v3195 = vunpack.c.h.b16 %v2606
        %v3196 = vunpack.c.l.b16 %v2607
        %v3197 = vunpack.c.h.b16 %v2607
        %v3198 = vunpack.c.l.b16 %v2608
        %v3199 = vunpack.c.h.b16 %v2608
        %v3200 = vunpack.c.l.b16 %v2609
        %v3201 = vunpack.c.l.b16 %v2610
        %v3202 = vunpack.c.h.b16 %v2610
        %v3203 = vunpack.c.l.b16 %v2611
        %v3204 = vunpack.c.h.b16 %v2611
        %v3205 = vunpack.c.l.b16 %v2612
        %v3206 = vunpack.c.h.b16 %v2612
        %v3207 = vunpack.c.l.b16 %v2613
        %v3208 = vunpack.c.l.b16 %v2614
        %v3209 = vunpack.c.h.b16 %v2614
        %v3210 = vunpack.c.l.b16 %v2615
        %v3211 = vunpack.c.h.b16 %v2615
        %v3212 = vunpack.c.l.b16 %v2616
        %v3213 = vunpack.c.h.b16 %v2616
        %v3214 = vunpack.c.l.b16 %v2617
        %v3215 = vunpack.c.l.b16 %v2618
        %v3216 = vunpack.c.h.b16 %v2618
        %v3217 = vunpack.c.l.b16 %v2619
        %v3218 = vunpack.c.h.b16 %v2619
        %v3219 = vunpack.c.l.b16 %v2620
        %v3220 = vunpack.c.h.b16 %v2620
        %v3221 = vunpack.c.l.b16 %v2621
        %v3222 = vunpack.c.l.b16 %v2622
        %v3223 = vunpack.c.h.b16 %v2622
        %v3224 = vunpack.c.l.b16 %v2623
        %v3225 = vunpack.c.h.b16 %v2623
        %v3226 = vunpack.c.l.b16 %v2624
        %v3227 = vunpack.c.h.b16 %v2624
        %v3228 = vunpack.c.l.b16 %v2625
        %v3229 = vunpack.c.l.b16 %v2626
        %v3230 = vunpack.c.h.b16 %v2626
        %v3231 = vunpack.c.l.b16 %v2627
        %v3232 = vunpack.c.h.b16 %v2627
        %v3233 = vunpack.c.l.b16 %v2628
        %v3234 = vunpack.c.h.b16 %v2628
        %v3235 = vunpack.c.l.b16 %v2629
        %v3236 = vunpack.c.l.b16 %v2630
        %v3237 = vunpack.c.h.b16 %v2630
        %v3238 = vunpack.c.l.b16 %v2631
        %v3239 = vunpack.c.h.b16 %v2631
        %v3240 = vunpack.c.l.b16 %v2632
        %v3241 = vunpack.c.h.b16 %v2632
        %v3242 = vunpack.c.l.b16 %v2633
        %v3243 = vunpack.c.l.b16 %v2634
        %v3244 = vunpack.c.h.b16 %v2634
        %v3245 = vunpack.c.l.b16 %v2635
        %v3246 = vunpack.c.h.b16 %v2635
        %v3247 = vunpack.c.l.b16 %v2636
        %v3248 = vunpack.c.h.b16 %v2636
        %v3249 = vunpack.c.l.b16 %v2637
        %v3250 = vunpack.c.l.b16 %v2638
        %v3251 = vunpack.c.h.b16 %v2638
        %v3252 = vunpack.c.l.b16 %v2639
        %v3253 = vunpack.c.h.b16 %v2639
        %v3254 = vunpack.c.l.b16 %v2640
        %v3255 = vunpack.c.h.b16 %v2640
        %v3256 = vunpack.c.l.b16 %v2641
        %v3257 = vunpack.c.l.b16 %v2642
        %v3258 = vunpack.c.h.b16 %v2642
        %v3259 = vunpack.c.l.b16 %v2643
        %v3260 = vunpack.c.h.b16 %v2643
        %v3261 = vunpack.c.l.b16 %v2644
        %v3262 = vunpack.c.h.b16 %v2644
        %v3263 = vunpack.c.l.b16 %v2645
        %v3264 = vunpack.c.l.b16 %v2646
        %v3265 = vunpack.c.h.b16 %v2646
        %v3266 = vunpack.c.l.b16 %v2647
        %v3267 = vunpack.c.h.b16 %v2647
        %v3268 = vunpack.c.l.b16 %v2648
        %v3269 = vunpack.c.h.b16 %v2648
        %v3270 = vunpack.c.l.b16 %v2649
        %v3271 = vunpack.c.l.b16 %v2650
        %v3272 = vunpack.c.h.b16 %v2650
        %v3273 = vunpack.c.l.b16 %v2651
        %v3274 = vunpack.c.h.b16 %v2651
        %v3275 = vunpack.c.l.b16 %v2652
        %v3276 = vunpack.c.h.b16 %v2652
        %v3277 = vunpack.c.l.b16 %v2653
        %v3278 = vunpack.c.l.b16 %v2654
        %v3279 = vunpack.c.h.b16 %v2654
        %v3280 = vunpack.c.l.b16 %v2655
        %v3281 = vunpack.c.h.b16 %v2655
        %v3282 = vunpack.c.l.b16 %v2656
        %v3283 = vunpack.c.h.b16 %v2656
        %v3284 = vunpack.c.l.b16 %v2657
        %v3285 = vunpack.c.l.b16 %v2658
        %v3286 = vunpack.c.h.b16 %v2658
        %v3287 = vunpack.c.l.b16 %v2659
        %v3288 = vunpack.c.h.b16 %v2659
        %v3289 = vunpack.c.l.b16 %v2660
        %v3290 = vunpack.c.h.b16 %v2660
        %v3291 = vunpack.c.l.b16 %v2661
        %v3292 = vunpack.c.l.b16 %v2662
        %v3293 = vunpack.c.h.b16 %v2662
        %v3294 = vunpack.c.l.b16 %v2663
        %v3295 = vunpack.c.h.b16 %v2663
        %v3296 = vunpack.c.l.b16 %v2664
        %v3297 = vunpack.c.h.b16 %v2664
        %v3298 = vunpack.c.l.b16 %v2665
        %v3299 = vunpack.c.l.b16 %v2666
        %v3300 = vunpack.c.h.b16 %v2666
        %v3301 = vunpack.c.l.b16 %v2667
        %v3302 = vunpack.c.h.b16 %v2667
        %v3303 = vunpack.c.l.b16 %v2668
        %v3304 = vunpack.c.h.b16 %v2668
        %v3305 = vunpack.c.l.b16 %v2669
        %v3306 = vunpack.c.l.b16 %v2670
        %v3307 = vunpack.c.h.b16 %v2670
        %v3308 = vunpack.c.l.b16 %v2671
        %v3309 = vunpack.c.h.b16 %v2671
        %v3310 = vunpack.c.l.b16 %v2672
        %v3311 = vunpack.c.h.b16 %v2672
        %v3312 = vunpack.c.l.b16 %v2673
        %v3313 = vunpack.c.l.b16 %v2674
        %v3314 = vunpack.c.h.b16 %v2674
        %v3315 = vunpack.c.l.b16 %v2675
        %v3316 = vunpack.c.h.b16 %v2675
        %v3317 = vunpack.c.l.b16 %v2676
        %v3318 = vunpack.c.h.b16 %v2676
        %v3319 = vunpack.c.l.b16 %v2677
        %v3320 = vunpack.c.l.b16 %v2678
        %v3321 = vunpack.c.h.b16 %v2678
        %v3322 = vunpack.c.l.b16 %v2679
        %v3323 = vunpack.c.h.b16 %v2679
        %v3324 = vunpack.c.l.b16 %v2680
        %v3325 = vunpack.c.h.b16 %v2680
        %v3326 = vunpack.c.l.b16 %v2681
        %v3327 = vunpack.c.l.b16 %v2682
        %v3328 = vunpack.c.h.b16 %v2682
        %v3329 = vunpack.c.l.b16 %v2683
        %v3330 = vunpack.c.h.b16 %v2683
        %v3331 = vunpack.c.l.b16 %v2684
        %v3332 = vunpack.c.h.b16 %v2684
        %v3333 = vunpack.c.l.b16 %v2685
        %v3334 = vunpack.c.l.b16 %v2686
        %v3335 = vunpack.c.h.b16 %v2686
        %v3336 = vunpack.c.l.b16 %v2687
        %v3337 = vunpack.c.h.b16 %v2687
        %v3338 = vunpack.c.l.b16 %v2688
        %v3339 = vunpack.c.h.b16 %v2688
        %v3340 = vunpack.c.l.b16 %v2689
        %v3341 = vunpack.c.l.b16 %v2690
        %v3342 = vunpack.c.h.b16 %v2690
        %v3343 = vunpack.c.l.b16 %v2691
        %v3344 = vunpack.c.h.b16 %v2691
        %v3345 = vunpack.c.l.b16 %v2692
        %v3346 = vunpack.c.h.b16 %v2692
        %v3347 = vunpack.c.l.b16 %v2693
        %v3348 = vunpack.c.l.b16 %v2694
        %v3349 = vunpack.c.h.b16 %v2694
        %v3350 = vunpack.c.l.b16 %v2695
        %v3351 = vunpack.c.h.b16 %v2695
        %v3352 = vunpack.c.l.b16 %v2696
        %v3353 = vunpack.c.h.b16 %v2696
        %v3354 = vunpack.c.l.b16 %v2697
        %v3355 = vunpack.c.l.b16 %v2698
        %v3356 = vunpack.c.h.b16 %v2698
        %v3357 = vunpack.c.l.b16 %v2699
        %v3358 = vunpack.c.h.b16 %v2699
        %v3359 = vunpack.c.l.b16 %v2700
        %v3360 = vunpack.c.h.b16 %v2700
        %v3361 = vunpack.c.l.b16 %v2701
        %v3362 = vunpack.c.l.b16 %v2702
        %v3363 = vunpack.c.h.b16 %v2702
        %v3364 = vunpack.c.l.b16 %v2703
        %v3365 = vunpack.c.h.b16 %v2703
        %v3366 = vunpack.c.l.b16 %v2704
        %v3367 = vunpack.c.h.b16 %v2704
        %v3368 = vunpack.c.l.b16 %v2705
        %v3369 = vunpack.c.l.b16 %v2706
        %v3370 = vunpack.c.h.b16 %v2706
        %v3371 = vunpack.c.l.b16 %v2707
        %v3372 = vunpack.c.h.b16 %v2707
        %v3373 = vunpack.c.l.b16 %v2708
        %v3374 = vunpack.c.h.b16 %v2708
        %v3375 = vunpack.c.l.b16 %v2709
        %v3376 = vunpack.c.l.b16 %v2710
        %v3377 = vunpack.c.h.b16 %v2710
        %v3378 = vunpack.c.l.b16 %v2711
        %v3379 = vunpack.c.h.b16 %v2711
        %v3380 = vunpack.c.l.b16 %v2712
        %v3381 = vunpack.c.h.b16 %v2712
        %v3382 = vunpack.c.l.b16 %v2713
        %v3383 = vunpack.c.l.b16 %v2714
        %v3384 = vunpack.c.h.b16 %v2714
        %v3385 = vunpack.c.l.b16 %v2715
        %v3386 = vunpack.c.h.b16 %v2715
        %v3387 = vunpack.c.l.b16 %v2716
        %v3388 = vunpack.c.h.b16 %v2716
        %v3389 = vunpack.c.l.b16 %v2717
        %v3390 = vunpack.c.l.b16 %v2718
        %v3391 = vunpack.c.h.b16 %v2718
        %v3392 = vunpack.c.l.b16 %v2719
        %v3393 = vunpack.c.h.b16 %v2719
        %v3394 = vunpack.c.l.b16 %v2720
        %v3395 = vunpack.c.h.b16 %v2720
        %v3396 = vunpack.c.l.b16 %v2721
        %v3397 = vunpack.c.l.b16 %v2722
        %v3398 = vunpack.c.h.b16 %v2722
        %v3399 = vunpack.c.l.b16 %v2723
        %v3400 = vunpack.c.h.b16 %v2723
        %v3401 = vunpack.c.l.b16 %v2724
        %v3402 = vunpack.c.h.b16 %v2724
        %v3403 = vunpack.c.l.b16 %v2725
        %v3404 = vunpack.c.l.b16 %v2726
        %v3405 = vunpack.c.h.b16 %v2726
        %v3406 = vunpack.c.l.b16 %v2727
        %v3407 = vunpack.c.h.b16 %v2727
        %v3408 = vunpack.c.l.b16 %v2728
        %v3409 = vunpack.c.h.b16 %v2728
        %v3410 = vunpack.c.l.b16 %v2729
        %v3411 = vunpack.c.l.b16 %v2730
        %v3412 = vunpack.c.h.b16 %v2730
        %v3413 = vunpack.c.l.b16 %v2731
        %v3414 = vunpack.c.h.b16 %v2731
        %v3415 = vunpack.c.l.b16 %v2732
        %v3416 = vunpack.c.h.b16 %v2732
        %v3417 = vunpack.c.l.b16 %v2733
        %v3418 = vunpack.c.l.b16 %v2734
        %v3419 = vunpack.c.h.b16 %v2734
        %v3420 = vunpack.c.l.b16 %v2735
        %v3421 = vunpack.c.h.b16 %v2735
        %v3422 = vunpack.c.l.b16 %v2736
        %v3423 = vunpack.c.h.b16 %v2736
        %v3424 = vunpack.c.l.b16 %v2737
        %v3425 = vunpack.c.l.b16 %v2738
        %v3426 = vunpack.c.h.b16 %v2738
        %v3427 = vunpack.c.l.b16 %v2739
        %v3428 = vunpack.c.h.b16 %v2739
        %v3429 = vunpack.c.l.b16 %v2740
        %v3430 = vunpack.c.h.b16 %v2740
        %v3431 = vunpack.c.l.b16 %v2741
        %v3432 = vunpack.c.l.b16 %v2742
        %v3433 = vunpack.c.h.b16 %v2742
        %v3434 = vunpack.c.l.b16 %v2743
        %v3435 = vunpack.c.h.b16 %v2743
        %v3436 = vunpack.c.l.b16 %v2744
        %v3437 = vunpack.c.h.b16 %v2744
        %v3438 = vunpack.c.l.b16 %v2745
        %v3439 = vunpack.c.l.b16 %v2746
        %v3440 = vunpack.c.h.b16 %v2746
        %v3441 = vunpack.c.l.b16 %v2747
        %v3442 = vunpack.c.h.b16 %v2747
        %v3443 = vunpack.c.l.b16 %v2748
        %v3444 = vunpack.c.h.b16 %v2748
        %v3445 = vunpack.c.l.b16 %v2749
        %v3446 = vunpack.c.l.b16 %v2750
        %v3447 = vunpack.c.h.b16 %v2750
        %v3448 = vunpack.c.l.b16 %v2751
        %v3449 = vunpack.c.h.b16 %v2751
        %v3450 = vunpack.c.l.b16 %v2752
        %v3451 = vunpack.c.h.b16 %v2752
        %v3452 = vunpack.c.l.b16 %v2753
        %v3453 = vunpack.c.l.b16 %v2754
        %v3454 = vunpack.c.h.b16 %v2754
        %v3455 = vunpack.c.l.b16 %v2755
        %v3456 = vunpack.c.h.b16 %v2755
        %v3457 = vunpack.c.l.b16 %v2756
        %v3458 = vunpack.c.h.b16 %v2756
        %v3459 = vunpack.c.l.b16 %v2757
        %v3460 = vunpack.c.l.b16 %v2758
        %v3461 = vunpack.c.h.b16 %v2758
        %v3462 = vunpack.c.l.b16 %v2759
        %v3463 = vunpack.c.h.b16 %v2759
        %v3464 = vunpack.c.l.b16 %v2760
        %v3465 = vunpack.c.h.b16 %v2760
        %v3466 = vunpack.c.l.b16 %v2761
        %v3467 = vunpack.c.l.b16 %v2762
        %v3468 = vunpack.c.h.b16 %v2762
        %v3469 = vunpack.c.l.b16 %v2763
        %v3470 = vunpack.c.h.b16 %v2763
        %v3471 = vunpack.c.l.b16 %v2764
        %v3472 = vunpack.c.h.b16 %v2764
        %v3473 = vunpack.c.l.b16 %v2765
        %v3474 = vunpack.c.l.b16 %v2766
        %v3475 = vunpack.c.h.b16 %v2766
        %v3476 = vunpack.c.l.b16 %v2767
        %v3477 = vunpack.c.h.b16 %v2767
        %v3478 = vunpack.c.l.b16 %v2768
        %v3479 = vunpack.c.h.b16 %v2768
        %v3480 = vunpack.c.l.b16 %v2769
        %v3481 = vunpack.c.l.b16 %v2770
        %v3482 = vunpack.c.h.b16 %v2770
        %v3483 = vunpack.c.l.b16 %v2771
        %v3484 = vunpack.c.h.b16 %v2771
        %v3485 = vunpack.c.l.b16 %v2772
        %v3486 = vunpack.c.h.b16 %v2772
        %v3487 = vunpack.c.l.b16 %v2773
        %v3488 = vunpack.c.l.b16 %v2774
        %v3489 = vunpack.c.h.b16 %v2774
        %v3490 = vunpack.c.l.b16 %v2775
        %v3491 = vunpack.c.h.b16 %v2775
        %v3492 = vunpack.c.l.b16 %v2776
        %v3493 = vunpack.c.h.b16 %v2776
        %v3494 = vunpack.c.l.b16 %v2777
        %v3495 = vunpack.c.l.b16 %v2778
        %v3496 = vunpack.c.h.b16 %v2778
        %v3497 = vunpack.c.l.b16 %v2779
        %v3498 = vunpack.c.h.b16 %v2779
        %v3499 = vunpack.c.l.b16 %v2780
        %v3500 = vunpack.c.h.b16 %v2780
        %v3501 = vunpack.c.l.b16 %v2781
        %v3502 = vunpack.c.l.b16 %v2782
        %v3503 = vunpack.c.h.b16 %v2782
        %v3504 = vunpack.c.l.b16 %v2783
        %v3505 = vunpack.c.h.b16 %v2783
        %v3506 = vunpack.c.l.b16 %v2784
        %v3507 = vunpack.c.h.b16 %v2784
        %v3508 = vunpack.c.l.b16 %v2785
        %v3509 = vunpack.c.l.b16 %v2786
        %v3510 = vunpack.c.h.b16 %v2786
        %v3511 = vunpack.c.l.b16 %v2787
        %v3512 = vunpack.c.h.b16 %v2787
        %v3513 = vunpack.c.l.b16 %v2788
        %v3514 = vunpack.c.h.b16 %v2788
        %v3515 = vunpack.c.l.b16 %v2789
        %v3516 = vunpack.c.l.b16 %v2790
        %v3517 = vunpack.c.h.b16 %v2790
        %v3518 = vunpack.c.l.b16 %v2791
        %v3519 = vunpack.c.h.b16 %v2791
        %v3520 = vunpack.c.l.b16 %v2792
        %v3521 = vunpack.c.h.b16 %v2792
        %v3522 = vunpack.c.l.b16 %v2793
        %v3523 = vunpack.c.l.b16 %v2794
        %v3524 = vunpack.c.h.b16 %v2794
        %v3525 = vunpack.c.l.b16 %v2795
        %v3526 = vunpack.c.h.b16 %v2795
        %v3527 = vunpack.c.l.b16 %v2796
        %v3528 = vunpack.c.h.b16 %v2796
        %v3529 = vunpack.c.l.b16 %v2797
        %v3530 = vunpack.c.l.b16 %v2798
        %v3531 = vunpack.c.h.b16 %v2798
        %v3532 = vunpack.c.l.b16 %v2799
        %v3533 = vunpack.c.h.b16 %v2799
        %v3534 = vunpack.c.l.b16 %v2800
        %v3535 = vunpack.c.h.b16 %v2800
        %v3536 = vunpack.c.l.b16 %v2801
        %v3537 = vunpack.c.l.b16 %v2802
        %v3538 = vunpack.c.h.b16 %v2802
        %v3539 = vunpack.c.l.b16 %v2803
        %v3540 = vunpack.c.h.b16 %v2803
        %v3541 = vunpack.c.l.b16 %v2804
        %v3542 = vunpack.c.h.b16 %v2804
        %v3543 = vunpack.c.l.b16 %v2805
        %v3544 = vunpack.c.l.b16 %v2806
        %v3545 = vunpack.c.h.b16 %v2806
        %v3546 = vunpack.c.l.b16 %v2807
        %v3547 = vunpack.c.h.b16 %v2807
        %v3548 = vunpack.c.l.b16 %v2808
        %v3549 = vunpack.c.h.b16 %v2808
        %v3550 = vunpack.c.l.b16 %v2809
        %v3551 = vpack.c.b16 %v3110, %v3103
        %v3552 = vpack.c.b16 %v3111, %v3104
        %v3553 = vpack.c.b16 %v3112, %v3105
        %v3554 = vpack.c.b16 %v3113, %v3106
        %v3555 = vpack.c.b16 %v3114, %v3107
        %v3556 = vpack.c.b16 %v3115, %v3108
        %v3557 = vpack.c.b16 %v3116, %v3109
        %v3558 = vpack.c.b16 %v3124, %v3117
        %v3559 = vpack.c.b16 %v3125, %v3118
        %v3560 = vpack.c.b16 %v3126, %v3119
        %v3561 = vpack.c.b16 %v3127, %v3120
        %v3562 = vpack.c.b16 %v3128, %v3121
        %v3563 = vpack.c.b16 %v3129, %v3122
        %v3564 = vpack.c.b16 %v3130, %v3123
        %v3565 = vpack.c.b16 %v3138, %v3131
        %v3566 = vpack.c.b16 %v3139, %v3132
        %v3567 = vpack.c.b16 %v3140, %v3133
        %v3568 = vpack.c.b16 %v3141, %v3134
        %v3569 = vpack.c.b16 %v3142, %v3135
        %v3570 = vpack.c.b16 %v3143, %v3136
        %v3571 = vpack.c.b16 %v3144, %v3137
        %v3572 = vpack.c.b16 %v3152, %v3145
        %v3573 = vpack.c.b16 %v3153, %v3146
        %v3574 = vpack.c.b16 %v3154, %v3147
        %v3575 = vpack.c.b16 %v3155, %v3148
        %v3576 = vpack.c.b16 %v3156, %v3149
        %v3577 = vpack.c.b16 %v3157, %v3150
        %v3578 = vpack.c.b16 %v3158, %v3151
        %v3579 = vpack.c.b16 %v3166, %v3159
        %v3580 = vpack.c.b16 %v3167, %v3160
        %v3581 = vpack.c.b16 %v3168, %v3161
        %v3582 = vpack.c.b16 %v3169, %v3162
        %v3583 = vpack.c.b16 %v3170, %v3163
        %v3584 = vpack.c.b16 %v3171, %v3164
        %v3585 = vpack.c.b16 %v3172, %v3165
        %v3586 = vpack.c.b16 %v3180, %v3173
        %v3587 = vpack.c.b16 %v3181, %v3174
        %v3588 = vpack.c.b16 %v3182, %v3175
        %v3589 = vpack.c.b16 %v3183, %v3176
        %v3590 = vpack.c.b16 %v3184, %v3177
        %v3591 = vpack.c.b16 %v3185, %v3178
        %v3592 = vpack.c.b16 %v3186, %v3179
        %v3593 = vpack.c.b16 %v3194, %v3187
        %v3594 = vpack.c.b16 %v3195, %v3188
        %v3595 = vpack.c.b16 %v3196, %v3189
        %v3596 = vpack.c.b16 %v3197, %v3190
        %v3597 = vpack.c.b16 %v3198, %v3191
        %v3598 = vpack.c.b16 %v3199, %v3192
        %v3599 = vpack.c.b16 %v3200, %v3193
        %v3600 = vpack.c.b16 %v3208, %v3201
        %v3601 = vpack.c.b16 %v3209, %v3202
        %v3602 = vpack.c.b16 %v3210, %v3203
        %v3603 = vpack.c.b16 %v3211, %v3204
        %v3604 = vpack.c.b16 %v3212, %v3205
        %v3605 = vpack.c.b16 %v3213, %v3206
        %v3606 = vpack.c.b16 %v3214, %v3207
        %v3607 = vpack.c.b16 %v3222, %v3215
        %v3608 = vpack.c.b16 %v3223, %v3216
        %v3609 = vpack.c.b16 %v3224, %v3217
        %v3610 = vpack.c.b16 %v3225, %v3218
        %v3611 = vpack.c.b16 %v3226, %v3219
        %v3612 = vpack.c.b16 %v3227, %v3220
        %v3613 = vpack.c.b16 %v3228, %v3221
        %v3614 = vpack.c.b16 %v3236, %v3229
        %v3615 = vpack.c.b16 %v3237, %v3230
        %v3616 = vpack.c.b16 %v3238, %v3231
        %v3617 = vpack.c.b16 %v3239, %v3232
        %v3618 = vpack.c.b16 %v3240, %v3233
        %v3619 = vpack.c.b16 %v3241, %v3234
        %v3620 = vpack.c.b16 %v3242, %v3235
        %v3621 = vpack.c.b16 %v3250, %v3243
        %v3622 = vpack.c.b16 %v3251, %v3244
        %v3623 = vpack.c.b16 %v3252, %v3245
        %v3624 = vpack.c.b16 %v3253, %v3246
        %v3625 = vpack.c.b16 %v3254, %v3247
        %v3626 = vpack.c.b16 %v3255, %v3248
        %v3627 = vpack.c.b16 %v3256, %v3249
        %v3628 = vpack.c.b16 %v3264, %v3257
        %v3629 = vpack.c.b16 %v3265, %v3258
        %v3630 = vpack.c.b16 %v3266, %v3259
        %v3631 = vpack.c.b16 %v3267, %v3260
        %v3632 = vpack.c.b16 %v3268, %v3261
        %v3633 = vpack.c.b16 %v3269, %v3262
        %v3634 = vpack.c.b16 %v3270, %v3263
        %v3635 = vpack.c.b16 %v3278, %v3271
        %v3636 = vpack.c.b16 %v3279, %v3272
        %v3637 = vpack.c.b16 %v3280, %v3273
        %v3638 = vpack.c.b16 %v3281, %v3274
        %v3639 = vpack.c.b16 %v3282, %v3275
        %v3640 = vpack.c.b16 %v3283, %v3276
        %v3641 = vpack.c.b16 %v3284, %v3277
        %v3642 = vpack.c.b16 %v3292, %v3285
        %v3643 = vpack.c.b16 %v3293, %v3286
        %v3644 = vpack.c.b16 %v3294, %v3287
        %v3645 = vpack.c.b16 %v3295, %v3288
        %v3646 = vpack.c.b16 %v3296, %v3289
        %v3647 = vpack.c.b16 %v3297, %v3290
        %v3648 = vpack.c.b16 %v3298, %v3291
        %v3649 = vpack.c.b16 %v3306, %v3299
        %v3650 = vpack.c.b16 %v3307, %v3300
        %v3651 = vpack.c.b16 %v3308, %v3301
        %v3652 = vpack.c.b16 %v3309, %v3302
        %v3653 = vpack.c.b16 %v3310, %v3303
        %v3654 = vpack.c.b16 %v3311, %v3304
        %v3655 = vpack.c.b16 %v3312, %v3305
        %v3656 = vpack.c.b16 %v3320, %v3313
        %v3657 = vpack.c.b16 %v3321, %v3314
        %v3658 = vpack.c.b16 %v3322, %v3315
        %v3659 = vpack.c.b16 %v3323, %v3316
        %v3660 = vpack.c.b16 %v3324, %v3317
        %v3661 = vpack.c.b16 %v3325, %v3318
        %v3662 = vpack.c.b16 %v3326, %v3319
        %v3663 = vpack.c.b16 %v3334, %v3327
        %v3664 = vpack.c.b16 %v3335, %v3328
        %v3665 = vpack.c.b16 %v3336, %v3329
        %v3666 = vpack.c.b16 %v3337, %v3330
        %v3667 = vpack.c.b16 %v3338, %v3331
        %v3668 = vpack.c.b16 %v3339, %v3332
        %v3669 = vpack.c.b16 %v3340, %v3333
        %v3670 = vpack.c.b16 %v3348, %v3341
        %v3671 = vpack.c.b16 %v3349, %v3342
        %v3672 = vpack.c.b16 %v3350, %v3343
        %v3673 = vpack.c.b16 %v3351, %v3344
        %v3674 = vpack.c.b16 %v3352, %v3345
        %v3675 = vpack.c.b16 %v3353, %v3346
        %v3676 = vpack.c.b16 %v3354, %v3347
        %v3677 = vpack.c.b16 %v3362, %v3355
        %v3678 = vpack.c.b16 %v3363, %v3356
        %v3679 = vpack.c.b16 %v3364, %v3357
        %v3680 = vpack.c.b16 %v3365, %v3358
        %v3681 = vpack.c.b16 %v3366, %v3359
        %v3682 = vpack.c.b16 %v3367, %v3360
        %v3683 = vpack.c.b16 %v3368, %v3361
        %v3684 = vpack.c.b16 %v3376, %v3369
        %v3685 = vpack.c.b16 %v3377, %v3370
        %v3686 = vpack.c.b16 %v3378, %v3371
        %v3687 = vpack.c.b16 %v3379, %v3372
        %v3688 = vpack.c.b16 %v3380, %v3373
        %v3689 = vpack.c.b16 %v3381, %v3374
        %v3690 = vpack.c.b16 %v3382, %v3375
        %v3691 = vpack.c.b16 %v3390, %v3383
        %v3692 = vpack.c.b16 %v3391, %v3384
        %v3693 = vpack.c.b16 %v3392, %v3385
        %v3694 = vpack.c.b16 %v3393, %v3386
        %v3695 = vpack.c.b16 %v3394, %v3387
        %v3696 = vpack.c.b16 %v3395, %v3388
        %v3697 = vpack.c.b16 %v3396, %v3389
        %v3698 = vpack.c.b16 %v3404, %v3397
        %v3699 = vpack.c.b16 %v3405, %v3398
        %v3700 = vpack.c.b16 %v3406, %v3399
        %v3701 = vpack.c.b16 %v3407, %v3400
        %v3702 = vpack.c.b16 %v3408, %v3401
        %v3703 = vpack.c.b16 %v3409, %v3402
        %v3704 = vpack.c.b16 %v3410, %v3403
        %v3705 = vpack.c.b16 %v3418, %v3411
        %v3706 = vpack.c.b16 %v3419, %v3412
        %v3707 = vpack.c.b16 %v3420, %v3413
        %v3708 = vpack.c.b16 %v3421, %v3414
        %v3709 = vpack.c.b16 %v3422, %v3415
        %v3710 = vpack.c.b16 %v3423, %v3416
        %v3711 = vpack.c.b16 %v3424, %v3417
        %v3712 = vpack.c.b16 %v3432, %v3425
        %v3713 = vpack.c.b16 %v3433, %v3426
        %v3714 = vpack.c.b16 %v3434, %v3427
        %v3715 = vpack.c.b16 %v3435, %v3428
        %v3716 = vpack.c.b16 %v3436, %v3429
        %v3717 = vpack.c.b16 %v3437, %v3430
        %v3718 = vpack.c.b16 %v3438, %v3431
        %v3719 = vpack.c.b16 %v3446, %v3439
        %v3720 = vpack.c.b16 %v3447, %v3440
        %v3721 = vpack.c.b16 %v3448, %v3441
        %v3722 = vpack.c.b16 %v3449, %v3442
        %v3723 = vpack.c.b16 %v3450, %v3443
        %v3724 = vpack.c.b16 %v3451, %v3444
        %v3725 = vpack.c.b16 %v3452, %v3445
        %v3726 = vpack.c.b16 %v3460, %v3453
        %v3727 = vpack.c.b16 %v3461, %v3454
        %v3728 = vpack.c.b16 %v3462, %v3455
        %v3729 = vpack.c.b16 %v3463, %v3456
        %v3730 = vpack.c.b16 %v3464, %v3457
        %v3731 = vpack.c.b16 %v3465, %v3458
        %v3732 = vpack.c.b16 %v3466, %v3459
        %v3733 = vpack.c.b16 %v3474, %v3467
        %v3734 = vpack.c.b16 %v3475, %v3468
        %v3735 = vpack.c.b16 %v3476, %v3469
        %v3736 = vpack.c.b16 %v3477, %v3470
        %v3737 = vpack.c.b16 %v3478, %v3471
        %v3738 = vpack.c.b16 %v3479, %v3472
        %v3739 = vpack.c.b16 %v3480, %v3473
        %v3740 = vpack.c.b16 %v3488, %v3481
        %v3741 = vpack.c.b16 %v3489, %v3482
        %v3742 = vpack.c.b16 %v3490, %v3483
        %v3743 = vpack.c.b16 %v3491, %v3484
        %v3744 = vpack.c.b16 %v3492, %v3485
        %v3745 = vpack.c.b16 %v3493, %v3486
        %v3746 = vpack.c.b16 %v3494, %v3487
        %v3747 = vpack.c.b16 %v3502, %v3495
        %v3748 = vpack.c.b16 %v3503, %v3496
        %v3749 = vpack.c.b16 %v3504, %v3497
        %v3750 = vpack.c.b16 %v3505, %v3498
        %v3751 = vpack.c.b16 %v3506, %v3499
        %v3752 = vpack.c.b16 %v3507, %v3500
        %v3753 = vpack.c.b16 %v3508, %v3501
        %v3754 = vpack.c.b16 %v3516, %v3509
        %v3755 = vpack.c.b16 %v3517, %v3510
        %v3756 = vpack.c.b16 %v3518, %v3511
        %v3757 = vpack.c.b16 %v3519, %v3512
        %v3758 = vpack.c.b16 %v3520, %v3513
        %v3759 = vpack.c.b16 %v3521, %v3514
        %v3760 = vpack.c.b16 %v3522, %v3515
        %v3761 = vpack.c.b16 %v3530, %v3523
        %v3762 = vpack.c.b16 %v3531, %v3524
        %v3763 = vpack.c.b16 %v3532, %v3525
        %v3764 = vpack.c.b16 %v3533, %v3526
        %v3765 = vpack.c.b16 %v3534, %v3527
        %v3766 = vpack.c.b16 %v3535, %v3528
        %v3767 = vpack.c.b16 %v3536, %v3529
        %v3768 = vpack.c.b16 %v3544, %v3537
        %v3769 = vpack.c.b16 %v3545, %v3538
        %v3770 = vpack.c.b16 %v3546, %v3539
        %v3771 = vpack.c.b16 %v3547, %v3540
        %v3772 = vpack.c.b16 %v3548, %v3541
        %v3773 = vpack.c.b16 %v3549, %v3542
        %v3774 = vpack.c.b16 %v3550, %v3543
        %3999 = vmatprep.subr.bf16.mxu0 %v3552
        %4000 = vmatpush1.bf16.msra.mxu0 %v3551
        %4001 = vmatprep.subr.bf16.mxu0 %v3559
        %4002 = vmatpush1.bf16.msra.mxu0 %v3558
        %4003 = vmatprep.subr.bf16.mxu0 %v3566
        %4004 = vmatpush1.bf16.msra.mxu0 %v3565
        %4005 = vmatprep.subr.bf16.mxu0 %v3573
        %4006 = vmatpush1.bf16.msra.mxu0 %v3572
        %4007 = vmatprep.subr.bf16.mxu0 %v3580
        %4008 = vmatpush1.bf16.msra.mxu0 %v3579
        %4009 = vmatprep.subr.bf16.mxu0 %v3587
        %4010 = vmatpush1.bf16.msra.mxu0 %v3586
        %4011 = vmatprep.subr.bf16.mxu0 %v3594
        %4012 = vmatpush1.bf16.msra.mxu0 %v3593
        %4013 = vmatprep.subr.bf16.mxu0 %v3601
        %4014 = vmatpush1.bf16.msra.mxu0 %v3600
        %4015 = vmatprep.subr.bf16.mxu0 %v3608
        %4016 = vmatpush1.bf16.msra.mxu0 %v3607
        %4017 = vmatprep.subr.bf16.mxu0 %v3615
        %4018 = vmatpush1.bf16.msra.mxu0 %v3614
        %4019 = vmatprep.subr.bf16.mxu0 %v3622
        %4020 = vmatpush1.bf16.msra.mxu0 %v3621
        %4021 = vmatprep.subr.bf16.mxu0 %v3629
        %4022 = vmatpush1.bf16.msra.mxu0 %v3628
        %4023 = vmatprep.subr.bf16.mxu0 %v3636
        %4024 = vmatpush1.bf16.msra.mxu0 %v3635
        %4025 = vmatprep.subr.bf16.mxu0 %v3643
        %4026 = vmatpush1.bf16.msra.mxu0 %v3642
        %4027 = vmatprep.subr.bf16.mxu0 %v3650
        %4028 = vmatpush1.bf16.msra.mxu0 %v3649
        %4029 = vmatprep.subr.bf16.mxu0 %v3657
        %4030 = vmatpush1.bf16.msra.mxu0 %v3656
        %4031 = vmatprep.mubr.bf16.mxu0 %v2551
        %4032 = vmatmul.mubr.bf16.gmra.mrb[0].mxu0 %v2550
        %v4033 = vpop.f32.mrb[0].mxu0
        %v4034 = vadd.f32 %v2815, %v4033
        %v4035 = vpop.f32.mrb[0].mxu0
        %v4036 = vadd.f32 %v2819, %v4035
        %v4037 = vpop.f32.mrb[0].mxu0
        %v4038 = vpop.f32.mrb[0].mxu0
        %4039 = vdwg.mxu0
        %4040 = vmatprep.subr.bf16.mxu0 %v3664
        %4041 = vmatpush1.bf16.msra.mxu0 %v3663
        %4042 = vmatprep.subr.bf16.mxu0 %v3671
        %4043 = vmatpush1.bf16.msra.mxu0 %v3670
        %4044 = vmatprep.subr.bf16.mxu0 %v3678
        %4045 = vmatpush1.bf16.msra.mxu0 %v3677
        %4046 = vmatprep.subr.bf16.mxu0 %v3685
        %4047 = vmatpush1.bf16.msra.mxu0 %v3684
        %4048 = vmatprep.subr.bf16.mxu0 %v3692
        %4049 = vmatpush1.bf16.msra.mxu0 %v3691
        %4050 = vmatprep.subr.bf16.mxu0 %v3699
        %4051 = vmatpush1.bf16.msra.mxu0 %v3698
        %4052 = vmatprep.subr.bf16.mxu0 %v3706
        %4053 = vmatpush1.bf16.msra.mxu0 %v3705
        %4054 = vmatprep.subr.bf16.mxu0 %v3713
        %4055 = vmatpush1.bf16.msra.mxu0 %v3712
        %4056 = vmatprep.subr.bf16.mxu0 %v3720
        %4057 = vmatpush1.bf16.msra.mxu0 %v3719
        %4058 = vmatprep.subr.bf16.mxu0 %v3727
        %4059 = vmatpush1.bf16.msra.mxu0 %v3726
        %4060 = vmatprep.subr.bf16.mxu0 %v3734
        %4061 = vmatpush1.bf16.msra.mxu0 %v3733
        %4062 = vmatprep.subr.bf16.mxu0 %v3741
        %4063 = vmatpush1.bf16.msra.mxu0 %v3740
        %4064 = vmatprep.subr.bf16.mxu0 %v3748
        %4065 = vmatpush1.bf16.msra.mxu0 %v3747
        %4066 = vmatprep.subr.bf16.mxu0 %v3755
        %4067 = vmatpush1.bf16.msra.mxu0 %v3754
        %4068 = vmatprep.subr.bf16.mxu0 %v3762
        %4069 = vmatpush1.bf16.msra.mxu0 %v3761
        %4070 = vmatprep.subr.bf16.mxu0 %v3769
        %4071 = vmatpush1.bf16.msra.mxu0 %v3768
        %4072 = vmatprep.mubr.bf16.mxu0 %v2553
        %4073 = vmatmul.mubr.bf16.gmra.mrb[0].mxu0 %v2552
        %v4074 = vpop.f32.mrb[0].mxu0
        %v4075 = vadd.f32 %v4034, %v4074
        %v4076 = vpop.f32.mrb[0].mxu0
        %v4077 = vadd.f32 %v4036, %v4076
        %v4078 = vpop.f32.mrb[0].mxu0
        %v4079 = vpop.f32.mrb[0].mxu0
        %4080 = vdwg.mxu0
        %4081 = vmatprep.subr.bf16.mxu0 %v3554
        %4082 = vmatpush1.bf16.msra.mxu0 %v3553
        %4083 = vmatprep.subr.bf16.mxu0 %v3561
        %4084 = vmatpush1.bf16.msra.mxu0 %v3560
        %4085 = vmatprep.subr.bf16.mxu0 %v3568
        %4086 = vmatpush1.bf16.msra.mxu0 %v3567
        %4087 = vmatprep.subr.bf16.mxu0 %v3575
        %4088 = vmatpush1.bf16.msra.mxu0 %v3574
        %4089 = vmatprep.subr.bf16.mxu0 %v3582
        %4090 = vmatpush1.bf16.msra.mxu0 %v3581
        %4091 = vmatprep.subr.bf16.mxu0 %v3589
        %4092 = vmatpush1.bf16.msra.mxu0 %v3588
        %4093 = vmatprep.subr.bf16.mxu0 %v3596
        %4094 = vmatpush1.bf16.msra.mxu0 %v3595
        %4095 = vmatprep.subr.bf16.mxu0 %v3603
        %4096 = vmatpush1.bf16.msra.mxu0 %v3602
        %4097 = vmatprep.subr.bf16.mxu0 %v3610
        %4098 = vmatpush1.bf16.msra.mxu0 %v3609
        %4099 = vmatprep.subr.bf16.mxu0 %v3617
        %4100 = vmatpush1.bf16.msra.mxu0 %v3616
        %4101 = vmatprep.subr.bf16.mxu0 %v3624
        %4102 = vmatpush1.bf16.msra.mxu0 %v3623
        %4103 = vmatprep.subr.bf16.mxu0 %v3631
        %4104 = vmatpush1.bf16.msra.mxu0 %v3630
        %4105 = vmatprep.subr.bf16.mxu0 %v3638
        %4106 = vmatpush1.bf16.msra.mxu0 %v3637
        %4107 = vmatprep.subr.bf16.mxu0 %v3645
        %4108 = vmatpush1.bf16.msra.mxu0 %v3644
        %4109 = vmatprep.subr.bf16.mxu0 %v3652
        %4110 = vmatpush1.bf16.msra.mxu0 %v3651
        %4111 = vmatprep.subr.bf16.mxu0 %v3659
        %4112 = vmatpush1.bf16.msra.mxu0 %v3658
        %4113 = vmatprep.mubr.bf16.mxu0 %v2551
        %4114 = vmatmul.mubr.bf16.gmra.mrb[0].mxu0 %v2550
        %v4115 = vpop.f32.mrb[0].mxu0
        %v4116 = vadd.f32 %v2823, %v4115
        %v4117 = vpop.f32.mrb[0].mxu0
        %v4118 = vadd.f32 %v2827, %v4117
        %v4119 = vpop.f32.mrb[0].mxu0
        %v4120 = vpop.f32.mrb[0].mxu0
        %4121 = vdwg.mxu0
        %4122 = vmatprep.subr.bf16.mxu0 %v3666
        %4123 = vmatpush1.bf16.msra.mxu0 %v3665
        %4124 = vmatprep.subr.bf16.mxu0 %v3673
        %4125 = vmatpush1.bf16.msra.mxu0 %v3672
        %4126 = vmatprep.subr.bf16.mxu0 %v3680
        %4127 = vmatpush1.bf16.msra.mxu0 %v3679
        %4128 = vmatprep.subr.bf16.mxu0 %v3687
        %4129 = vmatpush1.bf16.msra.mxu0 %v3686
        %4130 = vmatprep.subr.bf16.mxu0 %v3694
        %4131 = vmatpush1.bf16.msra.mxu0 %v3693
        %4132 = vmatprep.subr.bf16.mxu0 %v3701
        %4133 = vmatpush1.bf16.msra.mxu0 %v3700
        %4134 = vmatprep.subr.bf16.mxu0 %v3708
        %4135 = vmatpush1.bf16.msra.mxu0 %v3707
        %4136 = vmatprep.subr.bf16.mxu0 %v3715
        %4137 = vmatpush1.bf16.msra.mxu0 %v3714
        %4138 = vmatprep.subr.bf16.mxu0 %v3722
        %4139 = vmatpush1.bf16.msra.mxu0 %v3721
        %4140 = vmatprep.subr.bf16.mxu0 %v3729
        %4141 = vmatpush1.bf16.msra.mxu0 %v3728
        %4142 = vmatprep.subr.bf16.mxu0 %v3736
        %4143 = vmatpush1.bf16.msra.mxu0 %v3735
        %4144 = vmatprep.subr.bf16.mxu0 %v3743
        %4145 = vmatpush1.bf16.msra.mxu0 %v3742
        %4146 = vmatprep.subr.bf16.mxu0 %v3750
        %4147 = vmatpush1.bf16.msra.mxu0 %v3749
        %4148 = vmatprep.subr.bf16.mxu0 %v3757
        %4149 = vmatpush1.bf16.msra.mxu0 %v3756
        %4150 = vmatprep.subr.bf16.mxu0 %v3764
        %4151 = vmatpush1.bf16.msra.mxu0 %v3763
        %4152 = vmatprep.subr.bf16.mxu0 %v3771
        %4153 = vmatpush1.bf16.msra.mxu0 %v3770
        %4154 = vmatprep.mubr.bf16.mxu0 %v2553
        %4155 = vmatmul.mubr.bf16.gmra.mrb[0].mxu0 %v2552
        %v4156 = vpop.f32.mrb[0].mxu0
        %v4157 = vadd.f32 %v4116, %v4156
        %v4158 = vpop.f32.mrb[0].mxu0
        %v4159 = vadd.f32 %v4118, %v4158
        %v4160 = vpop.f32.mrb[0].mxu0
        %v4161 = vpop.f32.mrb[0].mxu0
        %4162 = vdwg.mxu0
        %4163 = vmatprep.subr.bf16.mxu0 %v3556
        %4164 = vmatpush1.bf16.msra.mxu0 %v3555
        %4165 = vmatprep.subr.bf16.mxu0 %v3563
        %4166 = vmatpush1.bf16.msra.mxu0 %v3562
        %4167 = vmatprep.subr.bf16.mxu0 %v3570
        %4168 = vmatpush1.bf16.msra.mxu0 %v3569
        %4169 = vmatprep.subr.bf16.mxu0 %v3577
        %4170 = vmatpush1.bf16.msra.mxu0 %v3576
        %4171 = vmatprep.subr.bf16.mxu0 %v3584
        %4172 = vmatpush1.bf16.msra.mxu0 %v3583
        %4173 = vmatprep.subr.bf16.mxu0 %v3591
        %4174 = vmatpush1.bf16.msra.mxu0 %v3590
        %4175 = vmatprep.subr.bf16.mxu0 %v3598
        %4176 = vmatpush1.bf16.msra.mxu0 %v3597
        %4177 = vmatprep.subr.bf16.mxu0 %v3605
        %4178 = vmatpush1.bf16.msra.mxu0 %v3604
        %4179 = vmatprep.subr.bf16.mxu0 %v3612
        %4180 = vmatpush1.bf16.msra.mxu0 %v3611
        %4181 = vmatprep.subr.bf16.mxu0 %v3619
        %4182 = vmatpush1.bf16.msra.mxu0 %v3618
        %4183 = vmatprep.subr.bf16.mxu0 %v3626
        %4184 = vmatpush1.bf16.msra.mxu0 %v3625
        %4185 = vmatprep.subr.bf16.mxu0 %v3633
        %4186 = vmatpush1.bf16.msra.mxu0 %v3632
        %4187 = vmatprep.subr.bf16.mxu0 %v3640
        %4188 = vmatpush1.bf16.msra.mxu0 %v3639
        %4189 = vmatprep.subr.bf16.mxu0 %v3647
        %4190 = vmatpush1.bf16.msra.mxu0 %v3646
        %4191 = vmatprep.subr.bf16.mxu0 %v3654
        %4192 = vmatpush1.bf16.msra.mxu0 %v3653
        %4193 = vmatprep.subr.bf16.mxu0 %v3661
        %4194 = vmatpush1.bf16.msra.mxu0 %v3660
        %4195 = vmatprep.mubr.bf16.mxu0 %v2551
        %4196 = vmatmul.mubr.bf16.gmra.mrb[0].mxu0 %v2550
        %v4197 = vpop.f32.mrb[0].mxu0
        %v4198 = vadd.f32 %v2831, %v4197
        %v4199 = vpop.f32.mrb[0].mxu0
        %v4200 = vadd.f32 %v2835, %v4199
        %v4201 = vpop.f32.mrb[0].mxu0
        %v4202 = vpop.f32.mrb[0].mxu0
        %4203 = vdwg.mxu0
        %4204 = vmatprep.subr.bf16.mxu0 %v3668
        %4205 = vmatpush1.bf16.msra.mxu0 %v3667
        %4206 = vmatprep.subr.bf16.mxu0 %v3675
        %4207 = vmatpush1.bf16.msra.mxu0 %v3674
        %4208 = vmatprep.subr.bf16.mxu0 %v3682
        %4209 = vmatpush1.bf16.msra.mxu0 %v3681
        %4210 = vmatprep.subr.bf16.mxu0 %v3689
        %4211 = vmatpush1.bf16.msra.mxu0 %v3688
        %4212 = vmatprep.subr.bf16.mxu0 %v3696
        %4213 = vmatpush1.bf16.msra.mxu0 %v3695
        %4214 = vmatprep.subr.bf16.mxu0 %v3703
        %4215 = vmatpush1.bf16.msra.mxu0 %v3702
        %4216 = vmatprep.subr.bf16.mxu0 %v3710
        %4217 = vmatpush1.bf16.msra.mxu0 %v3709
        %4218 = vmatprep.subr.bf16.mxu0 %v3717
        %4219 = vmatpush1.bf16.msra.mxu0 %v3716
        %4220 = vmatprep.subr.bf16.mxu0 %v3724
        %4221 = vmatpush1.bf16.msra.mxu0 %v3723
        %4222 = vmatprep.subr.bf16.mxu0 %v3731
        %4223 = vmatpush1.bf16.msra.mxu0 %v3730
        %4224 = vmatprep.subr.bf16.mxu0 %v3738
        %4225 = vmatpush1.bf16.msra.mxu0 %v3737
        %4226 = vmatprep.subr.bf16.mxu0 %v3745
        %4227 = vmatpush1.bf16.msra.mxu0 %v3744
        %4228 = vmatprep.subr.bf16.mxu0 %v3752
        %4229 = vmatpush1.bf16.msra.mxu0 %v3751
        %4230 = vmatprep.subr.bf16.mxu0 %v3759
        %4231 = vmatpush1.bf16.msra.mxu0 %v3758
        %4232 = vmatprep.subr.bf16.mxu0 %v3766
        %4233 = vmatpush1.bf16.msra.mxu0 %v3765
        %4234 = vmatprep.subr.bf16.mxu0 %v3773
        %4235 = vmatpush1.bf16.msra.mxu0 %v3772
        %4236 = vmatprep.mubr.bf16.mxu0 %v2553
        %4237 = vmatmul.mubr.bf16.gmra.mrb[0].mxu0 %v2552
        %v4238 = vpop.f32.mrb[0].mxu0
        %v4239 = vadd.f32 %v4198, %v4238
        %v4240 = vpop.f32.mrb[0].mxu0
        %v4241 = vadd.f32 %v4200, %v4240
        %v4242 = vpop.f32.mrb[0].mxu0
        %v4243 = vpop.f32.mrb[0].mxu0
        %4244 = vdwg.mxu0
        %4245 = vmatprep.subr.bf16.mxu0 0
        %4246 = vmatpush1.bf16.msra.mxu0 %v3557
        %4247 = vmatprep.subr.bf16.mxu0 0
        %4248 = vmatpush1.bf16.msra.mxu0 %v3564
        %4249 = vmatprep.subr.bf16.mxu0 0
        %4250 = vmatpush1.bf16.msra.mxu0 %v3571
        %4251 = vmatprep.subr.bf16.mxu0 0
        %4252 = vmatpush1.bf16.msra.mxu0 %v3578
        %4253 = vmatprep.subr.bf16.mxu0 0
        %4254 = vmatpush1.bf16.msra.mxu0 %v3585
        %4255 = vmatprep.subr.bf16.mxu0 0
        %4256 = vmatpush1.bf16.msra.mxu0 %v3592
        %4257 = vmatprep.subr.bf16.mxu0 0
        %4258 = vmatpush1.bf16.msra.mxu0 %v3599
        %4259 = vmatprep.subr.bf16.mxu0 0
        %4260 = vmatpush1.bf16.msra.mxu0 %v3606
        %4261 = vmatprep.subr.bf16.mxu0 0
        %4262 = vmatpush1.bf16.msra.mxu0 %v3613
        %4263 = vmatprep.subr.bf16.mxu0 0
        %4264 = vmatpush1.bf16.msra.mxu0 %v3620
        %4265 = vmatprep.subr.bf16.mxu0 0
        %4266 = vmatpush1.bf16.msra.mxu0 %v3627
        %4267 = vmatprep.subr.bf16.mxu0 0
        %4268 = vmatpush1.bf16.msra.mxu0 %v3634
        %4269 = vmatprep.subr.bf16.mxu0 0
        %4270 = vmatpush1.bf16.msra.mxu0 %v3641
        %4271 = vmatprep.subr.bf16.mxu0 0
        %4272 = vmatpush1.bf16.msra.mxu0 %v3648
        %4273 = vmatprep.subr.bf16.mxu0 0
        %4274 = vmatpush1.bf16.msra.mxu0 %v3655
        %4275 = vmatprep.subr.bf16.mxu0 0
        %4276 = vmatpush1.bf16.msra.mxu0 %v3662
        %4277 = vmatprep.mubr.bf16.mxu0 %v2551
        %4278 = vmatmul.mubr.bf16.gmra.mrb[0].mxu0 %v2550
        %v4279 = vpop.f32.mrb[0].mxu0
        %v4280 = vadd.f32 %v2839, %v4279
        %v4281 = vpop.f32.mrb[0].mxu0
        %v4282 = vpop.f32.mrb[0].mxu0
        %v4283 = vpop.f32.mrb[0].mxu0
        %4284 = vdwg.mxu0
        %4285 = vmatprep.subr.bf16.mxu0 0
        %4286 = vmatpush1.bf16.msra.mxu0 %v3669
        %4287 = vmatprep.subr.bf16.mxu0 0
        %4288 = vmatpush1.bf16.msra.mxu0 %v3676
        %4289 = vmatprep.subr.bf16.mxu0 0
        %4290 = vmatpush1.bf16.msra.mxu0 %v3683
        %4291 = vmatprep.subr.bf16.mxu0 0
        %4292 = vmatpush1.bf16.msra.mxu0 %v3690
        %4293 = vmatprep.subr.bf16.mxu0 0
        %4294 = vmatpush1.bf16.msra.mxu0 %v3697
        %4295 = vmatprep.subr.bf16.mxu0 0
        %4296 = vmatpush1.bf16.msra.mxu0 %v3704
        %4297 = vmatprep.subr.bf16.mxu0 0
        %4298 = vmatpush1.bf16.msra.mxu0 %v3711
        %4299 = vmatprep.subr.bf16.mxu0 0
        %4300 = vmatpush1.bf16.msra.mxu0 %v3718
        %4301 = vmatprep.subr.bf16.mxu0 0
        %4302 = vmatpush1.bf16.msra.mxu0 %v3725
        %4303 = vmatprep.subr.bf16.mxu0 0
        %4304 = vmatpush1.bf16.msra.mxu0 %v3732
        %4305 = vmatprep.subr.bf16.mxu0 0
        %4306 = vmatpush1.bf16.msra.mxu0 %v3739
        %4307 = vmatprep.subr.bf16.mxu0 0
        %4308 = vmatpush1.bf16.msra.mxu0 %v3746
        %4309 = vmatprep.subr.bf16.mxu0 0
        %4310 = vmatpush1.bf16.msra.mxu0 %v3753
        %4311 = vmatprep.subr.bf16.mxu0 0
        %4312 = vmatpush1.bf16.msra.mxu0 %v3760
        %4313 = vmatprep.subr.bf16.mxu0 0
        %4314 = vmatpush1.bf16.msra.mxu0 %v3767
        %4315 = vmatprep.subr.bf16.mxu0 0
        %4316 = vmatpush1.bf16.msra.mxu0 %v3774
        %4317 = vmatprep.mubr.bf16.mxu0 %v2553
        %4318 = vmatmul.mubr.bf16.gmra.mrb[0].mxu0 %v2552
        %v4319 = vpop.f32.mrb[0].mxu0
        %v4320 = vadd.f32 %v4280, %v4319
        %v4321 = vpop.f32.mrb[0].mxu0
        %v4322 = vpop.f32.mrb[0].mxu0
        %v4323 = vpop.f32.mrb[0].mxu0
        %4324 = vdwg.mxu0
        %v4325 = vsub.f32 0.0, %v4075
        %v4326 = vsub.f32 0.0, %v4077
        %v4327 = vsub.f32 0.0, %v4157
        %v4328 = vsub.f32 0.0, %v4159
        %v4329 = vsub.f32 0.0, %v4239
        %v4330 = vsub.f32 0.0, %v4241
        %v4331 = vsub.f32 0.0, %v4320
        %v4332 = vmul.f32 %v4325, 1.442695
        %v4333 = vpow.pop %v4332
        %v4334 = vmul.f32 %v4326, 1.442695
        %v4335 = vpow.pop %v4334
        %v4336 = vmul.f32 %v4327, 1.442695
        %v4337 = vpow.pop %v4336
        %v4338 = vmul.f32 %v4328, 1.442695
        %v4339 = vpow.pop %v4338
        %v4340 = vmul.f32 %v4329, 1.442695
        %v4341 = vpow.pop %v4340
        %v4342 = vmul.f32 %v4330, 1.442695
        %v4343 = vpow.pop %v4342
        %v4344 = vmul.f32 %v4331, 1.442695
        %v4345 = vpow.pop %v4344
        %v4346 = vadd.f32 %v4333, 1.0
        %v4347 = vadd.f32 %v4335, 1.0
        %v4348 = vadd.f32 %v4337, 1.0
        %v4349 = vadd.f32 %v4339, 1.0
        %v4350 = vadd.f32 %v4341, 1.0
        %v4351 = vadd.f32 %v4343, 1.0
        %v4352 = vadd.f32 %v4345, 1.0
        %v4353 = vrcp.pop %v4346
        %v4354 = vrcp.pop %v4347
        %v4355 = vrcp.pop %v4348
        %v4356 = vrcp.pop %v4349
        %v4357 = vrcp.pop %v4350
        %v4358 = vrcp.pop %v4351
        %v4359 = vrcp.pop %v4352
        %v4360 = vpack.c.bf16 %v4353, %v4353
        %v4361 = vpack.c.bf16 %v4354, %v4354
        %v4362 = vpack.c.bf16 %v4355, %v4355
        %v4363 = vpack.c.bf16 %v4356, %v4356
        %v4364 = vpack.c.bf16 %v4357, %v4357
        %v4365 = vpack.c.bf16 %v4358, %v4358
        %v4366 = vpack.c.bf16 %v4359, %v4359
        %v4374 = vunpack.c.l.b16 %v4360
        %v4375 = vunpack.c.l.b16 %v4361
        %v4376 = vunpack.c.l.b16 %v4362
        %v4377 = vunpack.c.l.b16 %v4363
        %v4378 = vunpack.c.l.b16 %v4364
        %v4379 = vunpack.c.l.b16 %v4365
        %v4380 = vunpack.c.l.b16 %v4366
        %v4381 = vpack.c.b16 %v4375, %v4374
        %v4382 = vpack.c.b16 %v4377, %v4376
        %v4383 = vpack.c.b16 %v4379, %v4378
        %v4384 = vpack.c.b16 %v4380, %v4380
        %4389 = vst [vmem:[%s426] sm:$0xff] %v4381
        %4390 = vst [vmem:[%s426 + $0x8] sm:$0xff] %v4382
        %4391 = vst [vmem:[%s426 + $0x10] sm:$0xff] %v4383
        %4392 = vst [vmem:[%s426 + $0x18] sm:$0xf] %v4384
        %s4393 = sand.u32 %s259, 1
        %s4394 = scalar_lea.sflag [#allocation4], %s4393
        %s4395 = sand.u32 %s259, 1
        %s4396 = smul.addr %s4395, 28
        %s4397 = scalar_lea.vmem [#allocation7], %s4396
        %s4398 = sand.u32 %s285, 1
        %s4399 = scalar_lea.sflag [#allocation9], %s4398
        %s4400 = sand.u32 %s285, 1
        %s4401 = smul.addr %s4400, 8
        %s4402 = scalar_lea.vmem [#allocation8], %s4401
        // Predicated region
        $region69: #{tpu_custom_call.1} parent=59 // pred_check
          %p4403 = pneg %p269
        $region70: #{tpu_custom_call.1} parent=59 // pred_check_branch
          %4405 = sbr.rel (%p4403) target = $region72
        $region71: #{tpu_custom_call.1} parent=59 // pred_region
          %s4407 = ssub.s32 448, 448
          %4408 = vsyncadd %s4394, %s4407
          %s4409 = smul.addr %s31, 7
          %s4410 = smul.addr %s4409, 64
          %s4411 = scalar_lea.hbm %s10, %s4410
          %s4413 = sshll.u32 %s4397, 4
          %s4414 = int_to_ptr.vmem [resolvable:$true] %s4413
          %4416 = dma.vmem_to_hbm [thread:$0]  %s4414, 448, %s4411, %s4394
        $region72: #{tpu_custom_call.1} parent=59 // pred_fallthru
          _
        // Predicated region
        $region73: #{tpu_custom_call.1} parent=59 // pred_check
          %p4417 = pneg %p295
        $region74: #{tpu_custom_call.1} parent=59 // pred_check_branch
          %4419 = sbr.rel (%p4417) target = $region76
        $region75: #{tpu_custom_call.1} parent=59 // pred_region
          %s4421 = ssub.s32 128, 128
          %4422 = vsyncadd %s4399, %s4421
          %s4423 = smul.addr %s31, 128
          %s4424 = scalar_lea.hbm %s11, %s4423
          %s4426 = sshll.u32 %s4402, 4
          %s4427 = int_to_ptr.vmem [resolvable:$true] %s4426
          %4429 = dma.vmem_to_hbm [thread:$0]  %s4427, 128, %s4424, %s4399
        $region76: #{tpu_custom_call.1} parent=59 // pred_fallthru
          _
      $region60: #{tpu_custom_call.1} parent=5 // pred_fallthru
        _
      %p4430 = scmp.le.s32.totalorder 2, %s26
      // Predicated region
      $region77: #{tpu_custom_call.1} parent=5 // pred_check
        %p4431 = pneg %p4430
      $region78: #{tpu_custom_call.1} parent=5 // pred_check_branch
        %4433 = sbr.rel (%p4431) target = $region80
      $region79: #{tpu_custom_call.1} parent=5 // pred_region
        %s4434 = ssub.s32 %s26, 2
        // Predicated region
        $region81: #{tpu_custom_call.1} parent=79 // pred_check
          %p4435 = pneg %p275
        $region82: #{tpu_custom_call.1} parent=79 // pred_check_branch
          %4437 = sbr.rel (%p4435) target = $region84
        $region83: #{tpu_custom_call.1} parent=79 // pred_region
          %s4438 = sand.u32 %s260, 1
          %s4439 = scalar_lea.sflag [#allocation4], %s4438
          %s4440 = sand.u32 %s260, 1
          %s4441 = smul.addr %s4440, 28
          %s4442 = scalar_lea.vmem [#allocation7], %s4441
          %4443 = dma.done %s4439, 448
        $region84: #{tpu_custom_call.1} parent=79 // pred_fallthru
          _
        // Predicated region
        $region85: #{tpu_custom_call.1} parent=79 // pred_check
          %p4444 = pneg %p301
        $region86: #{tpu_custom_call.1} parent=79 // pred_check_branch
          %4446 = sbr.rel (%p4444) target = $region88
        $region87: #{tpu_custom_call.1} parent=79 // pred_region
          %s4447 = sand.u32 %s286, 1
          %s4448 = scalar_lea.sflag [#allocation9], %s4447
          %s4449 = sand.u32 %s286, 1
          %s4450 = smul.addr %s4449, 8
          %s4451 = scalar_lea.vmem [#allocation8], %s4450
          %4452 = dma.done %s4448, 128
        $region88: #{tpu_custom_call.1} parent=79 // pred_fallthru
          _
      $region80: #{tpu_custom_call.1} parent=5 // pred_fallthru
        _
    $region6: #{tpu_custom_call.1} parent=1 // loop_footer
      %s30 = sadd.s32 1, %s26
    $region7: #{tpu_custom_call.1} parent=1 // loop_footer_branch
      %25 = sbr.rel target = $region3
    $region8: #{tpu_custom_call.1} parent=1 // loop_exit
      _
    %4453 = vsyncpa [#allocation3], 1
    %s4454 = scalar_lea.sflag [#allocation3], 1
    %4455 = vsyncpa %s4454, 1
    %4456 = vsyncpa [#allocation6], 1
    %4457 = vsyncpa [#allocation4], 1
    %s4458 = scalar_lea.sflag [#allocation4], 1
    %4459 = vsyncpa %s4458, 1
    %4460 = vsyncpa [#allocation9], 1
    %s4461 = scalar_lea.sflag [#allocation9], 1
    %4462 = vsyncpa %s4461, 1

</llo_original>
